<compile_context>
chip_gen: v7x
topology: tpu7x:2x2x1
jax: 0.10.0
libtpu: 0.0.40
codegen_flags: <defaults>
</compile_context>

<pallas_src>
import jax
import jax.numpy as jnp
from jax.experimental import pallas as pl
from jax.experimental.pallas import tpu as pltpu


def _gelu_exact(x):
    # GELU(x) = 0.5*x*(1 + erf(x/sqrt(2)))
    # erf via Abramowitz-Stegun 7.1.26 (|err| < 1.5e-7); uses only abs/where/exp
    # which all lower cleanly on the VPU/EUP.
    z = x * 0.7071067811865476
    a = jnp.abs(z)
    t = 1.0 / (1.0 + 0.3275911 * a)
    poly = t * (0.254829592 + t * (-0.284496736 + t * (1.421413741
             + t * (-1.453152027 + t * 1.061405429))))
    erf_abs = 1.0 - poly * jnp.exp(-a * a)
    erf = jnp.where(z >= 0.0, erf_abs, -erf_abs)
    return 0.5 * x * (1.0 + erf)


def _resblock_kernel(x_ref, w1_ref, b1_ref, w2_ref, b2_ref, o_ref, pad_ref):
    # x_ref : (1, C, H, W) VMEM      o_ref : (1, C, H, W) VMEM
    # w*_ref: (C*C*9,) SMEM          b*_ref: (C,) SMEM
    # pad_ref: (C, H+2, W+2) VMEM scratch (zero halo, reused for both convs)
    C = x_ref.shape[1]
    H, W = x_ref.shape[2], x_ref.shape[3]
    Hp, Wp = H + 2, W + 2

    # Re-zero only the 1-pixel halo border (cheap; safe under batch sharding).
    zrow = jnp.zeros((C, 1, Wp), jnp.float32)
    zcol = jnp.zeros((C, Hp, 1), jnp.float32)
    pad_ref[:, 0:1, :] = zrow
    pad_ref[:, Hp - 1:Hp, :] = zrow
    pad_ref[:, :, 0:1] = zcol
    pad_ref[:, :, Wp - 1:Wp] = zcol

    def conv3x3(w_ref, b_ref):
        acc = [jnp.zeros((H, W), jnp.float32) + b_ref[oc] for oc in range(C)]
        for ic in range(C):
            for ky in range(3):
                for kx in range(3):
                    win = pad_ref[ic, ky:ky + H, kx:kx + W]
                    base = ic * 9 + ky * 3 + kx
                    for oc in range(C):
                        acc[oc] = acc[oc] + w_ref[oc * C * 9 + base] * win
        return acc

    # conv1 input: zero-padded x (interior written each step).
    pad_ref[:, 1:1 + H, 1:1 + W] = x_ref[0]
    h = conv3x3(w1_ref, b1_ref)

    # GELU, then stage as the (already padded) conv2 input in the same scratch.
    for oc in range(C):
        pad_ref[oc, 1:1 + H, 1:1 + W] = _gelu_exact(h[oc])

    out = conv3x3(w2_ref, b2_ref)

    # Residual add + store.
    for oc in range(C):
        o_ref[0, oc] = out[oc] + x_ref[0, oc]


def resblock_forward(x, params):
    w1, b1, w2, b2 = params
    N, C, H, W = x.shape
    smem = pl.BlockSpec(memory_space=pltpu.MemorySpace.SMEM)
    flat = lambda a: a.reshape(-1).astype(jnp.float32)

    cost = pl.CostEstimate(
        flops=int(N * (2 * 2 * C * C * 9 * H * W + 12 * C * H * W)),
        transcendentals=int(N * C * H * W),
        bytes_accessed=int(4 * (2 * N * C * H * W + 2 * C * C * 9 + 2 * C)),
    )

    return pl.pallas_call(
        _resblock_kernel,
        out_shape=jax.ShapeDtypeStruct((N, C, H, W), jnp.float32),
        grid=(N,),
        in_specs=[pl.BlockSpec((1, C, H, W), lambda n: (n, 0, 0, 0))]
                 + [smem] * 4,
        out_specs=pl.BlockSpec((1, C, H, W), lambda n: (n, 0, 0, 0)),
        scratch_shapes=[pltpu.VMEM((C, H + 2, W + 2), jnp.float32)],
        compiler_params=pltpu.CompilerParams(
            dimension_semantics=("parallel",)),
        cost_estimate=cost,
    )(x.astype(jnp.float32), flat(w1), flat(b1), flat(w2), flat(b2))


# ----------------------------- pure-JAX reference ----------------------------
def _conv2d_ref(x, w, b, padding=1):
    out = jax.lax.conv_general_dilated(
        x, w, window_strides=(1, 1),
        padding=((padding, padding), (padding, padding)),
        dimension_numbers=("NCHW", "OIHW", "NCHW"))
    return out + b[None, :, None, None]


def resblock_ref(x, params):
    w1, b1, w2, b2 = params
    h = _conv2d_ref(x, w1, b1)
    h = jax.nn.gelu(h, approximate=False)   # PyTorch nn.GELU() default (erf)
    h = _conv2d_ref(h, w2, b2)
    return h + x


def init_params(key, C):
    k1, k2, k3, k4 = jax.random.split(key, 4)
    w1 = 0.2 * jax.random.normal(k1, (C, C, 3, 3), jnp.float32)
    b1 = 0.1 * jax.random.normal(k2, (C,), jnp.float32)
    w2 = 0.2 * jax.random.normal(k3, (C, C, 3, 3), jnp.float32)
    b2 = 0.1 * jax.random.normal(k4, (C,), jnp.float32)
    return (w1, b1, w2, b2)


if __name__ == "__main__":
    key = jax.random.PRNGKey(0)
    kx, kp = jax.random.split(key)
    N, C, H, W = 2, 4, 16, 16
    x = jax.random.normal(kx, (N, C, H, W), jnp.float32)
    params = init_params(kp, C)

    out = resblock_forward(x, params)
    out = jax.block_until_ready(out)

    ref = resblock_ref(x, params)
    err = float(jnp.max(jnp.abs(out - ref)))
    assert out.shape == (N, C, H, W)
    assert err < 1e-3, f"max abs err {err}"
    print("KERNEL_OK")
</pallas_src>

<mosaic_0001>
module attributes {stable_mosaic.version = 11 : i64} {
  func.func @_resblock_kernel(%arg0: i32, %arg1: memref<1x4x16x16xf32, #tpu.memory_space<vmem>>, %arg2: memref<144xf32, #tpu.memory_space<smem>>, %arg3: memref<4xf32, #tpu.memory_space<smem>>, %arg4: memref<144xf32, #tpu.memory_space<smem>>, %arg5: memref<4xf32, #tpu.memory_space<smem>>, %arg6: memref<1x4x16x16xf32, #tpu.memory_space<vmem>>, %arg7: memref<4x18x18xf32, #tpu.memory_space<vmem>>) attributes {dimension_semantics = [#tpu.dimension_semantics<parallel>], iteration_bounds = array<i64: 2>, scalar_prefetch = 0 : i64, scratch_operands = 1 : i64, tpu.core_type = #tpu.core_type<tc>, window_params = [{transform_indices = @transform_0, window_bounds = array<i64: 1, 4, 16, 16>}, {transform_indices = @transform_1, window_bounds = array<i64: 144>}, {transform_indices = @transform_2, window_bounds = array<i64: 4>}, {transform_indices = @transform_3, window_bounds = array<i64: 144>}, {transform_indices = @transform_4, window_bounds = array<i64: 4>}, {transform_indices = @transform_5, window_bounds = array<i64: 1, 4, 16, 16>}]} {
    %cst = arith.constant 0.000000e+00 : f32
    %0 = vector.broadcast %cst : f32 to vector<4x1x18xf32>
    %cst_0 = arith.constant 0.000000e+00 : f32
    %1 = vector.broadcast %cst_0 : f32 to vector<4x18x1xf32>
    %c0 = arith.constant 0 : index
    %c0_1 = arith.constant 0 : index
    %c0_2 = arith.constant 0 : index
    %2 = vector.load %arg7[%c0, %c0_1, %c0_2] : memref<4x18x18xf32, #tpu.memory_space<vmem>>, vector<4x1x18xf32>
    tpu.vector_store %arg7[%c0, %c0_1, %c0_2], %0 {strides = array<i32>} : memref<4x18x18xf32, #tpu.memory_space<vmem>>, vector<4x1x18xf32>,
    %c0_3 = arith.constant 0 : index
    %c17 = arith.constant 17 : index
    %c0_4 = arith.constant 0 : index
    %3 = vector.load %arg7[%c0_3, %c17, %c0_4] : memref<4x18x18xf32, #tpu.memory_space<vmem>>, vector<4x1x18xf32>
    tpu.vector_store %arg7[%c0_3, %c17, %c0_4], %0 {strides = array<i32>} : memref<4x18x18xf32, #tpu.memory_space<vmem>>, vector<4x1x18xf32>,
    %c0_5 = arith.constant 0 : index
    %c0_6 = arith.constant 0 : index
    %c0_7 = arith.constant 0 : index
    %4 = vector.load %arg7[%c0_5, %c0_6, %c0_7] : memref<4x18x18xf32, #tpu.memory_space<vmem>>, vector<4x18x1xf32>
    tpu.vector_store %arg7[%c0_5, %c0_6, %c0_7], %1 {strides = array<i32>} : memref<4x18x18xf32, #tpu.memory_space<vmem>>, vector<4x18x1xf32>,
    %c0_8 = arith.constant 0 : index
    %c0_9 = arith.constant 0 : index
    %c17_10 = arith.constant 17 : index
    %5 = vector.load %arg7[%c0_8, %c0_9, %c17_10] : memref<4x18x18xf32, #tpu.memory_space<vmem>>, vector<4x18x1xf32>
    tpu.vector_store %arg7[%c0_8, %c0_9, %c17_10], %1 {strides = array<i32>} : memref<4x18x18xf32, #tpu.memory_space<vmem>>, vector<4x18x1xf32>,
    %c0_11 = arith.constant 0 : index
    %c0_12 = arith.constant 0 : index
    %c0_13 = arith.constant 0 : index
    %c0_14 = arith.constant 0 : index
    %6 = vector.load %arg1[%c0_11, %c0_12, %c0_13, %c0_14] : memref<1x4x16x16xf32, #tpu.memory_space<vmem>>, vector<1x4x16x16xf32>
    %7 = vector.shape_cast %6 : vector<1x4x16x16xf32> to vector<4x16x16xf32>
    %c0_15 = arith.constant 0 : index
    %c1 = arith.constant 1 : index
    %c1_16 = arith.constant 1 : index
    %8 = vector.load %arg7[%c0_15, %c1, %c1_16] : memref<4x18x18xf32, #tpu.memory_space<vmem>>, vector<4x16x16xf32>
    tpu.vector_store %arg7[%c0_15, %c1, %c1_16], %7 {strides = array<i32>} : memref<4x18x18xf32, #tpu.memory_space<vmem>>, vector<4x16x16xf32>,
    %cst_17 = arith.constant 0.000000e+00 : f32
    %9 = vector.broadcast %cst_17 : f32 to vector<16x16xf32>
    %c0_18 = arith.constant 0 : index
    %10 = memref.load %arg3[%c0_18] : memref<4xf32, #tpu.memory_space<smem>>
    %11 = vector.broadcast %10 : f32 to vector<16x16xf32>
    %12 = arith.addf %9, %11 : vector<16x16xf32>
    %cst_19 = arith.constant 0.000000e+00 : f32
    %13 = vector.broadcast %cst_19 : f32 to vector<16x16xf32>
    %c1_20 = arith.constant 1 : index
    %14 = memref.load %arg3[%c1_20] : memref<4xf32, #tpu.memory_space<smem>>
    %15 = vector.broadcast %14 : f32 to vector<16x16xf32>
    %16 = arith.addf %13, %15 : vector<16x16xf32>
    %cst_21 = arith.constant 0.000000e+00 : f32
    %17 = vector.broadcast %cst_21 : f32 to vector<16x16xf32>
    %c2 = arith.constant 2 : index
    %18 = memref.load %arg3[%c2] : memref<4xf32, #tpu.memory_space<smem>>
    %19 = vector.broadcast %18 : f32 to vector<16x16xf32>
    %20 = arith.addf %17, %19 : vector<16x16xf32>
    %cst_22 = arith.constant 0.000000e+00 : f32
    %21 = vector.broadcast %cst_22 : f32 to vector<16x16xf32>
    %c3 = arith.constant 3 : index
    %22 = memref.load %arg3[%c3] : memref<4xf32, #tpu.memory_space<smem>>
    %23 = vector.broadcast %22 : f32 to vector<16x16xf32>
    %24 = arith.addf %21, %23 : vector<16x16xf32>
    %c0_23 = arith.constant 0 : index
    %c0_24 = arith.constant 0 : index
    %c0_25 = arith.constant 0 : index
    %25 = vector.load %arg7[%c0_23, %c0_24, %c0_25] : memref<4x18x18xf32, #tpu.memory_space<vmem>>, vector<1x16x16xf32>
    %26 = vector.shape_cast %25 : vector<1x16x16xf32> to vector<16x16xf32>
    %c0_26 = arith.constant 0 : index
    %27 = memref.load %arg2[%c0_26] : memref<144xf32, #tpu.memory_space<smem>>
    %28 = vector.broadcast %27 : f32 to vector<16x16xf32>
    %29 = arith.mulf %28, %26 : vector<16x16xf32>
    %30 = arith.addf %12, %29 : vector<16x16xf32>
    %c36 = arith.constant 36 : index
    %31 = memref.load %arg2[%c36] : memref<144xf32, #tpu.memory_space<smem>>
    %32 = vector.broadcast %31 : f32 to vector<16x16xf32>
    %33 = arith.mulf %32, %26 : vector<16x16xf32>
    %34 = arith.addf %16, %33 : vector<16x16xf32>
    %c72 = arith.constant 72 : index
    %35 = memref.load %arg2[%c72] : memref<144xf32, #tpu.memory_space<smem>>
    %36 = vector.broadcast %35 : f32 to vector<16x16xf32>
    %37 = arith.mulf %36, %26 : vector<16x16xf32>
    %38 = arith.addf %20, %37 : vector<16x16xf32>
    %c108 = arith.constant 108 : index
    %39 = memref.load %arg2[%c108] : memref<144xf32, #tpu.memory_space<smem>>
    %40 = vector.broadcast %39 : f32 to vector<16x16xf32>
    %41 = arith.mulf %40, %26 : vector<16x16xf32>
    %42 = arith.addf %24, %41 : vector<16x16xf32>
    %c0_27 = arith.constant 0 : index
    %c0_28 = arith.constant 0 : index
    %c1_29 = arith.constant 1 : index
    %43 = vector.load %arg7[%c0_27, %c0_28, %c1_29] : memref<4x18x18xf32, #tpu.memory_space<vmem>>, vector<1x16x16xf32>
    %44 = vector.shape_cast %43 : vector<1x16x16xf32> to vector<16x16xf32>
    %c1_30 = arith.constant 1 : index
    %45 = memref.load %arg2[%c1_30] : memref<144xf32, #tpu.memory_space<smem>>
    %46 = vector.broadcast %45 : f32 to vector<16x16xf32>
    %47 = arith.mulf %46, %44 : vector<16x16xf32>
    %48 = arith.addf %30, %47 : vector<16x16xf32>
    %c37 = arith.constant 37 : index
    %49 = memref.load %arg2[%c37] : memref<144xf32, #tpu.memory_space<smem>>
    %50 = vector.broadcast %49 : f32 to vector<16x16xf32>
    %51 = arith.mulf %50, %44 : vector<16x16xf32>
    %52 = arith.addf %34, %51 : vector<16x16xf32>
    %c73 = arith.constant 73 : index
    %53 = memref.load %arg2[%c73] : memref<144xf32, #tpu.memory_space<smem>>
    %54 = vector.broadcast %53 : f32 to vector<16x16xf32>
    %55 = arith.mulf %54, %44 : vector<16x16xf32>
    %56 = arith.addf %38, %55 : vector<16x16xf32>
    %c109 = arith.constant 109 : index
    %57 = memref.load %arg2[%c109] : memref<144xf32, #tpu.memory_space<smem>>
    %58 = vector.broadcast %57 : f32 to vector<16x16xf32>
    %59 = arith.mulf %58, %44 : vector<16x16xf32>
    %60 = arith.addf %42, %59 : vector<16x16xf32>
    %c0_31 = arith.constant 0 : index
    %c0_32 = arith.constant 0 : index
    %c2_33 = arith.constant 2 : index
    %61 = vector.load %arg7[%c0_31, %c0_32, %c2_33] : memref<4x18x18xf32, #tpu.memory_space<vmem>>, vector<1x16x16xf32>
    %62 = vector.shape_cast %61 : vector<1x16x16xf32> to vector<16x16xf32>
    %c2_34 = arith.constant 2 : index
    %63 = memref.load %arg2[%c2_34] : memref<144xf32, #tpu.memory_space<smem>>
    %64 = vector.broadcast %63 : f32 to vector<16x16xf32>
    %65 = arith.mulf %64, %62 : vector<16x16xf32>
    %66 = arith.addf %48, %65 : vector<16x16xf32>
    %c38 = arith.constant 38 : index
    %67 = memref.load %arg2[%c38] : memref<144xf32, #tpu.memory_space<smem>>
    %68 = vector.broadcast %67 : f32 to vector<16x16xf32>
    %69 = arith.mulf %68, %62 : vector<16x16xf32>
    %70 = arith.addf %52, %69 : vector<16x16xf32>
    %c74 = arith.constant 74 : index
    %71 = memref.load %arg2[%c74] : memref<144xf32, #tpu.memory_space<smem>>
    %72 = vector.broadcast %71 : f32 to vector<16x16xf32>
    %73 = arith.mulf %72, %62 : vector<16x16xf32>
    %74 = arith.addf %56, %73 : vector<16x16xf32>
    %c110 = arith.constant 110 : index
    %75 = memref.load %arg2[%c110] : memref<144xf32, #tpu.memory_space<smem>>
    %76 = vector.broadcast %75 : f32 to vector<16x16xf32>
    %77 = arith.mulf %76, %62 : vector<16x16xf32>
    %78 = arith.addf %60, %77 : vector<16x16xf32>
    %c0_35 = arith.constant 0 : index
    %c1_36 = arith.constant 1 : index
    %c0_37 = arith.constant 0 : index
    %79 = vector.load %arg7[%c0_35, %c1_36, %c0_37] : memref<4x18x18xf32, #tpu.memory_space<vmem>>, vector<1x16x16xf32>
    %80 = vector.shape_cast %79 : vector<1x16x16xf32> to vector<16x16xf32>
    %c3_38 = arith.constant 3 : index
    %81 = memref.load %arg2[%c3_38] : memref<144xf32, #tpu.memory_space<smem>>
    %82 = vector.broadcast %81 : f32 to vector<16x16xf32>
    %83 = arith.mulf %82, %80 : vector<16x16xf32>
    %84 = arith.addf %66, %83 : vector<16x16xf32>
    %c39 = arith.constant 39 : index
    %85 = memref.load %arg2[%c39] : memref<144xf32, #tpu.memory_space<smem>>
    %86 = vector.broadcast %85 : f32 to vector<16x16xf32>
    %87 = arith.mulf %86, %80 : vector<16x16xf32>
    %88 = arith.addf %70, %87 : vector<16x16xf32>
    %c75 = arith.constant 75 : index
    %89 = memref.load %arg2[%c75] : memref<144xf32, #tpu.memory_space<smem>>
    %90 = vector.broadcast %89 : f32 to vector<16x16xf32>
    %91 = arith.mulf %90, %80 : vector<16x16xf32>
    %92 = arith.addf %74, %91 : vector<16x16xf32>
    %c111 = arith.constant 111 : index
    %93 = memref.load %arg2[%c111] : memref<144xf32, #tpu.memory_space<smem>>
    %94 = vector.broadcast %93 : f32 to vector<16x16xf32>
    %95 = arith.mulf %94, %80 : vector<16x16xf32>
    %96 = arith.addf %78, %95 : vector<16x16xf32>
    %c0_39 = arith.constant 0 : index
    %c1_40 = arith.constant 1 : index
    %c1_41 = arith.constant 1 : index
    %97 = vector.load %arg7[%c0_39, %c1_40, %c1_41] : memref<4x18x18xf32, #tpu.memory_space<vmem>>, vector<1x16x16xf32>
    %98 = vector.shape_cast %97 : vector<1x16x16xf32> to vector<16x16xf32>
    %c4 = arith.constant 4 : index
    %99 = memref.load %arg2[%c4] : memref<144xf32, #tpu.memory_space<smem>>
    %100 = vector.broadcast %99 : f32 to vector<16x16xf32>
    %101 = arith.mulf %100, %98 : vector<16x16xf32>
    %102 = arith.addf %84, %101 : vector<16x16xf32>
    %c40 = arith.constant 40 : index
    %103 = memref.load %arg2[%c40] : memref<144xf32, #tpu.memory_space<smem>>
    %104 = vector.broadcast %103 : f32 to vector<16x16xf32>
    %105 = arith.mulf %104, %98 : vector<16x16xf32>
    %106 = arith.addf %88, %105 : vector<16x16xf32>
    %c76 = arith.constant 76 : index
    %107 = memref.load %arg2[%c76] : memref<144xf32, #tpu.memory_space<smem>>
    %108 = vector.broadcast %107 : f32 to vector<16x16xf32>
    %109 = arith.mulf %108, %98 : vector<16x16xf32>
    %110 = arith.addf %92, %109 : vector<16x16xf32>
    %c112 = arith.constant 112 : index
    %111 = memref.load %arg2[%c112] : memref<144xf32, #tpu.memory_space<smem>>
    %112 = vector.broadcast %111 : f32 to vector<16x16xf32>
    %113 = arith.mulf %112, %98 : vector<16x16xf32>
    %114 = arith.addf %96, %113 : vector<16x16xf32>
    %c0_42 = arith.constant 0 : index
    %c1_43 = arith.constant 1 : index
    %c2_44 = arith.constant 2 : index
    %115 = vector.load %arg7[%c0_42, %c1_43, %c2_44] : memref<4x18x18xf32, #tpu.memory_space<vmem>>, vector<1x16x16xf32>
    %116 = vector.shape_cast %115 : vector<1x16x16xf32> to vector<16x16xf32>
    %c5 = arith.constant 5 : index
    %117 = memref.load %arg2[%c5] : memref<144xf32, #tpu.memory_space<smem>>
    %118 = vector.broadcast %117 : f32 to vector<16x16xf32>
    %119 = arith.mulf %118, %116 : vector<16x16xf32>
    %120 = arith.addf %102, %119 : vector<16x16xf32>
    %c41 = arith.constant 41 : index
    %121 = memref.load %arg2[%c41] : memref<144xf32, #tpu.memory_space<smem>>
    %122 = vector.broadcast %121 : f32 to vector<16x16xf32>
    %123 = arith.mulf %122, %116 : vector<16x16xf32>
    %124 = arith.addf %106, %123 : vector<16x16xf32>
    %c77 = arith.constant 77 : index
    %125 = memref.load %arg2[%c77] : memref<144xf32, #tpu.memory_space<smem>>
    %126 = vector.broadcast %125 : f32 to vector<16x16xf32>
    %127 = arith.mulf %126, %116 : vector<16x16xf32>
    %128 = arith.addf %110, %127 : vector<16x16xf32>
    %c113 = arith.constant 113 : index
    %129 = memref.load %arg2[%c113] : memref<144xf32, #tpu.memory_space<smem>>
    %130 = vector.broadcast %129 : f32 to vector<16x16xf32>
    %131 = arith.mulf %130, %116 : vector<16x16xf32>
    %132 = arith.addf %114, %131 : vector<16x16xf32>
    %c0_45 = arith.constant 0 : index
    %c2_46 = arith.constant 2 : index
    %c0_47 = arith.constant 0 : index
    %133 = vector.load %arg7[%c0_45, %c2_46, %c0_47] : memref<4x18x18xf32, #tpu.memory_space<vmem>>, vector<1x16x16xf32>
    %134 = vector.shape_cast %133 : vector<1x16x16xf32> to vector<16x16xf32>
    %c6 = arith.constant 6 : index
    %135 = memref.load %arg2[%c6] : memref<144xf32, #tpu.memory_space<smem>>
    %136 = vector.broadcast %135 : f32 to vector<16x16xf32>
    %137 = arith.mulf %136, %134 : vector<16x16xf32>
    %138 = arith.addf %120, %137 : vector<16x16xf32>
    %c42 = arith.constant 42 : index
    %139 = memref.load %arg2[%c42] : memref<144xf32, #tpu.memory_space<smem>>
    %140 = vector.broadcast %139 : f32 to vector<16x16xf32>
    %141 = arith.mulf %140, %134 : vector<16x16xf32>
    %142 = arith.addf %124, %141 : vector<16x16xf32>
    %c78 = arith.constant 78 : index
    %143 = memref.load %arg2[%c78] : memref<144xf32, #tpu.memory_space<smem>>
    %144 = vector.broadcast %143 : f32 to vector<16x16xf32>
    %145 = arith.mulf %144, %134 : vector<16x16xf32>
    %146 = arith.addf %128, %145 : vector<16x16xf32>
    %c114 = arith.constant 114 : index
    %147 = memref.load %arg2[%c114] : memref<144xf32, #tpu.memory_space<smem>>
    %148 = vector.broadcast %147 : f32 to vector<16x16xf32>
    %149 = arith.mulf %148, %134 : vector<16x16xf32>
    %150 = arith.addf %132, %149 : vector<16x16xf32>
    %c0_48 = arith.constant 0 : index
    %c2_49 = arith.constant 2 : index
    %c1_50 = arith.constant 1 : index
    %151 = vector.load %arg7[%c0_48, %c2_49, %c1_50] : memref<4x18x18xf32, #tpu.memory_space<vmem>>, vector<1x16x16xf32>
    %152 = vector.shape_cast %151 : vector<1x16x16xf32> to vector<16x16xf32>
    %c7 = arith.constant 7 : index
    %153 = memref.load %arg2[%c7] : memref<144xf32, #tpu.memory_space<smem>>
    %154 = vector.broadcast %153 : f32 to vector<16x16xf32>
    %155 = arith.mulf %154, %152 : vector<16x16xf32>
    %156 = arith.addf %138, %155 : vector<16x16xf32>
    %c43 = arith.constant 43 : index
    %157 = memref.load %arg2[%c43] : memref<144xf32, #tpu.memory_space<smem>>
    %158 = vector.broadcast %157 : f32 to vector<16x16xf32>
    %159 = arith.mulf %158, %152 : vector<16x16xf32>
    %160 = arith.addf %142, %159 : vector<16x16xf32>
    %c79 = arith.constant 79 : index
    %161 = memref.load %arg2[%c79] : memref<144xf32, #tpu.memory_space<smem>>
    %162 = vector.broadcast %161 : f32 to vector<16x16xf32>
    %163 = arith.mulf %162, %152 : vector<16x16xf32>
    %164 = arith.addf %146, %163 : vector<16x16xf32>
    %c115 = arith.constant 115 : index
    %165 = memref.load %arg2[%c115] : memref<144xf32, #tpu.memory_space<smem>>
    %166 = vector.broadcast %165 : f32 to vector<16x16xf32>
    %167 = arith.mulf %166, %152 : vector<16x16xf32>
    %168 = arith.addf %150, %167 : vector<16x16xf32>
    %c0_51 = arith.constant 0 : index
    %c2_52 = arith.constant 2 : index
    %c2_53 = arith.constant 2 : index
    %169 = vector.load %arg7[%c0_51, %c2_52, %c2_53] : memref<4x18x18xf32, #tpu.memory_space<vmem>>, vector<1x16x16xf32>
    %170 = vector.shape_cast %169 : vector<1x16x16xf32> to vector<16x16xf32>
    %c8 = arith.constant 8 : index
    %171 = memref.load %arg2[%c8] : memref<144xf32, #tpu.memory_space<smem>>
    %172 = vector.broadcast %171 : f32 to vector<16x16xf32>
    %173 = arith.mulf %172, %170 : vector<16x16xf32>
    %174 = arith.addf %156, %173 : vector<16x16xf32>
    %c44 = arith.constant 44 : index
    %175 = memref.load %arg2[%c44] : memref<144xf32, #tpu.memory_space<smem>>
    %176 = vector.broadcast %175 : f32 to vector<16x16xf32>
    %177 = arith.mulf %176, %170 : vector<16x16xf32>
    %178 = arith.addf %160, %177 : vector<16x16xf32>
    %c80 = arith.constant 80 : index
    %179 = memref.load %arg2[%c80] : memref<144xf32, #tpu.memory_space<smem>>
    %180 = vector.broadcast %179 : f32 to vector<16x16xf32>
    %181 = arith.mulf %180, %170 : vector<16x16xf32>
    %182 = arith.addf %164, %181 : vector<16x16xf32>
    %c116 = arith.constant 116 : index
    %183 = memref.load %arg2[%c116] : memref<144xf32, #tpu.memory_space<smem>>
    %184 = vector.broadcast %183 : f32 to vector<16x16xf32>
    %185 = arith.mulf %184, %170 : vector<16x16xf32>
    %186 = arith.addf %168, %185 : vector<16x16xf32>
    %c1_54 = arith.constant 1 : index
    %c0_55 = arith.constant 0 : index
    %c0_56 = arith.constant 0 : index
    %187 = vector.load %arg7[%c1_54, %c0_55, %c0_56] : memref<4x18x18xf32, #tpu.memory_space<vmem>>, vector<1x16x16xf32>
    %188 = vector.shape_cast %187 : vector<1x16x16xf32> to vector<16x16xf32>
    %c9 = arith.constant 9 : index
    %189 = memref.load %arg2[%c9] : memref<144xf32, #tpu.memory_space<smem>>
    %190 = vector.broadcast %189 : f32 to vector<16x16xf32>
    %191 = arith.mulf %190, %188 : vector<16x16xf32>
    %192 = arith.addf %174, %191 : vector<16x16xf32>
    %c45 = arith.constant 45 : index
    %193 = memref.load %arg2[%c45] : memref<144xf32, #tpu.memory_space<smem>>
    %194 = vector.broadcast %193 : f32 to vector<16x16xf32>
    %195 = arith.mulf %194, %188 : vector<16x16xf32>
    %196 = arith.addf %178, %195 : vector<16x16xf32>
    %c81 = arith.constant 81 : index
    %197 = memref.load %arg2[%c81] : memref<144xf32, #tpu.memory_space<smem>>
    %198 = vector.broadcast %197 : f32 to vector<16x16xf32>
    %199 = arith.mulf %198, %188 : vector<16x16xf32>
    %200 = arith.addf %182, %199 : vector<16x16xf32>
    %c117 = arith.constant 117 : index
    %201 = memref.load %arg2[%c117] : memref<144xf32, #tpu.memory_space<smem>>
    %202 = vector.broadcast %201 : f32 to vector<16x16xf32>
    %203 = arith.mulf %202, %188 : vector<16x16xf32>
    %204 = arith.addf %186, %203 : vector<16x16xf32>
    %c1_57 = arith.constant 1 : index
    %c0_58 = arith.constant 0 : index
    %c1_59 = arith.constant 1 : index
    %205 = vector.load %arg7[%c1_57, %c0_58, %c1_59] : memref<4x18x18xf32, #tpu.memory_space<vmem>>, vector<1x16x16xf32>
    %206 = vector.shape_cast %205 : vector<1x16x16xf32> to vector<16x16xf32>
    %c10 = arith.constant 10 : index
    %207 = memref.load %arg2[%c10] : memref<144xf32, #tpu.memory_space<smem>>
    %208 = vector.broadcast %207 : f32 to vector<16x16xf32>
    %209 = arith.mulf %208, %206 : vector<16x16xf32>
    %210 = arith.addf %192, %209 : vector<16x16xf32>
    %c46 = arith.constant 46 : index
    %211 = memref.load %arg2[%c46] : memref<144xf32, #tpu.memory_space<smem>>
    %212 = vector.broadcast %211 : f32 to vector<16x16xf32>
    %213 = arith.mulf %212, %206 : vector<16x16xf32>
    %214 = arith.addf %196, %213 : vector<16x16xf32>
    %c82 = arith.constant 82 : index
    %215 = memref.load %arg2[%c82] : memref<144xf32, #tpu.memory_space<smem>>
    %216 = vector.broadcast %215 : f32 to vector<16x16xf32>
    %217 = arith.mulf %216, %206 : vector<16x16xf32>
    %218 = arith.addf %200, %217 : vector<16x16xf32>
    %c118 = arith.constant 118 : index
    %219 = memref.load %arg2[%c118] : memref<144xf32, #tpu.memory_space<smem>>
    %220 = vector.broadcast %219 : f32 to vector<16x16xf32>
    %221 = arith.mulf %220, %206 : vector<16x16xf32>
    %222 = arith.addf %204, %221 : vector<16x16xf32>
    %c1_60 = arith.constant 1 : index
    %c0_61 = arith.constant 0 : index
    %c2_62 = arith.constant 2 : index
    %223 = vector.load %arg7[%c1_60, %c0_61, %c2_62] : memref<4x18x18xf32, #tpu.memory_space<vmem>>, vector<1x16x16xf32>
    %224 = vector.shape_cast %223 : vector<1x16x16xf32> to vector<16x16xf32>
    %c11 = arith.constant 11 : index
    %225 = memref.load %arg2[%c11] : memref<144xf32, #tpu.memory_space<smem>>
    %226 = vector.broadcast %225 : f32 to vector<16x16xf32>
    %227 = arith.mulf %226, %224 : vector<16x16xf32>
    %228 = arith.addf %210, %227 : vector<16x16xf32>
    %c47 = arith.constant 47 : index
    %229 = memref.load %arg2[%c47] : memref<144xf32, #tpu.memory_space<smem>>
    %230 = vector.broadcast %229 : f32 to vector<16x16xf32>
    %231 = arith.mulf %230, %224 : vector<16x16xf32>
    %232 = arith.addf %214, %231 : vector<16x16xf32>
    %c83 = arith.constant 83 : index
    %233 = memref.load %arg2[%c83] : memref<144xf32, #tpu.memory_space<smem>>
    %234 = vector.broadcast %233 : f32 to vector<16x16xf32>
    %235 = arith.mulf %234, %224 : vector<16x16xf32>
    %236 = arith.addf %218, %235 : vector<16x16xf32>
    %c119 = arith.constant 119 : index
    %237 = memref.load %arg2[%c119] : memref<144xf32, #tpu.memory_space<smem>>
    %238 = vector.broadcast %237 : f32 to vector<16x16xf32>
    %239 = arith.mulf %238, %224 : vector<16x16xf32>
    %240 = arith.addf %222, %239 : vector<16x16xf32>
    %c1_63 = arith.constant 1 : index
    %c1_64 = arith.constant 1 : index
    %c0_65 = arith.constant 0 : index
    %241 = vector.load %arg7[%c1_63, %c1_64, %c0_65] : memref<4x18x18xf32, #tpu.memory_space<vmem>>, vector<1x16x16xf32>
    %242 = vector.shape_cast %241 : vector<1x16x16xf32> to vector<16x16xf32>
    %c12 = arith.constant 12 : index
    %243 = memref.load %arg2[%c12] : memref<144xf32, #tpu.memory_space<smem>>
    %244 = vector.broadcast %243 : f32 to vector<16x16xf32>
    %245 = arith.mulf %244, %242 : vector<16x16xf32>
    %246 = arith.addf %228, %245 : vector<16x16xf32>
    %c48 = arith.constant 48 : index
    %247 = memref.load %arg2[%c48] : memref<144xf32, #tpu.memory_space<smem>>
    %248 = vector.broadcast %247 : f32 to vector<16x16xf32>
    %249 = arith.mulf %248, %242 : vector<16x16xf32>
    %250 = arith.addf %232, %249 : vector<16x16xf32>
    %c84 = arith.constant 84 : index
    %251 = memref.load %arg2[%c84] : memref<144xf32, #tpu.memory_space<smem>>
    %252 = vector.broadcast %251 : f32 to vector<16x16xf32>
    %253 = arith.mulf %252, %242 : vector<16x16xf32>
    %254 = arith.addf %236, %253 : vector<16x16xf32>
    %c120 = arith.constant 120 : index
    %255 = memref.load %arg2[%c120] : memref<144xf32, #tpu.memory_space<smem>>
    %256 = vector.broadcast %255 : f32 to vector<16x16xf32>
    %257 = arith.mulf %256, %242 : vector<16x16xf32>
    %258 = arith.addf %240, %257 : vector<16x16xf32>
    %c1_66 = arith.constant 1 : index
    %c1_67 = arith.constant 1 : index
    %c1_68 = arith.constant 1 : index
    %259 = vector.load %arg7[%c1_66, %c1_67, %c1_68] : memref<4x18x18xf32, #tpu.memory_space<vmem>>, vector<1x16x16xf32>
    %260 = vector.shape_cast %259 : vector<1x16x16xf32> to vector<16x16xf32>
    %c13 = arith.constant 13 : index
    %261 = memref.load %arg2[%c13] : memref<144xf32, #tpu.memory_space<smem>>
    %262 = vector.broadcast %261 : f32 to vector<16x16xf32>
    %263 = arith.mulf %262, %260 : vector<16x16xf32>
    %264 = arith.addf %246, %263 : vector<16x16xf32>
    %c49 = arith.constant 49 : index
    %265 = memref.load %arg2[%c49] : memref<144xf32, #tpu.memory_space<smem>>
    %266 = vector.broadcast %265 : f32 to vector<16x16xf32>
    %267 = arith.mulf %266, %260 : vector<16x16xf32>
    %268 = arith.addf %250, %267 : vector<16x16xf32>
    %c85 = arith.constant 85 : index
    %269 = memref.load %arg2[%c85] : memref<144xf32, #tpu.memory_space<smem>>
    %270 = vector.broadcast %269 : f32 to vector<16x16xf32>
    %271 = arith.mulf %270, %260 : vector<16x16xf32>
    %272 = arith.addf %254, %271 : vector<16x16xf32>
    %c121 = arith.constant 121 : index
    %273 = memref.load %arg2[%c121] : memref<144xf32, #tpu.memory_space<smem>>
    %274 = vector.broadcast %273 : f32 to vector<16x16xf32>
    %275 = arith.mulf %274, %260 : vector<16x16xf32>
    %276 = arith.addf %258, %275 : vector<16x16xf32>
    %c1_69 = arith.constant 1 : index
    %c1_70 = arith.constant 1 : index
    %c2_71 = arith.constant 2 : index
    %277 = vector.load %arg7[%c1_69, %c1_70, %c2_71] : memref<4x18x18xf32, #tpu.memory_space<vmem>>, vector<1x16x16xf32>
    %278 = vector.shape_cast %277 : vector<1x16x16xf32> to vector<16x16xf32>
    %c14 = arith.constant 14 : index
    %279 = memref.load %arg2[%c14] : memref<144xf32, #tpu.memory_space<smem>>
    %280 = vector.broadcast %279 : f32 to vector<16x16xf32>
    %281 = arith.mulf %280, %278 : vector<16x16xf32>
    %282 = arith.addf %264, %281 : vector<16x16xf32>
    %c50 = arith.constant 50 : index
    %283 = memref.load %arg2[%c50] : memref<144xf32, #tpu.memory_space<smem>>
    %284 = vector.broadcast %283 : f32 to vector<16x16xf32>
    %285 = arith.mulf %284, %278 : vector<16x16xf32>
    %286 = arith.addf %268, %285 : vector<16x16xf32>
    %c86 = arith.constant 86 : index
    %287 = memref.load %arg2[%c86] : memref<144xf32, #tpu.memory_space<smem>>
    %288 = vector.broadcast %287 : f32 to vector<16x16xf32>
    %289 = arith.mulf %288, %278 : vector<16x16xf32>
    %290 = arith.addf %272, %289 : vector<16x16xf32>
    %c122 = arith.constant 122 : index
    %291 = memref.load %arg2[%c122] : memref<144xf32, #tpu.memory_space<smem>>
    %292 = vector.broadcast %291 : f32 to vector<16x16xf32>
    %293 = arith.mulf %292, %278 : vector<16x16xf32>
    %294 = arith.addf %276, %293 : vector<16x16xf32>
    %c1_72 = arith.constant 1 : index
    %c2_73 = arith.constant 2 : index
    %c0_74 = arith.constant 0 : index
    %295 = vector.load %arg7[%c1_72, %c2_73, %c0_74] : memref<4x18x18xf32, #tpu.memory_space<vmem>>, vector<1x16x16xf32>
    %296 = vector.shape_cast %295 : vector<1x16x16xf32> to vector<16x16xf32>
    %c15 = arith.constant 15 : index
    %297 = memref.load %arg2[%c15] : memref<144xf32, #tpu.memory_space<smem>>
    %298 = vector.broadcast %297 : f32 to vector<16x16xf32>
    %299 = arith.mulf %298, %296 : vector<16x16xf32>
    %300 = arith.addf %282, %299 : vector<16x16xf32>
    %c51 = arith.constant 51 : index
    %301 = memref.load %arg2[%c51] : memref<144xf32, #tpu.memory_space<smem>>
    %302 = vector.broadcast %301 : f32 to vector<16x16xf32>
    %303 = arith.mulf %302, %296 : vector<16x16xf32>
    %304 = arith.addf %286, %303 : vector<16x16xf32>
    %c87 = arith.constant 87 : index
    %305 = memref.load %arg2[%c87] : memref<144xf32, #tpu.memory_space<smem>>
    %306 = vector.broadcast %305 : f32 to vector<16x16xf32>
    %307 = arith.mulf %306, %296 : vector<16x16xf32>
    %308 = arith.addf %290, %307 : vector<16x16xf32>
    %c123 = arith.constant 123 : index
    %309 = memref.load %arg2[%c123] : memref<144xf32, #tpu.memory_space<smem>>
    %310 = vector.broadcast %309 : f32 to vector<16x16xf32>
    %311 = arith.mulf %310, %296 : vector<16x16xf32>
    %312 = arith.addf %294, %311 : vector<16x16xf32>
    %c1_75 = arith.constant 1 : index
    %c2_76 = arith.constant 2 : index
    %c1_77 = arith.constant 1 : index
    %313 = vector.load %arg7[%c1_75, %c2_76, %c1_77] : memref<4x18x18xf32, #tpu.memory_space<vmem>>, vector<1x16x16xf32>
    %314 = vector.shape_cast %313 : vector<1x16x16xf32> to vector<16x16xf32>
    %c16 = arith.constant 16 : index
    %315 = memref.load %arg2[%c16] : memref<144xf32, #tpu.memory_space<smem>>
    %316 = vector.broadcast %315 : f32 to vector<16x16xf32>
    %317 = arith.mulf %316, %314 : vector<16x16xf32>
    %318 = arith.addf %300, %317 : vector<16x16xf32>
    %c52 = arith.constant 52 : index
    %319 = memref.load %arg2[%c52] : memref<144xf32, #tpu.memory_space<smem>>
    %320 = vector.broadcast %319 : f32 to vector<16x16xf32>
    %321 = arith.mulf %320, %314 : vector<16x16xf32>
    %322 = arith.addf %304, %321 : vector<16x16xf32>
    %c88 = arith.constant 88 : index
    %323 = memref.load %arg2[%c88] : memref<144xf32, #tpu.memory_space<smem>>
    %324 = vector.broadcast %323 : f32 to vector<16x16xf32>
    %325 = arith.mulf %324, %314 : vector<16x16xf32>
    %326 = arith.addf %308, %325 : vector<16x16xf32>
    %c124 = arith.constant 124 : index
    %327 = memref.load %arg2[%c124] : memref<144xf32, #tpu.memory_space<smem>>
    %328 = vector.broadcast %327 : f32 to vector<16x16xf32>
    %329 = arith.mulf %328, %314 : vector<16x16xf32>
    %330 = arith.addf %312, %329 : vector<16x16xf32>
    %c1_78 = arith.constant 1 : index
    %c2_79 = arith.constant 2 : index
    %c2_80 = arith.constant 2 : index
    %331 = vector.load %arg7[%c1_78, %c2_79, %c2_80] : memref<4x18x18xf32, #tpu.memory_space<vmem>>, vector<1x16x16xf32>
    %332 = vector.shape_cast %331 : vector<1x16x16xf32> to vector<16x16xf32>
    %c17_81 = arith.constant 17 : index
    %333 = memref.load %arg2[%c17_81] : memref<144xf32, #tpu.memory_space<smem>>
    %334 = vector.broadcast %333 : f32 to vector<16x16xf32>
    %335 = arith.mulf %334, %332 : vector<16x16xf32>
    %336 = arith.addf %318, %335 : vector<16x16xf32>
    %c53 = arith.constant 53 : index
    %337 = memref.load %arg2[%c53] : memref<144xf32, #tpu.memory_space<smem>>
    %338 = vector.broadcast %337 : f32 to vector<16x16xf32>
    %339 = arith.mulf %338, %332 : vector<16x16xf32>
    %340 = arith.addf %322, %339 : vector<16x16xf32>
    %c89 = arith.constant 89 : index
    %341 = memref.load %arg2[%c89] : memref<144xf32, #tpu.memory_space<smem>>
    %342 = vector.broadcast %341 : f32 to vector<16x16xf32>
    %343 = arith.mulf %342, %332 : vector<16x16xf32>
    %344 = arith.addf %326, %343 : vector<16x16xf32>
    %c125 = arith.constant 125 : index
    %345 = memref.load %arg2[%c125] : memref<144xf32, #tpu.memory_space<smem>>
    %346 = vector.broadcast %345 : f32 to vector<16x16xf32>
    %347 = arith.mulf %346, %332 : vector<16x16xf32>
    %348 = arith.addf %330, %347 : vector<16x16xf32>
    %c2_82 = arith.constant 2 : index
    %c0_83 = arith.constant 0 : index
    %c0_84 = arith.constant 0 : index
    %349 = vector.load %arg7[%c2_82, %c0_83, %c0_84] : memref<4x18x18xf32, #tpu.memory_space<vmem>>, vector<1x16x16xf32>
    %350 = vector.shape_cast %349 : vector<1x16x16xf32> to vector<16x16xf32>
    %c18 = arith.constant 18 : index
    %351 = memref.load %arg2[%c18] : memref<144xf32, #tpu.memory_space<smem>>
    %352 = vector.broadcast %351 : f32 to vector<16x16xf32>
    %353 = arith.mulf %352, %350 : vector<16x16xf32>
    %354 = arith.addf %336, %353 : vector<16x16xf32>
    %c54 = arith.constant 54 : index
    %355 = memref.load %arg2[%c54] : memref<144xf32, #tpu.memory_space<smem>>
    %356 = vector.broadcast %355 : f32 to vector<16x16xf32>
    %357 = arith.mulf %356, %350 : vector<16x16xf32>
    %358 = arith.addf %340, %357 : vector<16x16xf32>
    %c90 = arith.constant 90 : index
    %359 = memref.load %arg2[%c90] : memref<144xf32, #tpu.memory_space<smem>>
    %360 = vector.broadcast %359 : f32 to vector<16x16xf32>
    %361 = arith.mulf %360, %350 : vector<16x16xf32>
    %362 = arith.addf %344, %361 : vector<16x16xf32>
    %c126 = arith.constant 126 : index
    %363 = memref.load %arg2[%c126] : memref<144xf32, #tpu.memory_space<smem>>
    %364 = vector.broadcast %363 : f32 to vector<16x16xf32>
    %365 = arith.mulf %364, %350 : vector<16x16xf32>
    %366 = arith.addf %348, %365 : vector<16x16xf32>
    %c2_85 = arith.constant 2 : index
    %c0_86 = arith.constant 0 : index
    %c1_87 = arith.constant 1 : index
    %367 = vector.load %arg7[%c2_85, %c0_86, %c1_87] : memref<4x18x18xf32, #tpu.memory_space<vmem>>, vector<1x16x16xf32>
    %368 = vector.shape_cast %367 : vector<1x16x16xf32> to vector<16x16xf32>
    %c19 = arith.constant 19 : index
    %369 = memref.load %arg2[%c19] : memref<144xf32, #tpu.memory_space<smem>>
    %370 = vector.broadcast %369 : f32 to vector<16x16xf32>
    %371 = arith.mulf %370, %368 : vector<16x16xf32>
    %372 = arith.addf %354, %371 : vector<16x16xf32>
    %c55 = arith.constant 55 : index
    %373 = memref.load %arg2[%c55] : memref<144xf32, #tpu.memory_space<smem>>
    %374 = vector.broadcast %373 : f32 to vector<16x16xf32>
    %375 = arith.mulf %374, %368 : vector<16x16xf32>
    %376 = arith.addf %358, %375 : vector<16x16xf32>
    %c91 = arith.constant 91 : index
    %377 = memref.load %arg2[%c91] : memref<144xf32, #tpu.memory_space<smem>>
    %378 = vector.broadcast %377 : f32 to vector<16x16xf32>
    %379 = arith.mulf %378, %368 : vector<16x16xf32>
    %380 = arith.addf %362, %379 : vector<16x16xf32>
    %c127 = arith.constant 127 : index
    %381 = memref.load %arg2[%c127] : memref<144xf32, #tpu.memory_space<smem>>
    %382 = vector.broadcast %381 : f32 to vector<16x16xf32>
    %383 = arith.mulf %382, %368 : vector<16x16xf32>
    %384 = arith.addf %366, %383 : vector<16x16xf32>
    %c2_88 = arith.constant 2 : index
    %c0_89 = arith.constant 0 : index
    %c2_90 = arith.constant 2 : index
    %385 = vector.load %arg7[%c2_88, %c0_89, %c2_90] : memref<4x18x18xf32, #tpu.memory_space<vmem>>, vector<1x16x16xf32>
    %386 = vector.shape_cast %385 : vector<1x16x16xf32> to vector<16x16xf32>
    %c20 = arith.constant 20 : index
    %387 = memref.load %arg2[%c20] : memref<144xf32, #tpu.memory_space<smem>>
    %388 = vector.broadcast %387 : f32 to vector<16x16xf32>
    %389 = arith.mulf %388, %386 : vector<16x16xf32>
    %390 = arith.addf %372, %389 : vector<16x16xf32>
    %c56 = arith.constant 56 : index
    %391 = memref.load %arg2[%c56] : memref<144xf32, #tpu.memory_space<smem>>
    %392 = vector.broadcast %391 : f32 to vector<16x16xf32>
    %393 = arith.mulf %392, %386 : vector<16x16xf32>
    %394 = arith.addf %376, %393 : vector<16x16xf32>
    %c92 = arith.constant 92 : index
    %395 = memref.load %arg2[%c92] : memref<144xf32, #tpu.memory_space<smem>>
    %396 = vector.broadcast %395 : f32 to vector<16x16xf32>
    %397 = arith.mulf %396, %386 : vector<16x16xf32>
    %398 = arith.addf %380, %397 : vector<16x16xf32>
    %c128 = arith.constant 128 : index
    %399 = memref.load %arg2[%c128] : memref<144xf32, #tpu.memory_space<smem>>
    %400 = vector.broadcast %399 : f32 to vector<16x16xf32>
    %401 = arith.mulf %400, %386 : vector<16x16xf32>
    %402 = arith.addf %384, %401 : vector<16x16xf32>
    %c2_91 = arith.constant 2 : index
    %c1_92 = arith.constant 1 : index
    %c0_93 = arith.constant 0 : index
    %403 = vector.load %arg7[%c2_91, %c1_92, %c0_93] : memref<4x18x18xf32, #tpu.memory_space<vmem>>, vector<1x16x16xf32>
    %404 = vector.shape_cast %403 : vector<1x16x16xf32> to vector<16x16xf32>
    %c21 = arith.constant 21 : index
    %405 = memref.load %arg2[%c21] : memref<144xf32, #tpu.memory_space<smem>>
    %406 = vector.broadcast %405 : f32 to vector<16x16xf32>
    %407 = arith.mulf %406, %404 : vector<16x16xf32>
    %408 = arith.addf %390, %407 : vector<16x16xf32>
    %c57 = arith.constant 57 : index
    %409 = memref.load %arg2[%c57] : memref<144xf32, #tpu.memory_space<smem>>
    %410 = vector.broadcast %409 : f32 to vector<16x16xf32>
    %411 = arith.mulf %410, %404 : vector<16x16xf32>
    %412 = arith.addf %394, %411 : vector<16x16xf32>
    %c93 = arith.constant 93 : index
    %413 = memref.load %arg2[%c93] : memref<144xf32, #tpu.memory_space<smem>>
    %414 = vector.broadcast %413 : f32 to vector<16x16xf32>
    %415 = arith.mulf %414, %404 : vector<16x16xf32>
    %416 = arith.addf %398, %415 : vector<16x16xf32>
    %c129 = arith.constant 129 : index
    %417 = memref.load %arg2[%c129] : memref<144xf32, #tpu.memory_space<smem>>
    %418 = vector.broadcast %417 : f32 to vector<16x16xf32>
    %419 = arith.mulf %418, %404 : vector<16x16xf32>
    %420 = arith.addf %402, %419 : vector<16x16xf32>
    %c2_94 = arith.constant 2 : index
    %c1_95 = arith.constant 1 : index
    %c1_96 = arith.constant 1 : index
    %421 = vector.load %arg7[%c2_94, %c1_95, %c1_96] : memref<4x18x18xf32, #tpu.memory_space<vmem>>, vector<1x16x16xf32>
    %422 = vector.shape_cast %421 : vector<1x16x16xf32> to vector<16x16xf32>
    %c22 = arith.constant 22 : index
    %423 = memref.load %arg2[%c22] : memref<144xf32, #tpu.memory_space<smem>>
    %424 = vector.broadcast %423 : f32 to vector<16x16xf32>
    %425 = arith.mulf %424, %422 : vector<16x16xf32>
    %426 = arith.addf %408, %425 : vector<16x16xf32>
    %c58 = arith.constant 58 : index
    %427 = memref.load %arg2[%c58] : memref<144xf32, #tpu.memory_space<smem>>
    %428 = vector.broadcast %427 : f32 to vector<16x16xf32>
    %429 = arith.mulf %428, %422 : vector<16x16xf32>
    %430 = arith.addf %412, %429 : vector<16x16xf32>
    %c94 = arith.constant 94 : index
    %431 = memref.load %arg2[%c94] : memref<144xf32, #tpu.memory_space<smem>>
    %432 = vector.broadcast %431 : f32 to vector<16x16xf32>
    %433 = arith.mulf %432, %422 : vector<16x16xf32>
    %434 = arith.addf %416, %433 : vector<16x16xf32>
    %c130 = arith.constant 130 : index
    %435 = memref.load %arg2[%c130] : memref<144xf32, #tpu.memory_space<smem>>
    %436 = vector.broadcast %435 : f32 to vector<16x16xf32>
    %437 = arith.mulf %436, %422 : vector<16x16xf32>
    %438 = arith.addf %420, %437 : vector<16x16xf32>
    %c2_97 = arith.constant 2 : index
    %c1_98 = arith.constant 1 : index
    %c2_99 = arith.constant 2 : index
    %439 = vector.load %arg7[%c2_97, %c1_98, %c2_99] : memref<4x18x18xf32, #tpu.memory_space<vmem>>, vector<1x16x16xf32>
    %440 = vector.shape_cast %439 : vector<1x16x16xf32> to vector<16x16xf32>
    %c23 = arith.constant 23 : index
    %441 = memref.load %arg2[%c23] : memref<144xf32, #tpu.memory_space<smem>>
    %442 = vector.broadcast %441 : f32 to vector<16x16xf32>
    %443 = arith.mulf %442, %440 : vector<16x16xf32>
    %444 = arith.addf %426, %443 : vector<16x16xf32>
    %c59 = arith.constant 59 : index
    %445 = memref.load %arg2[%c59] : memref<144xf32, #tpu.memory_space<smem>>
    %446 = vector.broadcast %445 : f32 to vector<16x16xf32>
    %447 = arith.mulf %446, %440 : vector<16x16xf32>
    %448 = arith.addf %430, %447 : vector<16x16xf32>
    %c95 = arith.constant 95 : index
    %449 = memref.load %arg2[%c95] : memref<144xf32, #tpu.memory_space<smem>>
    %450 = vector.broadcast %449 : f32 to vector<16x16xf32>
    %451 = arith.mulf %450, %440 : vector<16x16xf32>
    %452 = arith.addf %434, %451 : vector<16x16xf32>
    %c131 = arith.constant 131 : index
    %453 = memref.load %arg2[%c131] : memref<144xf32, #tpu.memory_space<smem>>
    %454 = vector.broadcast %453 : f32 to vector<16x16xf32>
    %455 = arith.mulf %454, %440 : vector<16x16xf32>
    %456 = arith.addf %438, %455 : vector<16x16xf32>
    %c2_100 = arith.constant 2 : index
    %c2_101 = arith.constant 2 : index
    %c0_102 = arith.constant 0 : index
    %457 = vector.load %arg7[%c2_100, %c2_101, %c0_102] : memref<4x18x18xf32, #tpu.memory_space<vmem>>, vector<1x16x16xf32>
    %458 = vector.shape_cast %457 : vector<1x16x16xf32> to vector<16x16xf32>
    %c24 = arith.constant 24 : index
    %459 = memref.load %arg2[%c24] : memref<144xf32, #tpu.memory_space<smem>>
    %460 = vector.broadcast %459 : f32 to vector<16x16xf32>
    %461 = arith.mulf %460, %458 : vector<16x16xf32>
    %462 = arith.addf %444, %461 : vector<16x16xf32>
    %c60 = arith.constant 60 : index
    %463 = memref.load %arg2[%c60] : memref<144xf32, #tpu.memory_space<smem>>
    %464 = vector.broadcast %463 : f32 to vector<16x16xf32>
    %465 = arith.mulf %464, %458 : vector<16x16xf32>
    %466 = arith.addf %448, %465 : vector<16x16xf32>
    %c96 = arith.constant 96 : index
    %467 = memref.load %arg2[%c96] : memref<144xf32, #tpu.memory_space<smem>>
    %468 = vector.broadcast %467 : f32 to vector<16x16xf32>
    %469 = arith.mulf %468, %458 : vector<16x16xf32>
    %470 = arith.addf %452, %469 : vector<16x16xf32>
    %c132 = arith.constant 132 : index
    %471 = memref.load %arg2[%c132] : memref<144xf32, #tpu.memory_space<smem>>
    %472 = vector.broadcast %471 : f32 to vector<16x16xf32>
    %473 = arith.mulf %472, %458 : vector<16x16xf32>
    %474 = arith.addf %456, %473 : vector<16x16xf32>
    %c2_103 = arith.constant 2 : index
    %c2_104 = arith.constant 2 : index
    %c1_105 = arith.constant 1 : index
    %475 = vector.load %arg7[%c2_103, %c2_104, %c1_105] : memref<4x18x18xf32, #tpu.memory_space<vmem>>, vector<1x16x16xf32>
    %476 = vector.shape_cast %475 : vector<1x16x16xf32> to vector<16x16xf32>
    %c25 = arith.constant 25 : index
    %477 = memref.load %arg2[%c25] : memref<144xf32, #tpu.memory_space<smem>>
    %478 = vector.broadcast %477 : f32 to vector<16x16xf32>
    %479 = arith.mulf %478, %476 : vector<16x16xf32>
    %480 = arith.addf %462, %479 : vector<16x16xf32>
    %c61 = arith.constant 61 : index
    %481 = memref.load %arg2[%c61] : memref<144xf32, #tpu.memory_space<smem>>
    %482 = vector.broadcast %481 : f32 to vector<16x16xf32>
    %483 = arith.mulf %482, %476 : vector<16x16xf32>
    %484 = arith.addf %466, %483 : vector<16x16xf32>
    %c97 = arith.constant 97 : index
    %485 = memref.load %arg2[%c97] : memref<144xf32, #tpu.memory_space<smem>>
    %486 = vector.broadcast %485 : f32 to vector<16x16xf32>
    %487 = arith.mulf %486, %476 : vector<16x16xf32>
    %488 = arith.addf %470, %487 : vector<16x16xf32>
    %c133 = arith.constant 133 : index
    %489 = memref.load %arg2[%c133] : memref<144xf32, #tpu.memory_space<smem>>
    %490 = vector.broadcast %489 : f32 to vector<16x16xf32>
    %491 = arith.mulf %490, %476 : vector<16x16xf32>
    %492 = arith.addf %474, %491 : vector<16x16xf32>
    %c2_106 = arith.constant 2 : index
    %c2_107 = arith.constant 2 : index
    %c2_108 = arith.constant 2 : index
    %493 = vector.load %arg7[%c2_106, %c2_107, %c2_108] : memref<4x18x18xf32, #tpu.memory_space<vmem>>, vector<1x16x16xf32>
    %494 = vector.shape_cast %493 : vector<1x16x16xf32> to vector<16x16xf32>
    %c26 = arith.constant 26 : index
    %495 = memref.load %arg2[%c26] : memref<144xf32, #tpu.memory_space<smem>>
    %496 = vector.broadcast %495 : f32 to vector<16x16xf32>
    %497 = arith.mulf %496, %494 : vector<16x16xf32>
    %498 = arith.addf %480, %497 : vector<16x16xf32>
    %c62 = arith.constant 62 : index
    %499 = memref.load %arg2[%c62] : memref<144xf32, #tpu.memory_space<smem>>
    %500 = vector.broadcast %499 : f32 to vector<16x16xf32>
    %501 = arith.mulf %500, %494 : vector<16x16xf32>
    %502 = arith.addf %484, %501 : vector<16x16xf32>
    %c98 = arith.constant 98 : index
    %503 = memref.load %arg2[%c98] : memref<144xf32, #tpu.memory_space<smem>>
    %504 = vector.broadcast %503 : f32 to vector<16x16xf32>
    %505 = arith.mulf %504, %494 : vector<16x16xf32>
    %506 = arith.addf %488, %505 : vector<16x16xf32>
    %c134 = arith.constant 134 : index
    %507 = memref.load %arg2[%c134] : memref<144xf32, #tpu.memory_space<smem>>
    %508 = vector.broadcast %507 : f32 to vector<16x16xf32>
    %509 = arith.mulf %508, %494 : vector<16x16xf32>
    %510 = arith.addf %492, %509 : vector<16x16xf32>
    %c3_109 = arith.constant 3 : index
    %c0_110 = arith.constant 0 : index
    %c0_111 = arith.constant 0 : index
    %511 = vector.load %arg7[%c3_109, %c0_110, %c0_111] : memref<4x18x18xf32, #tpu.memory_space<vmem>>, vector<1x16x16xf32>
    %512 = vector.shape_cast %511 : vector<1x16x16xf32> to vector<16x16xf32>
    %c27 = arith.constant 27 : index
    %513 = memref.load %arg2[%c27] : memref<144xf32, #tpu.memory_space<smem>>
    %514 = vector.broadcast %513 : f32 to vector<16x16xf32>
    %515 = arith.mulf %514, %512 : vector<16x16xf32>
    %516 = arith.addf %498, %515 : vector<16x16xf32>
    %c63 = arith.constant 63 : index
    %517 = memref.load %arg2[%c63] : memref<144xf32, #tpu.memory_space<smem>>
    %518 = vector.broadcast %517 : f32 to vector<16x16xf32>
    %519 = arith.mulf %518, %512 : vector<16x16xf32>
    %520 = arith.addf %502, %519 : vector<16x16xf32>
    %c99 = arith.constant 99 : index
    %521 = memref.load %arg2[%c99] : memref<144xf32, #tpu.memory_space<smem>>
    %522 = vector.broadcast %521 : f32 to vector<16x16xf32>
    %523 = arith.mulf %522, %512 : vector<16x16xf32>
    %524 = arith.addf %506, %523 : vector<16x16xf32>
    %c135 = arith.constant 135 : index
    %525 = memref.load %arg2[%c135] : memref<144xf32, #tpu.memory_space<smem>>
    %526 = vector.broadcast %525 : f32 to vector<16x16xf32>
    %527 = arith.mulf %526, %512 : vector<16x16xf32>
    %528 = arith.addf %510, %527 : vector<16x16xf32>
    %c3_112 = arith.constant 3 : index
    %c0_113 = arith.constant 0 : index
    %c1_114 = arith.constant 1 : index
    %529 = vector.load %arg7[%c3_112, %c0_113, %c1_114] : memref<4x18x18xf32, #tpu.memory_space<vmem>>, vector<1x16x16xf32>
    %530 = vector.shape_cast %529 : vector<1x16x16xf32> to vector<16x16xf32>
    %c28 = arith.constant 28 : index
    %531 = memref.load %arg2[%c28] : memref<144xf32, #tpu.memory_space<smem>>
    %532 = vector.broadcast %531 : f32 to vector<16x16xf32>
    %533 = arith.mulf %532, %530 : vector<16x16xf32>
    %534 = arith.addf %516, %533 : vector<16x16xf32>
    %c64 = arith.constant 64 : index
    %535 = memref.load %arg2[%c64] : memref<144xf32, #tpu.memory_space<smem>>
    %536 = vector.broadcast %535 : f32 to vector<16x16xf32>
    %537 = arith.mulf %536, %530 : vector<16x16xf32>
    %538 = arith.addf %520, %537 : vector<16x16xf32>
    %c100 = arith.constant 100 : index
    %539 = memref.load %arg2[%c100] : memref<144xf32, #tpu.memory_space<smem>>
    %540 = vector.broadcast %539 : f32 to vector<16x16xf32>
    %541 = arith.mulf %540, %530 : vector<16x16xf32>
    %542 = arith.addf %524, %541 : vector<16x16xf32>
    %c136 = arith.constant 136 : index
    %543 = memref.load %arg2[%c136] : memref<144xf32, #tpu.memory_space<smem>>
    %544 = vector.broadcast %543 : f32 to vector<16x16xf32>
    %545 = arith.mulf %544, %530 : vector<16x16xf32>
    %546 = arith.addf %528, %545 : vector<16x16xf32>
    %c3_115 = arith.constant 3 : index
    %c0_116 = arith.constant 0 : index
    %c2_117 = arith.constant 2 : index
    %547 = vector.load %arg7[%c3_115, %c0_116, %c2_117] : memref<4x18x18xf32, #tpu.memory_space<vmem>>, vector<1x16x16xf32>
    %548 = vector.shape_cast %547 : vector<1x16x16xf32> to vector<16x16xf32>
    %c29 = arith.constant 29 : index
    %549 = memref.load %arg2[%c29] : memref<144xf32, #tpu.memory_space<smem>>
    %550 = vector.broadcast %549 : f32 to vector<16x16xf32>
    %551 = arith.mulf %550, %548 : vector<16x16xf32>
    %552 = arith.addf %534, %551 : vector<16x16xf32>
    %c65 = arith.constant 65 : index
    %553 = memref.load %arg2[%c65] : memref<144xf32, #tpu.memory_space<smem>>
    %554 = vector.broadcast %553 : f32 to vector<16x16xf32>
    %555 = arith.mulf %554, %548 : vector<16x16xf32>
    %556 = arith.addf %538, %555 : vector<16x16xf32>
    %c101 = arith.constant 101 : index
    %557 = memref.load %arg2[%c101] : memref<144xf32, #tpu.memory_space<smem>>
    %558 = vector.broadcast %557 : f32 to vector<16x16xf32>
    %559 = arith.mulf %558, %548 : vector<16x16xf32>
    %560 = arith.addf %542, %559 : vector<16x16xf32>
    %c137 = arith.constant 137 : index
    %561 = memref.load %arg2[%c137] : memref<144xf32, #tpu.memory_space<smem>>
    %562 = vector.broadcast %561 : f32 to vector<16x16xf32>
    %563 = arith.mulf %562, %548 : vector<16x16xf32>
    %564 = arith.addf %546, %563 : vector<16x16xf32>
    %c3_118 = arith.constant 3 : index
    %c1_119 = arith.constant 1 : index
    %c0_120 = arith.constant 0 : index
    %565 = vector.load %arg7[%c3_118, %c1_119, %c0_120] : memref<4x18x18xf32, #tpu.memory_space<vmem>>, vector<1x16x16xf32>
    %566 = vector.shape_cast %565 : vector<1x16x16xf32> to vector<16x16xf32>
    %c30 = arith.constant 30 : index
    %567 = memref.load %arg2[%c30] : memref<144xf32, #tpu.memory_space<smem>>
    %568 = vector.broadcast %567 : f32 to vector<16x16xf32>
    %569 = arith.mulf %568, %566 : vector<16x16xf32>
    %570 = arith.addf %552, %569 : vector<16x16xf32>
    %c66 = arith.constant 66 : index
    %571 = memref.load %arg2[%c66] : memref<144xf32, #tpu.memory_space<smem>>
    %572 = vector.broadcast %571 : f32 to vector<16x16xf32>
    %573 = arith.mulf %572, %566 : vector<16x16xf32>
    %574 = arith.addf %556, %573 : vector<16x16xf32>
    %c102 = arith.constant 102 : index
    %575 = memref.load %arg2[%c102] : memref<144xf32, #tpu.memory_space<smem>>
    %576 = vector.broadcast %575 : f32 to vector<16x16xf32>
    %577 = arith.mulf %576, %566 : vector<16x16xf32>
    %578 = arith.addf %560, %577 : vector<16x16xf32>
    %c138 = arith.constant 138 : index
    %579 = memref.load %arg2[%c138] : memref<144xf32, #tpu.memory_space<smem>>
    %580 = vector.broadcast %579 : f32 to vector<16x16xf32>
    %581 = arith.mulf %580, %566 : vector<16x16xf32>
    %582 = arith.addf %564, %581 : vector<16x16xf32>
    %c3_121 = arith.constant 3 : index
    %c1_122 = arith.constant 1 : index
    %c1_123 = arith.constant 1 : index
    %583 = vector.load %arg7[%c3_121, %c1_122, %c1_123] : memref<4x18x18xf32, #tpu.memory_space<vmem>>, vector<1x16x16xf32>
    %584 = vector.shape_cast %583 : vector<1x16x16xf32> to vector<16x16xf32>
    %c31 = arith.constant 31 : index
    %585 = memref.load %arg2[%c31] : memref<144xf32, #tpu.memory_space<smem>>
    %586 = vector.broadcast %585 : f32 to vector<16x16xf32>
    %587 = arith.mulf %586, %584 : vector<16x16xf32>
    %588 = arith.addf %570, %587 : vector<16x16xf32>
    %c67 = arith.constant 67 : index
    %589 = memref.load %arg2[%c67] : memref<144xf32, #tpu.memory_space<smem>>
    %590 = vector.broadcast %589 : f32 to vector<16x16xf32>
    %591 = arith.mulf %590, %584 : vector<16x16xf32>
    %592 = arith.addf %574, %591 : vector<16x16xf32>
    %c103 = arith.constant 103 : index
    %593 = memref.load %arg2[%c103] : memref<144xf32, #tpu.memory_space<smem>>
    %594 = vector.broadcast %593 : f32 to vector<16x16xf32>
    %595 = arith.mulf %594, %584 : vector<16x16xf32>
    %596 = arith.addf %578, %595 : vector<16x16xf32>
    %c139 = arith.constant 139 : index
    %597 = memref.load %arg2[%c139] : memref<144xf32, #tpu.memory_space<smem>>
    %598 = vector.broadcast %597 : f32 to vector<16x16xf32>
    %599 = arith.mulf %598, %584 : vector<16x16xf32>
    %600 = arith.addf %582, %599 : vector<16x16xf32>
    %c3_124 = arith.constant 3 : index
    %c1_125 = arith.constant 1 : index
    %c2_126 = arith.constant 2 : index
    %601 = vector.load %arg7[%c3_124, %c1_125, %c2_126] : memref<4x18x18xf32, #tpu.memory_space<vmem>>, vector<1x16x16xf32>
    %602 = vector.shape_cast %601 : vector<1x16x16xf32> to vector<16x16xf32>
    %c32 = arith.constant 32 : index
    %603 = memref.load %arg2[%c32] : memref<144xf32, #tpu.memory_space<smem>>
    %604 = vector.broadcast %603 : f32 to vector<16x16xf32>
    %605 = arith.mulf %604, %602 : vector<16x16xf32>
    %606 = arith.addf %588, %605 : vector<16x16xf32>
    %c68 = arith.constant 68 : index
    %607 = memref.load %arg2[%c68] : memref<144xf32, #tpu.memory_space<smem>>
    %608 = vector.broadcast %607 : f32 to vector<16x16xf32>
    %609 = arith.mulf %608, %602 : vector<16x16xf32>
    %610 = arith.addf %592, %609 : vector<16x16xf32>
    %c104 = arith.constant 104 : index
    %611 = memref.load %arg2[%c104] : memref<144xf32, #tpu.memory_space<smem>>
    %612 = vector.broadcast %611 : f32 to vector<16x16xf32>
    %613 = arith.mulf %612, %602 : vector<16x16xf32>
    %614 = arith.addf %596, %613 : vector<16x16xf32>
    %c140 = arith.constant 140 : index
    %615 = memref.load %arg2[%c140] : memref<144xf32, #tpu.memory_space<smem>>
    %616 = vector.broadcast %615 : f32 to vector<16x16xf32>
    %617 = arith.mulf %616, %602 : vector<16x16xf32>
    %618 = arith.addf %600, %617 : vector<16x16xf32>
    %c3_127 = arith.constant 3 : index
    %c2_128 = arith.constant 2 : index
    %c0_129 = arith.constant 0 : index
    %619 = vector.load %arg7[%c3_127, %c2_128, %c0_129] : memref<4x18x18xf32, #tpu.memory_space<vmem>>, vector<1x16x16xf32>
    %620 = vector.shape_cast %619 : vector<1x16x16xf32> to vector<16x16xf32>
    %c33 = arith.constant 33 : index
    %621 = memref.load %arg2[%c33] : memref<144xf32, #tpu.memory_space<smem>>
    %622 = vector.broadcast %621 : f32 to vector<16x16xf32>
    %623 = arith.mulf %622, %620 : vector<16x16xf32>
    %624 = arith.addf %606, %623 : vector<16x16xf32>
    %c69 = arith.constant 69 : index
    %625 = memref.load %arg2[%c69] : memref<144xf32, #tpu.memory_space<smem>>
    %626 = vector.broadcast %625 : f32 to vector<16x16xf32>
    %627 = arith.mulf %626, %620 : vector<16x16xf32>
    %628 = arith.addf %610, %627 : vector<16x16xf32>
    %c105 = arith.constant 105 : index
    %629 = memref.load %arg2[%c105] : memref<144xf32, #tpu.memory_space<smem>>
    %630 = vector.broadcast %629 : f32 to vector<16x16xf32>
    %631 = arith.mulf %630, %620 : vector<16x16xf32>
    %632 = arith.addf %614, %631 : vector<16x16xf32>
    %c141 = arith.constant 141 : index
    %633 = memref.load %arg2[%c141] : memref<144xf32, #tpu.memory_space<smem>>
    %634 = vector.broadcast %633 : f32 to vector<16x16xf32>
    %635 = arith.mulf %634, %620 : vector<16x16xf32>
    %636 = arith.addf %618, %635 : vector<16x16xf32>
    %c3_130 = arith.constant 3 : index
    %c2_131 = arith.constant 2 : index
    %c1_132 = arith.constant 1 : index
    %637 = vector.load %arg7[%c3_130, %c2_131, %c1_132] : memref<4x18x18xf32, #tpu.memory_space<vmem>>, vector<1x16x16xf32>
    %638 = vector.shape_cast %637 : vector<1x16x16xf32> to vector<16x16xf32>
    %c34 = arith.constant 34 : index
    %639 = memref.load %arg2[%c34] : memref<144xf32, #tpu.memory_space<smem>>
    %640 = vector.broadcast %639 : f32 to vector<16x16xf32>
    %641 = arith.mulf %640, %638 : vector<16x16xf32>
    %642 = arith.addf %624, %641 : vector<16x16xf32>
    %c70 = arith.constant 70 : index
    %643 = memref.load %arg2[%c70] : memref<144xf32, #tpu.memory_space<smem>>
    %644 = vector.broadcast %643 : f32 to vector<16x16xf32>
    %645 = arith.mulf %644, %638 : vector<16x16xf32>
    %646 = arith.addf %628, %645 : vector<16x16xf32>
    %c106 = arith.constant 106 : index
    %647 = memref.load %arg2[%c106] : memref<144xf32, #tpu.memory_space<smem>>
    %648 = vector.broadcast %647 : f32 to vector<16x16xf32>
    %649 = arith.mulf %648, %638 : vector<16x16xf32>
    %650 = arith.addf %632, %649 : vector<16x16xf32>
    %c142 = arith.constant 142 : index
    %651 = memref.load %arg2[%c142] : memref<144xf32, #tpu.memory_space<smem>>
    %652 = vector.broadcast %651 : f32 to vector<16x16xf32>
    %653 = arith.mulf %652, %638 : vector<16x16xf32>
    %654 = arith.addf %636, %653 : vector<16x16xf32>
    %c3_133 = arith.constant 3 : index
    %c2_134 = arith.constant 2 : index
    %c2_135 = arith.constant 2 : index
    %655 = vector.load %arg7[%c3_133, %c2_134, %c2_135] : memref<4x18x18xf32, #tpu.memory_space<vmem>>, vector<1x16x16xf32>
    %656 = vector.shape_cast %655 : vector<1x16x16xf32> to vector<16x16xf32>
    %c35 = arith.constant 35 : index
    %657 = memref.load %arg2[%c35] : memref<144xf32, #tpu.memory_space<smem>>
    %658 = vector.broadcast %657 : f32 to vector<16x16xf32>
    %659 = arith.mulf %658, %656 : vector<16x16xf32>
    %660 = arith.addf %642, %659 : vector<16x16xf32>
    %c71 = arith.constant 71 : index
    %661 = memref.load %arg2[%c71] : memref<144xf32, #tpu.memory_space<smem>>
    %662 = vector.broadcast %661 : f32 to vector<16x16xf32>
    %663 = arith.mulf %662, %656 : vector<16x16xf32>
    %664 = arith.addf %646, %663 : vector<16x16xf32>
    %c107 = arith.constant 107 : index
    %665 = memref.load %arg2[%c107] : memref<144xf32, #tpu.memory_space<smem>>
    %666 = vector.broadcast %665 : f32 to vector<16x16xf32>
    %667 = arith.mulf %666, %656 : vector<16x16xf32>
    %668 = arith.addf %650, %667 : vector<16x16xf32>
    %c143 = arith.constant 143 : index
    %669 = memref.load %arg2[%c143] : memref<144xf32, #tpu.memory_space<smem>>
    %670 = vector.broadcast %669 : f32 to vector<16x16xf32>
    %671 = arith.mulf %670, %656 : vector<16x16xf32>
    %672 = arith.addf %654, %671 : vector<16x16xf32>
    %cst_136 = arith.constant 0.707106769 : f32
    %673 = vector.broadcast %cst_136 : f32 to vector<16x16xf32>
    %674 = arith.mulf %660, %673 : vector<16x16xf32>
    %675 = math.absf %674 : vector<16x16xf32>
    %cst_137 = arith.constant 0.327591091 : f32
    %676 = vector.broadcast %cst_137 : f32 to vector<16x16xf32>
    %677 = arith.mulf %676, %675 : vector<16x16xf32>
    %cst_138 = arith.constant 1.000000e+00 : f32
    %678 = vector.broadcast %cst_138 : f32 to vector<16x16xf32>
    %679 = arith.addf %678, %677 : vector<16x16xf32>
    %cst_139 = arith.constant 1.000000e+00 : f32
    %680 = vector.broadcast %cst_139 : f32 to vector<16x16xf32>
    %681 = arith.divf %680, %679 : vector<16x16xf32>
    %cst_140 = arith.constant 1.06140542 : f32
    %682 = vector.broadcast %cst_140 : f32 to vector<16x16xf32>
    %683 = arith.mulf %681, %682 : vector<16x16xf32>
    %cst_141 = arith.constant -1.45315206 : f32
    %684 = vector.broadcast %cst_141 : f32 to vector<16x16xf32>
    %685 = arith.addf %684, %683 : vector<16x16xf32>
    %686 = arith.mulf %681, %685 : vector<16x16xf32>
    %cst_142 = arith.constant 1.42141378 : f32
    %687 = vector.broadcast %cst_142 : f32 to vector<16x16xf32>
    %688 = arith.addf %687, %686 : vector<16x16xf32>
    %689 = arith.mulf %681, %688 : vector<16x16xf32>
    %cst_143 = arith.constant -0.284496725 : f32
    %690 = vector.broadcast %cst_143 : f32 to vector<16x16xf32>
    %691 = arith.addf %690, %689 : vector<16x16xf32>
    %692 = arith.mulf %681, %691 : vector<16x16xf32>
    %cst_144 = arith.constant 0.254829586 : f32
    %693 = vector.broadcast %cst_144 : f32 to vector<16x16xf32>
    %694 = arith.addf %693, %692 : vector<16x16xf32>
    %695 = arith.mulf %681, %694 : vector<16x16xf32>
    %cst_145 = arith.constant 0.000000e+00 : f32
    %696 = vector.broadcast %cst_145 : f32 to vector<16x16xf32>
    %697 = arith.subf %696, %675 : vector<16x16xf32>
    %698 = arith.mulf %697, %675 : vector<16x16xf32>
    %699 = math.exp %698 : vector<16x16xf32>
    %700 = arith.mulf %695, %699 : vector<16x16xf32>
    %cst_146 = arith.constant 1.000000e+00 : f32
    %701 = vector.broadcast %cst_146 : f32 to vector<16x16xf32>
    %702 = arith.subf %701, %700 : vector<16x16xf32>
    %cst_147 = arith.constant 0.000000e+00 : f32
    %703 = vector.broadcast %cst_147 : f32 to vector<16x16xf32>
    %704 = arith.cmpf oge, %674, %703 : vector<16x16xf32>
    %cst_148 = arith.constant 0.000000e+00 : f32
    %705 = vector.broadcast %cst_148 : f32 to vector<16x16xf32>
    %706 = arith.subf %705, %702 : vector<16x16xf32>
    %707 = arith.select %704, %702, %706 : vector<16x16xi1>, vector<16x16xf32>
    %cst_149 = arith.constant 5.000000e-01 : f32
    %708 = vector.broadcast %cst_149 : f32 to vector<16x16xf32>
    %709 = arith.mulf %708, %660 : vector<16x16xf32>
    %cst_150 = arith.constant 1.000000e+00 : f32
    %710 = vector.broadcast %cst_150 : f32 to vector<16x16xf32>
    %711 = arith.addf %710, %707 : vector<16x16xf32>
    %712 = arith.mulf %709, %711 : vector<16x16xf32>
    %c0_151 = arith.constant 0 : index
    %c1_152 = arith.constant 1 : index
    %c1_153 = arith.constant 1 : index
    %713 = vector.load %arg7[%c0_151, %c1_152, %c1_153] : memref<4x18x18xf32, #tpu.memory_space<vmem>>, vector<1x16x16xf32>
    %714 = vector.shape_cast %713 : vector<1x16x16xf32> to vector<16x16xf32>
    %715 = vector.shape_cast %712 : vector<16x16xf32> to vector<1x16x16xf32>
    tpu.vector_store %arg7[%c0_151, %c1_152, %c1_153], %715 {strides = array<i32>} : memref<4x18x18xf32, #tpu.memory_space<vmem>>, vector<1x16x16xf32>,
    %cst_154 = arith.constant 0.707106769 : f32
    %716 = vector.broadcast %cst_154 : f32 to vector<16x16xf32>
    %717 = arith.mulf %664, %716 : vector<16x16xf32>
    %718 = math.absf %717 : vector<16x16xf32>
    %cst_155 = arith.constant 0.327591091 : f32
    %719 = vector.broadcast %cst_155 : f32 to vector<16x16xf32>
    %720 = arith.mulf %719, %718 : vector<16x16xf32>
    %cst_156 = arith.constant 1.000000e+00 : f32
    %721 = vector.broadcast %cst_156 : f32 to vector<16x16xf32>
    %722 = arith.addf %721, %720 : vector<16x16xf32>
    %cst_157 = arith.constant 1.000000e+00 : f32
    %723 = vector.broadcast %cst_157 : f32 to vector<16x16xf32>
    %724 = arith.divf %723, %722 : vector<16x16xf32>
    %cst_158 = arith.constant 1.06140542 : f32
    %725 = vector.broadcast %cst_158 : f32 to vector<16x16xf32>
    %726 = arith.mulf %724, %725 : vector<16x16xf32>
    %cst_159 = arith.constant -1.45315206 : f32
    %727 = vector.broadcast %cst_159 : f32 to vector<16x16xf32>
    %728 = arith.addf %727, %726 : vector<16x16xf32>
    %729 = arith.mulf %724, %728 : vector<16x16xf32>
    %cst_160 = arith.constant 1.42141378 : f32
    %730 = vector.broadcast %cst_160 : f32 to vector<16x16xf32>
    %731 = arith.addf %730, %729 : vector<16x16xf32>
    %732 = arith.mulf %724, %731 : vector<16x16xf32>
    %cst_161 = arith.constant -0.284496725 : f32
    %733 = vector.broadcast %cst_161 : f32 to vector<16x16xf32>
    %734 = arith.addf %733, %732 : vector<16x16xf32>
    %735 = arith.mulf %724, %734 : vector<16x16xf32>
    %cst_162 = arith.constant 0.254829586 : f32
    %736 = vector.broadcast %cst_162 : f32 to vector<16x16xf32>
    %737 = arith.addf %736, %735 : vector<16x16xf32>
    %738 = arith.mulf %724, %737 : vector<16x16xf32>
    %cst_163 = arith.constant 0.000000e+00 : f32
    %739 = vector.broadcast %cst_163 : f32 to vector<16x16xf32>
    %740 = arith.subf %739, %718 : vector<16x16xf32>
    %741 = arith.mulf %740, %718 : vector<16x16xf32>
    %742 = math.exp %741 : vector<16x16xf32>
    %743 = arith.mulf %738, %742 : vector<16x16xf32>
    %cst_164 = arith.constant 1.000000e+00 : f32
    %744 = vector.broadcast %cst_164 : f32 to vector<16x16xf32>
    %745 = arith.subf %744, %743 : vector<16x16xf32>
    %cst_165 = arith.constant 0.000000e+00 : f32
    %746 = vector.broadcast %cst_165 : f32 to vector<16x16xf32>
    %747 = arith.cmpf oge, %717, %746 : vector<16x16xf32>
    %cst_166 = arith.constant 0.000000e+00 : f32
    %748 = vector.broadcast %cst_166 : f32 to vector<16x16xf32>
    %749 = arith.subf %748, %745 : vector<16x16xf32>
    %750 = arith.select %747, %745, %749 : vector<16x16xi1>, vector<16x16xf32>
    %cst_167 = arith.constant 5.000000e-01 : f32
    %751 = vector.broadcast %cst_167 : f32 to vector<16x16xf32>
    %752 = arith.mulf %751, %664 : vector<16x16xf32>
    %cst_168 = arith.constant 1.000000e+00 : f32
    %753 = vector.broadcast %cst_168 : f32 to vector<16x16xf32>
    %754 = arith.addf %753, %750 : vector<16x16xf32>
    %755 = arith.mulf %752, %754 : vector<16x16xf32>
    %c1_169 = arith.constant 1 : index
    %c1_170 = arith.constant 1 : index
    %c1_171 = arith.constant 1 : index
    %756 = vector.load %arg7[%c1_169, %c1_170, %c1_171] : memref<4x18x18xf32, #tpu.memory_space<vmem>>, vector<1x16x16xf32>
    %757 = vector.shape_cast %756 : vector<1x16x16xf32> to vector<16x16xf32>
    %758 = vector.shape_cast %755 : vector<16x16xf32> to vector<1x16x16xf32>
    tpu.vector_store %arg7[%c1_169, %c1_170, %c1_171], %758 {strides = array<i32>} : memref<4x18x18xf32, #tpu.memory_space<vmem>>, vector<1x16x16xf32>,
    %cst_172 = arith.constant 0.707106769 : f32
    %759 = vector.broadcast %cst_172 : f32 to vector<16x16xf32>
    %760 = arith.mulf %668, %759 : vector<16x16xf32>
    %761 = math.absf %760 : vector<16x16xf32>
    %cst_173 = arith.constant 0.327591091 : f32
    %762 = vector.broadcast %cst_173 : f32 to vector<16x16xf32>
    %763 = arith.mulf %762, %761 : vector<16x16xf32>
    %cst_174 = arith.constant 1.000000e+00 : f32
    %764 = vector.broadcast %cst_174 : f32 to vector<16x16xf32>
    %765 = arith.addf %764, %763 : vector<16x16xf32>
    %cst_175 = arith.constant 1.000000e+00 : f32
    %766 = vector.broadcast %cst_175 : f32 to vector<16x16xf32>
    %767 = arith.divf %766, %765 : vector<16x16xf32>
    %cst_176 = arith.constant 1.06140542 : f32
    %768 = vector.broadcast %cst_176 : f32 to vector<16x16xf32>
    %769 = arith.mulf %767, %768 : vector<16x16xf32>
    %cst_177 = arith.constant -1.45315206 : f32
    %770 = vector.broadcast %cst_177 : f32 to vector<16x16xf32>
    %771 = arith.addf %770, %769 : vector<16x16xf32>
    %772 = arith.mulf %767, %771 : vector<16x16xf32>
    %cst_178 = arith.constant 1.42141378 : f32
    %773 = vector.broadcast %cst_178 : f32 to vector<16x16xf32>
    %774 = arith.addf %773, %772 : vector<16x16xf32>
    %775 = arith.mulf %767, %774 : vector<16x16xf32>
    %cst_179 = arith.constant -0.284496725 : f32
    %776 = vector.broadcast %cst_179 : f32 to vector<16x16xf32>
    %777 = arith.addf %776, %775 : vector<16x16xf32>
    %778 = arith.mulf %767, %777 : vector<16x16xf32>
    %cst_180 = arith.constant 0.254829586 : f32
    %779 = vector.broadcast %cst_180 : f32 to vector<16x16xf32>
    %780 = arith.addf %779, %778 : vector<16x16xf32>
    %781 = arith.mulf %767, %780 : vector<16x16xf32>
    %cst_181 = arith.constant 0.000000e+00 : f32
    %782 = vector.broadcast %cst_181 : f32 to vector<16x16xf32>
    %783 = arith.subf %782, %761 : vector<16x16xf32>
    %784 = arith.mulf %783, %761 : vector<16x16xf32>
    %785 = math.exp %784 : vector<16x16xf32>
    %786 = arith.mulf %781, %785 : vector<16x16xf32>
    %cst_182 = arith.constant 1.000000e+00 : f32
    %787 = vector.broadcast %cst_182 : f32 to vector<16x16xf32>
    %788 = arith.subf %787, %786 : vector<16x16xf32>
    %cst_183 = arith.constant 0.000000e+00 : f32
    %789 = vector.broadcast %cst_183 : f32 to vector<16x16xf32>
    %790 = arith.cmpf oge, %760, %789 : vector<16x16xf32>
    %cst_184 = arith.constant 0.000000e+00 : f32
    %791 = vector.broadcast %cst_184 : f32 to vector<16x16xf32>
    %792 = arith.subf %791, %788 : vector<16x16xf32>
    %793 = arith.select %790, %788, %792 : vector<16x16xi1>, vector<16x16xf32>
    %cst_185 = arith.constant 5.000000e-01 : f32
    %794 = vector.broadcast %cst_185 : f32 to vector<16x16xf32>
    %795 = arith.mulf %794, %668 : vector<16x16xf32>
    %cst_186 = arith.constant 1.000000e+00 : f32
    %796 = vector.broadcast %cst_186 : f32 to vector<16x16xf32>
    %797 = arith.addf %796, %793 : vector<16x16xf32>
    %798 = arith.mulf %795, %797 : vector<16x16xf32>
    %c2_187 = arith.constant 2 : index
    %c1_188 = arith.constant 1 : index
    %c1_189 = arith.constant 1 : index
    %799 = vector.load %arg7[%c2_187, %c1_188, %c1_189] : memref<4x18x18xf32, #tpu.memory_space<vmem>>, vector<1x16x16xf32>
    %800 = vector.shape_cast %799 : vector<1x16x16xf32> to vector<16x16xf32>
    %801 = vector.shape_cast %798 : vector<16x16xf32> to vector<1x16x16xf32>
    tpu.vector_store %arg7[%c2_187, %c1_188, %c1_189], %801 {strides = array<i32>} : memref<4x18x18xf32, #tpu.memory_space<vmem>>, vector<1x16x16xf32>,
    %cst_190 = arith.constant 0.707106769 : f32
    %802 = vector.broadcast %cst_190 : f32 to vector<16x16xf32>
    %803 = arith.mulf %672, %802 : vector<16x16xf32>
    %804 = math.absf %803 : vector<16x16xf32>
    %cst_191 = arith.constant 0.327591091 : f32
    %805 = vector.broadcast %cst_191 : f32 to vector<16x16xf32>
    %806 = arith.mulf %805, %804 : vector<16x16xf32>
    %cst_192 = arith.constant 1.000000e+00 : f32
    %807 = vector.broadcast %cst_192 : f32 to vector<16x16xf32>
    %808 = arith.addf %807, %806 : vector<16x16xf32>
    %cst_193 = arith.constant 1.000000e+00 : f32
    %809 = vector.broadcast %cst_193 : f32 to vector<16x16xf32>
    %810 = arith.divf %809, %808 : vector<16x16xf32>
    %cst_194 = arith.constant 1.06140542 : f32
    %811 = vector.broadcast %cst_194 : f32 to vector<16x16xf32>
    %812 = arith.mulf %810, %811 : vector<16x16xf32>
    %cst_195 = arith.constant -1.45315206 : f32
    %813 = vector.broadcast %cst_195 : f32 to vector<16x16xf32>
    %814 = arith.addf %813, %812 : vector<16x16xf32>
    %815 = arith.mulf %810, %814 : vector<16x16xf32>
    %cst_196 = arith.constant 1.42141378 : f32
    %816 = vector.broadcast %cst_196 : f32 to vector<16x16xf32>
    %817 = arith.addf %816, %815 : vector<16x16xf32>
    %818 = arith.mulf %810, %817 : vector<16x16xf32>
    %cst_197 = arith.constant -0.284496725 : f32
    %819 = vector.broadcast %cst_197 : f32 to vector<16x16xf32>
    %820 = arith.addf %819, %818 : vector<16x16xf32>
    %821 = arith.mulf %810, %820 : vector<16x16xf32>
    %cst_198 = arith.constant 0.254829586 : f32
    %822 = vector.broadcast %cst_198 : f32 to vector<16x16xf32>
    %823 = arith.addf %822, %821 : vector<16x16xf32>
    %824 = arith.mulf %810, %823 : vector<16x16xf32>
    %cst_199 = arith.constant 0.000000e+00 : f32
    %825 = vector.broadcast %cst_199 : f32 to vector<16x16xf32>
    %826 = arith.subf %825, %804 : vector<16x16xf32>
    %827 = arith.mulf %826, %804 : vector<16x16xf32>
    %828 = math.exp %827 : vector<16x16xf32>
    %829 = arith.mulf %824, %828 : vector<16x16xf32>
    %cst_200 = arith.constant 1.000000e+00 : f32
    %830 = vector.broadcast %cst_200 : f32 to vector<16x16xf32>
    %831 = arith.subf %830, %829 : vector<16x16xf32>
    %cst_201 = arith.constant 0.000000e+00 : f32
    %832 = vector.broadcast %cst_201 : f32 to vector<16x16xf32>
    %833 = arith.cmpf oge, %803, %832 : vector<16x16xf32>
    %cst_202 = arith.constant 0.000000e+00 : f32
    %834 = vector.broadcast %cst_202 : f32 to vector<16x16xf32>
    %835 = arith.subf %834, %831 : vector<16x16xf32>
    %836 = arith.select %833, %831, %835 : vector<16x16xi1>, vector<16x16xf32>
    %cst_203 = arith.constant 5.000000e-01 : f32
    %837 = vector.broadcast %cst_203 : f32 to vector<16x16xf32>
    %838 = arith.mulf %837, %672 : vector<16x16xf32>
    %cst_204 = arith.constant 1.000000e+00 : f32
    %839 = vector.broadcast %cst_204 : f32 to vector<16x16xf32>
    %840 = arith.addf %839, %836 : vector<16x16xf32>
    %841 = arith.mulf %838, %840 : vector<16x16xf32>
    %c3_205 = arith.constant 3 : index
    %c1_206 = arith.constant 1 : index
    %c1_207 = arith.constant 1 : index
    %842 = vector.load %arg7[%c3_205, %c1_206, %c1_207] : memref<4x18x18xf32, #tpu.memory_space<vmem>>, vector<1x16x16xf32>
    %843 = vector.shape_cast %842 : vector<1x16x16xf32> to vector<16x16xf32>
    %844 = vector.shape_cast %841 : vector<16x16xf32> to vector<1x16x16xf32>
    tpu.vector_store %arg7[%c3_205, %c1_206, %c1_207], %844 {strides = array<i32>} : memref<4x18x18xf32, #tpu.memory_space<vmem>>, vector<1x16x16xf32>,
    %cst_208 = arith.constant 0.000000e+00 : f32
    %845 = vector.broadcast %cst_208 : f32 to vector<16x16xf32>
    %c0_209 = arith.constant 0 : index
    %846 = memref.load %arg5[%c0_209] : memref<4xf32, #tpu.memory_space<smem>>
    %847 = vector.broadcast %846 : f32 to vector<16x16xf32>
    %848 = arith.addf %845, %847 : vector<16x16xf32>
    %cst_210 = arith.constant 0.000000e+00 : f32
    %849 = vector.broadcast %cst_210 : f32 to vector<16x16xf32>
    %c1_211 = arith.constant 1 : index
    %850 = memref.load %arg5[%c1_211] : memref<4xf32, #tpu.memory_space<smem>>
    %851 = vector.broadcast %850 : f32 to vector<16x16xf32>
    %852 = arith.addf %849, %851 : vector<16x16xf32>
    %cst_212 = arith.constant 0.000000e+00 : f32
    %853 = vector.broadcast %cst_212 : f32 to vector<16x16xf32>
    %c2_213 = arith.constant 2 : index
    %854 = memref.load %arg5[%c2_213] : memref<4xf32, #tpu.memory_space<smem>>
    %855 = vector.broadcast %854 : f32 to vector<16x16xf32>
    %856 = arith.addf %853, %855 : vector<16x16xf32>
    %cst_214 = arith.constant 0.000000e+00 : f32
    %857 = vector.broadcast %cst_214 : f32 to vector<16x16xf32>
    %c3_215 = arith.constant 3 : index
    %858 = memref.load %arg5[%c3_215] : memref<4xf32, #tpu.memory_space<smem>>
    %859 = vector.broadcast %858 : f32 to vector<16x16xf32>
    %860 = arith.addf %857, %859 : vector<16x16xf32>
    %c0_216 = arith.constant 0 : index
    %c0_217 = arith.constant 0 : index
    %c0_218 = arith.constant 0 : index
    %861 = vector.load %arg7[%c0_216, %c0_217, %c0_218] : memref<4x18x18xf32, #tpu.memory_space<vmem>>, vector<1x16x16xf32>
    %862 = vector.shape_cast %861 : vector<1x16x16xf32> to vector<16x16xf32>
    %c0_219 = arith.constant 0 : index
    %863 = memref.load %arg4[%c0_219] : memref<144xf32, #tpu.memory_space<smem>>
    %864 = vector.broadcast %863 : f32 to vector<16x16xf32>
    %865 = arith.mulf %864, %862 : vector<16x16xf32>
    %866 = arith.addf %848, %865 : vector<16x16xf32>
    %c36_220 = arith.constant 36 : index
    %867 = memref.load %arg4[%c36_220] : memref<144xf32, #tpu.memory_space<smem>>
    %868 = vector.broadcast %867 : f32 to vector<16x16xf32>
    %869 = arith.mulf %868, %862 : vector<16x16xf32>
    %870 = arith.addf %852, %869 : vector<16x16xf32>
    %c72_221 = arith.constant 72 : index
    %871 = memref.load %arg4[%c72_221] : memref<144xf32, #tpu.memory_space<smem>>
    %872 = vector.broadcast %871 : f32 to vector<16x16xf32>
    %873 = arith.mulf %872, %862 : vector<16x16xf32>
    %874 = arith.addf %856, %873 : vector<16x16xf32>
    %c108_222 = arith.constant 108 : index
    %875 = memref.load %arg4[%c108_222] : memref<144xf32, #tpu.memory_space<smem>>
    %876 = vector.broadcast %875 : f32 to vector<16x16xf32>
    %877 = arith.mulf %876, %862 : vector<16x16xf32>
    %878 = arith.addf %860, %877 : vector<16x16xf32>
    %c0_223 = arith.constant 0 : index
    %c0_224 = arith.constant 0 : index
    %c1_225 = arith.constant 1 : index
    %879 = vector.load %arg7[%c0_223, %c0_224, %c1_225] : memref<4x18x18xf32, #tpu.memory_space<vmem>>, vector<1x16x16xf32>
    %880 = vector.shape_cast %879 : vector<1x16x16xf32> to vector<16x16xf32>
    %c1_226 = arith.constant 1 : index
    %881 = memref.load %arg4[%c1_226] : memref<144xf32, #tpu.memory_space<smem>>
    %882 = vector.broadcast %881 : f32 to vector<16x16xf32>
    %883 = arith.mulf %882, %880 : vector<16x16xf32>
    %884 = arith.addf %866, %883 : vector<16x16xf32>
    %c37_227 = arith.constant 37 : index
    %885 = memref.load %arg4[%c37_227] : memref<144xf32, #tpu.memory_space<smem>>
    %886 = vector.broadcast %885 : f32 to vector<16x16xf32>
    %887 = arith.mulf %886, %880 : vector<16x16xf32>
    %888 = arith.addf %870, %887 : vector<16x16xf32>
    %c73_228 = arith.constant 73 : index
    %889 = memref.load %arg4[%c73_228] : memref<144xf32, #tpu.memory_space<smem>>
    %890 = vector.broadcast %889 : f32 to vector<16x16xf32>
    %891 = arith.mulf %890, %880 : vector<16x16xf32>
    %892 = arith.addf %874, %891 : vector<16x16xf32>
    %c109_229 = arith.constant 109 : index
    %893 = memref.load %arg4[%c109_229] : memref<144xf32, #tpu.memory_space<smem>>
    %894 = vector.broadcast %893 : f32 to vector<16x16xf32>
    %895 = arith.mulf %894, %880 : vector<16x16xf32>
    %896 = arith.addf %878, %895 : vector<16x16xf32>
    %c0_230 = arith.constant 0 : index
    %c0_231 = arith.constant 0 : index
    %c2_232 = arith.constant 2 : index
    %897 = vector.load %arg7[%c0_230, %c0_231, %c2_232] : memref<4x18x18xf32, #tpu.memory_space<vmem>>, vector<1x16x16xf32>
    %898 = vector.shape_cast %897 : vector<1x16x16xf32> to vector<16x16xf32>
    %c2_233 = arith.constant 2 : index
    %899 = memref.load %arg4[%c2_233] : memref<144xf32, #tpu.memory_space<smem>>
    %900 = vector.broadcast %899 : f32 to vector<16x16xf32>
    %901 = arith.mulf %900, %898 : vector<16x16xf32>
    %902 = arith.addf %884, %901 : vector<16x16xf32>
    %c38_234 = arith.constant 38 : index
    %903 = memref.load %arg4[%c38_234] : memref<144xf32, #tpu.memory_space<smem>>
    %904 = vector.broadcast %903 : f32 to vector<16x16xf32>
    %905 = arith.mulf %904, %898 : vector<16x16xf32>
    %906 = arith.addf %888, %905 : vector<16x16xf32>
    %c74_235 = arith.constant 74 : index
    %907 = memref.load %arg4[%c74_235] : memref<144xf32, #tpu.memory_space<smem>>
    %908 = vector.broadcast %907 : f32 to vector<16x16xf32>
    %909 = arith.mulf %908, %898 : vector<16x16xf32>
    %910 = arith.addf %892, %909 : vector<16x16xf32>
    %c110_236 = arith.constant 110 : index
    %911 = memref.load %arg4[%c110_236] : memref<144xf32, #tpu.memory_space<smem>>
    %912 = vector.broadcast %911 : f32 to vector<16x16xf32>
    %913 = arith.mulf %912, %898 : vector<16x16xf32>
    %914 = arith.addf %896, %913 : vector<16x16xf32>
    %c0_237 = arith.constant 0 : index
    %c1_238 = arith.constant 1 : index
    %c0_239 = arith.constant 0 : index
    %915 = vector.load %arg7[%c0_237, %c1_238, %c0_239] : memref<4x18x18xf32, #tpu.memory_space<vmem>>, vector<1x16x16xf32>
    %916 = vector.shape_cast %915 : vector<1x16x16xf32> to vector<16x16xf32>
    %c3_240 = arith.constant 3 : index
    %917 = memref.load %arg4[%c3_240] : memref<144xf32, #tpu.memory_space<smem>>
    %918 = vector.broadcast %917 : f32 to vector<16x16xf32>
    %919 = arith.mulf %918, %916 : vector<16x16xf32>
    %920 = arith.addf %902, %919 : vector<16x16xf32>
    %c39_241 = arith.constant 39 : index
    %921 = memref.load %arg4[%c39_241] : memref<144xf32, #tpu.memory_space<smem>>
    %922 = vector.broadcast %921 : f32 to vector<16x16xf32>
    %923 = arith.mulf %922, %916 : vector<16x16xf32>
    %924 = arith.addf %906, %923 : vector<16x16xf32>
    %c75_242 = arith.constant 75 : index
    %925 = memref.load %arg4[%c75_242] : memref<144xf32, #tpu.memory_space<smem>>
    %926 = vector.broadcast %925 : f32 to vector<16x16xf32>
    %927 = arith.mulf %926, %916 : vector<16x16xf32>
    %928 = arith.addf %910, %927 : vector<16x16xf32>
    %c111_243 = arith.constant 111 : index
    %929 = memref.load %arg4[%c111_243] : memref<144xf32, #tpu.memory_space<smem>>
    %930 = vector.broadcast %929 : f32 to vector<16x16xf32>
    %931 = arith.mulf %930, %916 : vector<16x16xf32>
    %932 = arith.addf %914, %931 : vector<16x16xf32>
    %c0_244 = arith.constant 0 : index
    %c1_245 = arith.constant 1 : index
    %c1_246 = arith.constant 1 : index
    %933 = vector.load %arg7[%c0_244, %c1_245, %c1_246] : memref<4x18x18xf32, #tpu.memory_space<vmem>>, vector<1x16x16xf32>
    %934 = vector.shape_cast %933 : vector<1x16x16xf32> to vector<16x16xf32>
    %c4_247 = arith.constant 4 : index
    %935 = memref.load %arg4[%c4_247] : memref<144xf32, #tpu.memory_space<smem>>
    %936 = vector.broadcast %935 : f32 to vector<16x16xf32>
    %937 = arith.mulf %936, %934 : vector<16x16xf32>
    %938 = arith.addf %920, %937 : vector<16x16xf32>
    %c40_248 = arith.constant 40 : index
    %939 = memref.load %arg4[%c40_248] : memref<144xf32, #tpu.memory_space<smem>>
    %940 = vector.broadcast %939 : f32 to vector<16x16xf32>
    %941 = arith.mulf %940, %934 : vector<16x16xf32>
    %942 = arith.addf %924, %941 : vector<16x16xf32>
    %c76_249 = arith.constant 76 : index
    %943 = memref.load %arg4[%c76_249] : memref<144xf32, #tpu.memory_space<smem>>
    %944 = vector.broadcast %943 : f32 to vector<16x16xf32>
    %945 = arith.mulf %944, %934 : vector<16x16xf32>
    %946 = arith.addf %928, %945 : vector<16x16xf32>
    %c112_250 = arith.constant 112 : index
    %947 = memref.load %arg4[%c112_250] : memref<144xf32, #tpu.memory_space<smem>>
    %948 = vector.broadcast %947 : f32 to vector<16x16xf32>
    %949 = arith.mulf %948, %934 : vector<16x16xf32>
    %950 = arith.addf %932, %949 : vector<16x16xf32>
    %c0_251 = arith.constant 0 : index
    %c1_252 = arith.constant 1 : index
    %c2_253 = arith.constant 2 : index
    %951 = vector.load %arg7[%c0_251, %c1_252, %c2_253] : memref<4x18x18xf32, #tpu.memory_space<vmem>>, vector<1x16x16xf32>
    %952 = vector.shape_cast %951 : vector<1x16x16xf32> to vector<16x16xf32>
    %c5_254 = arith.constant 5 : index
    %953 = memref.load %arg4[%c5_254] : memref<144xf32, #tpu.memory_space<smem>>
    %954 = vector.broadcast %953 : f32 to vector<16x16xf32>
    %955 = arith.mulf %954, %952 : vector<16x16xf32>
    %956 = arith.addf %938, %955 : vector<16x16xf32>
    %c41_255 = arith.constant 41 : index
    %957 = memref.load %arg4[%c41_255] : memref<144xf32, #tpu.memory_space<smem>>
    %958 = vector.broadcast %957 : f32 to vector<16x16xf32>
    %959 = arith.mulf %958, %952 : vector<16x16xf32>
    %960 = arith.addf %942, %959 : vector<16x16xf32>
    %c77_256 = arith.constant 77 : index
    %961 = memref.load %arg4[%c77_256] : memref<144xf32, #tpu.memory_space<smem>>
    %962 = vector.broadcast %961 : f32 to vector<16x16xf32>
    %963 = arith.mulf %962, %952 : vector<16x16xf32>
    %964 = arith.addf %946, %963 : vector<16x16xf32>
    %c113_257 = arith.constant 113 : index
    %965 = memref.load %arg4[%c113_257] : memref<144xf32, #tpu.memory_space<smem>>
    %966 = vector.broadcast %965 : f32 to vector<16x16xf32>
    %967 = arith.mulf %966, %952 : vector<16x16xf32>
    %968 = arith.addf %950, %967 : vector<16x16xf32>
    %c0_258 = arith.constant 0 : index
    %c2_259 = arith.constant 2 : index
    %c0_260 = arith.constant 0 : index
    %969 = vector.load %arg7[%c0_258, %c2_259, %c0_260] : memref<4x18x18xf32, #tpu.memory_space<vmem>>, vector<1x16x16xf32>
    %970 = vector.shape_cast %969 : vector<1x16x16xf32> to vector<16x16xf32>
    %c6_261 = arith.constant 6 : index
    %971 = memref.load %arg4[%c6_261] : memref<144xf32, #tpu.memory_space<smem>>
    %972 = vector.broadcast %971 : f32 to vector<16x16xf32>
    %973 = arith.mulf %972, %970 : vector<16x16xf32>
    %974 = arith.addf %956, %973 : vector<16x16xf32>
    %c42_262 = arith.constant 42 : index
    %975 = memref.load %arg4[%c42_262] : memref<144xf32, #tpu.memory_space<smem>>
    %976 = vector.broadcast %975 : f32 to vector<16x16xf32>
    %977 = arith.mulf %976, %970 : vector<16x16xf32>
    %978 = arith.addf %960, %977 : vector<16x16xf32>
    %c78_263 = arith.constant 78 : index
    %979 = memref.load %arg4[%c78_263] : memref<144xf32, #tpu.memory_space<smem>>
    %980 = vector.broadcast %979 : f32 to vector<16x16xf32>
    %981 = arith.mulf %980, %970 : vector<16x16xf32>
    %982 = arith.addf %964, %981 : vector<16x16xf32>
    %c114_264 = arith.constant 114 : index
    %983 = memref.load %arg4[%c114_264] : memref<144xf32, #tpu.memory_space<smem>>
    %984 = vector.broadcast %983 : f32 to vector<16x16xf32>
    %985 = arith.mulf %984, %970 : vector<16x16xf32>
    %986 = arith.addf %968, %985 : vector<16x16xf32>
    %c0_265 = arith.constant 0 : index
    %c2_266 = arith.constant 2 : index
    %c1_267 = arith.constant 1 : index
    %987 = vector.load %arg7[%c0_265, %c2_266, %c1_267] : memref<4x18x18xf32, #tpu.memory_space<vmem>>, vector<1x16x16xf32>
    %988 = vector.shape_cast %987 : vector<1x16x16xf32> to vector<16x16xf32>
    %c7_268 = arith.constant 7 : index
    %989 = memref.load %arg4[%c7_268] : memref<144xf32, #tpu.memory_space<smem>>
    %990 = vector.broadcast %989 : f32 to vector<16x16xf32>
    %991 = arith.mulf %990, %988 : vector<16x16xf32>
    %992 = arith.addf %974, %991 : vector<16x16xf32>
    %c43_269 = arith.constant 43 : index
    %993 = memref.load %arg4[%c43_269] : memref<144xf32, #tpu.memory_space<smem>>
    %994 = vector.broadcast %993 : f32 to vector<16x16xf32>
    %995 = arith.mulf %994, %988 : vector<16x16xf32>
    %996 = arith.addf %978, %995 : vector<16x16xf32>
    %c79_270 = arith.constant 79 : index
    %997 = memref.load %arg4[%c79_270] : memref<144xf32, #tpu.memory_space<smem>>
    %998 = vector.broadcast %997 : f32 to vector<16x16xf32>
    %999 = arith.mulf %998, %988 : vector<16x16xf32>
    %1000 = arith.addf %982, %999 : vector<16x16xf32>
    %c115_271 = arith.constant 115 : index
    %1001 = memref.load %arg4[%c115_271] : memref<144xf32, #tpu.memory_space<smem>>
    %1002 = vector.broadcast %1001 : f32 to vector<16x16xf32>
    %1003 = arith.mulf %1002, %988 : vector<16x16xf32>
    %1004 = arith.addf %986, %1003 : vector<16x16xf32>
    %c0_272 = arith.constant 0 : index
    %c2_273 = arith.constant 2 : index
    %c2_274 = arith.constant 2 : index
    %1005 = vector.load %arg7[%c0_272, %c2_273, %c2_274] : memref<4x18x18xf32, #tpu.memory_space<vmem>>, vector<1x16x16xf32>
    %1006 = vector.shape_cast %1005 : vector<1x16x16xf32> to vector<16x16xf32>
    %c8_275 = arith.constant 8 : index
    %1007 = memref.load %arg4[%c8_275] : memref<144xf32, #tpu.memory_space<smem>>
    %1008 = vector.broadcast %1007 : f32 to vector<16x16xf32>
    %1009 = arith.mulf %1008, %1006 : vector<16x16xf32>
    %1010 = arith.addf %992, %1009 : vector<16x16xf32>
    %c44_276 = arith.constant 44 : index
    %1011 = memref.load %arg4[%c44_276] : memref<144xf32, #tpu.memory_space<smem>>
    %1012 = vector.broadcast %1011 : f32 to vector<16x16xf32>
    %1013 = arith.mulf %1012, %1006 : vector<16x16xf32>
    %1014 = arith.addf %996, %1013 : vector<16x16xf32>
    %c80_277 = arith.constant 80 : index
    %1015 = memref.load %arg4[%c80_277] : memref<144xf32, #tpu.memory_space<smem>>
    %1016 = vector.broadcast %1015 : f32 to vector<16x16xf32>
    %1017 = arith.mulf %1016, %1006 : vector<16x16xf32>
    %1018 = arith.addf %1000, %1017 : vector<16x16xf32>
    %c116_278 = arith.constant 116 : index
    %1019 = memref.load %arg4[%c116_278] : memref<144xf32, #tpu.memory_space<smem>>
    %1020 = vector.broadcast %1019 : f32 to vector<16x16xf32>
    %1021 = arith.mulf %1020, %1006 : vector<16x16xf32>
    %1022 = arith.addf %1004, %1021 : vector<16x16xf32>
    %c1_279 = arith.constant 1 : index
    %c0_280 = arith.constant 0 : index
    %c0_281 = arith.constant 0 : index
    %1023 = vector.load %arg7[%c1_279, %c0_280, %c0_281] : memref<4x18x18xf32, #tpu.memory_space<vmem>>, vector<1x16x16xf32>
    %1024 = vector.shape_cast %1023 : vector<1x16x16xf32> to vector<16x16xf32>
    %c9_282 = arith.constant 9 : index
    %1025 = memref.load %arg4[%c9_282] : memref<144xf32, #tpu.memory_space<smem>>
    %1026 = vector.broadcast %1025 : f32 to vector<16x16xf32>
    %1027 = arith.mulf %1026, %1024 : vector<16x16xf32>
    %1028 = arith.addf %1010, %1027 : vector<16x16xf32>
    %c45_283 = arith.constant 45 : index
    %1029 = memref.load %arg4[%c45_283] : memref<144xf32, #tpu.memory_space<smem>>
    %1030 = vector.broadcast %1029 : f32 to vector<16x16xf32>
    %1031 = arith.mulf %1030, %1024 : vector<16x16xf32>
    %1032 = arith.addf %1014, %1031 : vector<16x16xf32>
    %c81_284 = arith.constant 81 : index
    %1033 = memref.load %arg4[%c81_284] : memref<144xf32, #tpu.memory_space<smem>>
    %1034 = vector.broadcast %1033 : f32 to vector<16x16xf32>
    %1035 = arith.mulf %1034, %1024 : vector<16x16xf32>
    %1036 = arith.addf %1018, %1035 : vector<16x16xf32>
    %c117_285 = arith.constant 117 : index
    %1037 = memref.load %arg4[%c117_285] : memref<144xf32, #tpu.memory_space<smem>>
    %1038 = vector.broadcast %1037 : f32 to vector<16x16xf32>
    %1039 = arith.mulf %1038, %1024 : vector<16x16xf32>
    %1040 = arith.addf %1022, %1039 : vector<16x16xf32>
    %c1_286 = arith.constant 1 : index
    %c0_287 = arith.constant 0 : index
    %c1_288 = arith.constant 1 : index
    %1041 = vector.load %arg7[%c1_286, %c0_287, %c1_288] : memref<4x18x18xf32, #tpu.memory_space<vmem>>, vector<1x16x16xf32>
    %1042 = vector.shape_cast %1041 : vector<1x16x16xf32> to vector<16x16xf32>
    %c10_289 = arith.constant 10 : index
    %1043 = memref.load %arg4[%c10_289] : memref<144xf32, #tpu.memory_space<smem>>
    %1044 = vector.broadcast %1043 : f32 to vector<16x16xf32>
    %1045 = arith.mulf %1044, %1042 : vector<16x16xf32>
    %1046 = arith.addf %1028, %1045 : vector<16x16xf32>
    %c46_290 = arith.constant 46 : index
    %1047 = memref.load %arg4[%c46_290] : memref<144xf32, #tpu.memory_space<smem>>
    %1048 = vector.broadcast %1047 : f32 to vector<16x16xf32>
    %1049 = arith.mulf %1048, %1042 : vector<16x16xf32>
    %1050 = arith.addf %1032, %1049 : vector<16x16xf32>
    %c82_291 = arith.constant 82 : index
    %1051 = memref.load %arg4[%c82_291] : memref<144xf32, #tpu.memory_space<smem>>
    %1052 = vector.broadcast %1051 : f32 to vector<16x16xf32>
    %1053 = arith.mulf %1052, %1042 : vector<16x16xf32>
    %1054 = arith.addf %1036, %1053 : vector<16x16xf32>
    %c118_292 = arith.constant 118 : index
    %1055 = memref.load %arg4[%c118_292] : memref<144xf32, #tpu.memory_space<smem>>
    %1056 = vector.broadcast %1055 : f32 to vector<16x16xf32>
    %1057 = arith.mulf %1056, %1042 : vector<16x16xf32>
    %1058 = arith.addf %1040, %1057 : vector<16x16xf32>
    %c1_293 = arith.constant 1 : index
    %c0_294 = arith.constant 0 : index
    %c2_295 = arith.constant 2 : index
    %1059 = vector.load %arg7[%c1_293, %c0_294, %c2_295] : memref<4x18x18xf32, #tpu.memory_space<vmem>>, vector<1x16x16xf32>
    %1060 = vector.shape_cast %1059 : vector<1x16x16xf32> to vector<16x16xf32>
    %c11_296 = arith.constant 11 : index
    %1061 = memref.load %arg4[%c11_296] : memref<144xf32, #tpu.memory_space<smem>>
    %1062 = vector.broadcast %1061 : f32 to vector<16x16xf32>
    %1063 = arith.mulf %1062, %1060 : vector<16x16xf32>
    %1064 = arith.addf %1046, %1063 : vector<16x16xf32>
    %c47_297 = arith.constant 47 : index
    %1065 = memref.load %arg4[%c47_297] : memref<144xf32, #tpu.memory_space<smem>>
    %1066 = vector.broadcast %1065 : f32 to vector<16x16xf32>
    %1067 = arith.mulf %1066, %1060 : vector<16x16xf32>
    %1068 = arith.addf %1050, %1067 : vector<16x16xf32>
    %c83_298 = arith.constant 83 : index
    %1069 = memref.load %arg4[%c83_298] : memref<144xf32, #tpu.memory_space<smem>>
    %1070 = vector.broadcast %1069 : f32 to vector<16x16xf32>
    %1071 = arith.mulf %1070, %1060 : vector<16x16xf32>
    %1072 = arith.addf %1054, %1071 : vector<16x16xf32>
    %c119_299 = arith.constant 119 : index
    %1073 = memref.load %arg4[%c119_299] : memref<144xf32, #tpu.memory_space<smem>>
    %1074 = vector.broadcast %1073 : f32 to vector<16x16xf32>
    %1075 = arith.mulf %1074, %1060 : vector<16x16xf32>
    %1076 = arith.addf %1058, %1075 : vector<16x16xf32>
    %c1_300 = arith.constant 1 : index
    %c1_301 = arith.constant 1 : index
    %c0_302 = arith.constant 0 : index
    %1077 = vector.load %arg7[%c1_300, %c1_301, %c0_302] : memref<4x18x18xf32, #tpu.memory_space<vmem>>, vector<1x16x16xf32>
    %1078 = vector.shape_cast %1077 : vector<1x16x16xf32> to vector<16x16xf32>
    %c12_303 = arith.constant 12 : index
    %1079 = memref.load %arg4[%c12_303] : memref<144xf32, #tpu.memory_space<smem>>
    %1080 = vector.broadcast %1079 : f32 to vector<16x16xf32>
    %1081 = arith.mulf %1080, %1078 : vector<16x16xf32>
    %1082 = arith.addf %1064, %1081 : vector<16x16xf32>
    %c48_304 = arith.constant 48 : index
    %1083 = memref.load %arg4[%c48_304] : memref<144xf32, #tpu.memory_space<smem>>
    %1084 = vector.broadcast %1083 : f32 to vector<16x16xf32>
    %1085 = arith.mulf %1084, %1078 : vector<16x16xf32>
    %1086 = arith.addf %1068, %1085 : vector<16x16xf32>
    %c84_305 = arith.constant 84 : index
    %1087 = memref.load %arg4[%c84_305] : memref<144xf32, #tpu.memory_space<smem>>
    %1088 = vector.broadcast %1087 : f32 to vector<16x16xf32>
    %1089 = arith.mulf %1088, %1078 : vector<16x16xf32>
    %1090 = arith.addf %1072, %1089 : vector<16x16xf32>
    %c120_306 = arith.constant 120 : index
    %1091 = memref.load %arg4[%c120_306] : memref<144xf32, #tpu.memory_space<smem>>
    %1092 = vector.broadcast %1091 : f32 to vector<16x16xf32>
    %1093 = arith.mulf %1092, %1078 : vector<16x16xf32>
    %1094 = arith.addf %1076, %1093 : vector<16x16xf32>
    %c1_307 = arith.constant 1 : index
    %c1_308 = arith.constant 1 : index
    %c1_309 = arith.constant 1 : index
    %1095 = vector.load %arg7[%c1_307, %c1_308, %c1_309] : memref<4x18x18xf32, #tpu.memory_space<vmem>>, vector<1x16x16xf32>
    %1096 = vector.shape_cast %1095 : vector<1x16x16xf32> to vector<16x16xf32>
    %c13_310 = arith.constant 13 : index
    %1097 = memref.load %arg4[%c13_310] : memref<144xf32, #tpu.memory_space<smem>>
    %1098 = vector.broadcast %1097 : f32 to vector<16x16xf32>
    %1099 = arith.mulf %1098, %1096 : vector<16x16xf32>
    %1100 = arith.addf %1082, %1099 : vector<16x16xf32>
    %c49_311 = arith.constant 49 : index
    %1101 = memref.load %arg4[%c49_311] : memref<144xf32, #tpu.memory_space<smem>>
    %1102 = vector.broadcast %1101 : f32 to vector<16x16xf32>
    %1103 = arith.mulf %1102, %1096 : vector<16x16xf32>
    %1104 = arith.addf %1086, %1103 : vector<16x16xf32>
    %c85_312 = arith.constant 85 : index
    %1105 = memref.load %arg4[%c85_312] : memref<144xf32, #tpu.memory_space<smem>>
    %1106 = vector.broadcast %1105 : f32 to vector<16x16xf32>
    %1107 = arith.mulf %1106, %1096 : vector<16x16xf32>
    %1108 = arith.addf %1090, %1107 : vector<16x16xf32>
    %c121_313 = arith.constant 121 : index
    %1109 = memref.load %arg4[%c121_313] : memref<144xf32, #tpu.memory_space<smem>>
    %1110 = vector.broadcast %1109 : f32 to vector<16x16xf32>
    %1111 = arith.mulf %1110, %1096 : vector<16x16xf32>
    %1112 = arith.addf %1094, %1111 : vector<16x16xf32>
    %c1_314 = arith.constant 1 : index
    %c1_315 = arith.constant 1 : index
    %c2_316 = arith.constant 2 : index
    %1113 = vector.load %arg7[%c1_314, %c1_315, %c2_316] : memref<4x18x18xf32, #tpu.memory_space<vmem>>, vector<1x16x16xf32>
    %1114 = vector.shape_cast %1113 : vector<1x16x16xf32> to vector<16x16xf32>
    %c14_317 = arith.constant 14 : index
    %1115 = memref.load %arg4[%c14_317] : memref<144xf32, #tpu.memory_space<smem>>
    %1116 = vector.broadcast %1115 : f32 to vector<16x16xf32>
    %1117 = arith.mulf %1116, %1114 : vector<16x16xf32>
    %1118 = arith.addf %1100, %1117 : vector<16x16xf32>
    %c50_318 = arith.constant 50 : index
    %1119 = memref.load %arg4[%c50_318] : memref<144xf32, #tpu.memory_space<smem>>
    %1120 = vector.broadcast %1119 : f32 to vector<16x16xf32>
    %1121 = arith.mulf %1120, %1114 : vector<16x16xf32>
    %1122 = arith.addf %1104, %1121 : vector<16x16xf32>
    %c86_319 = arith.constant 86 : index
    %1123 = memref.load %arg4[%c86_319] : memref<144xf32, #tpu.memory_space<smem>>
    %1124 = vector.broadcast %1123 : f32 to vector<16x16xf32>
    %1125 = arith.mulf %1124, %1114 : vector<16x16xf32>
    %1126 = arith.addf %1108, %1125 : vector<16x16xf32>
    %c122_320 = arith.constant 122 : index
    %1127 = memref.load %arg4[%c122_320] : memref<144xf32, #tpu.memory_space<smem>>
    %1128 = vector.broadcast %1127 : f32 to vector<16x16xf32>
    %1129 = arith.mulf %1128, %1114 : vector<16x16xf32>
    %1130 = arith.addf %1112, %1129 : vector<16x16xf32>
    %c1_321 = arith.constant 1 : index
    %c2_322 = arith.constant 2 : index
    %c0_323 = arith.constant 0 : index
    %1131 = vector.load %arg7[%c1_321, %c2_322, %c0_323] : memref<4x18x18xf32, #tpu.memory_space<vmem>>, vector<1x16x16xf32>
    %1132 = vector.shape_cast %1131 : vector<1x16x16xf32> to vector<16x16xf32>
    %c15_324 = arith.constant 15 : index
    %1133 = memref.load %arg4[%c15_324] : memref<144xf32, #tpu.memory_space<smem>>
    %1134 = vector.broadcast %1133 : f32 to vector<16x16xf32>
    %1135 = arith.mulf %1134, %1132 : vector<16x16xf32>
    %1136 = arith.addf %1118, %1135 : vector<16x16xf32>
    %c51_325 = arith.constant 51 : index
    %1137 = memref.load %arg4[%c51_325] : memref<144xf32, #tpu.memory_space<smem>>
    %1138 = vector.broadcast %1137 : f32 to vector<16x16xf32>
    %1139 = arith.mulf %1138, %1132 : vector<16x16xf32>
    %1140 = arith.addf %1122, %1139 : vector<16x16xf32>
    %c87_326 = arith.constant 87 : index
    %1141 = memref.load %arg4[%c87_326] : memref<144xf32, #tpu.memory_space<smem>>
    %1142 = vector.broadcast %1141 : f32 to vector<16x16xf32>
    %1143 = arith.mulf %1142, %1132 : vector<16x16xf32>
    %1144 = arith.addf %1126, %1143 : vector<16x16xf32>
    %c123_327 = arith.constant 123 : index
    %1145 = memref.load %arg4[%c123_327] : memref<144xf32, #tpu.memory_space<smem>>
    %1146 = vector.broadcast %1145 : f32 to vector<16x16xf32>
    %1147 = arith.mulf %1146, %1132 : vector<16x16xf32>
    %1148 = arith.addf %1130, %1147 : vector<16x16xf32>
    %c1_328 = arith.constant 1 : index
    %c2_329 = arith.constant 2 : index
    %c1_330 = arith.constant 1 : index
    %1149 = vector.load %arg7[%c1_328, %c2_329, %c1_330] : memref<4x18x18xf32, #tpu.memory_space<vmem>>, vector<1x16x16xf32>
    %1150 = vector.shape_cast %1149 : vector<1x16x16xf32> to vector<16x16xf32>
    %c16_331 = arith.constant 16 : index
    %1151 = memref.load %arg4[%c16_331] : memref<144xf32, #tpu.memory_space<smem>>
    %1152 = vector.broadcast %1151 : f32 to vector<16x16xf32>
    %1153 = arith.mulf %1152, %1150 : vector<16x16xf32>
    %1154 = arith.addf %1136, %1153 : vector<16x16xf32>
    %c52_332 = arith.constant 52 : index
    %1155 = memref.load %arg4[%c52_332] : memref<144xf32, #tpu.memory_space<smem>>
    %1156 = vector.broadcast %1155 : f32 to vector<16x16xf32>
    %1157 = arith.mulf %1156, %1150 : vector<16x16xf32>
    %1158 = arith.addf %1140, %1157 : vector<16x16xf32>
    %c88_333 = arith.constant 88 : index
    %1159 = memref.load %arg4[%c88_333] : memref<144xf32, #tpu.memory_space<smem>>
    %1160 = vector.broadcast %1159 : f32 to vector<16x16xf32>
    %1161 = arith.mulf %1160, %1150 : vector<16x16xf32>
    %1162 = arith.addf %1144, %1161 : vector<16x16xf32>
    %c124_334 = arith.constant 124 : index
    %1163 = memref.load %arg4[%c124_334] : memref<144xf32, #tpu.memory_space<smem>>
    %1164 = vector.broadcast %1163 : f32 to vector<16x16xf32>
    %1165 = arith.mulf %1164, %1150 : vector<16x16xf32>
    %1166 = arith.addf %1148, %1165 : vector<16x16xf32>
    %c1_335 = arith.constant 1 : index
    %c2_336 = arith.constant 2 : index
    %c2_337 = arith.constant 2 : index
    %1167 = vector.load %arg7[%c1_335, %c2_336, %c2_337] : memref<4x18x18xf32, #tpu.memory_space<vmem>>, vector<1x16x16xf32>
    %1168 = vector.shape_cast %1167 : vector<1x16x16xf32> to vector<16x16xf32>
    %c17_338 = arith.constant 17 : index
    %1169 = memref.load %arg4[%c17_338] : memref<144xf32, #tpu.memory_space<smem>>
    %1170 = vector.broadcast %1169 : f32 to vector<16x16xf32>
    %1171 = arith.mulf %1170, %1168 : vector<16x16xf32>
    %1172 = arith.addf %1154, %1171 : vector<16x16xf32>
    %c53_339 = arith.constant 53 : index
    %1173 = memref.load %arg4[%c53_339] : memref<144xf32, #tpu.memory_space<smem>>
    %1174 = vector.broadcast %1173 : f32 to vector<16x16xf32>
    %1175 = arith.mulf %1174, %1168 : vector<16x16xf32>
    %1176 = arith.addf %1158, %1175 : vector<16x16xf32>
    %c89_340 = arith.constant 89 : index
    %1177 = memref.load %arg4[%c89_340] : memref<144xf32, #tpu.memory_space<smem>>
    %1178 = vector.broadcast %1177 : f32 to vector<16x16xf32>
    %1179 = arith.mulf %1178, %1168 : vector<16x16xf32>
    %1180 = arith.addf %1162, %1179 : vector<16x16xf32>
    %c125_341 = arith.constant 125 : index
    %1181 = memref.load %arg4[%c125_341] : memref<144xf32, #tpu.memory_space<smem>>
    %1182 = vector.broadcast %1181 : f32 to vector<16x16xf32>
    %1183 = arith.mulf %1182, %1168 : vector<16x16xf32>
    %1184 = arith.addf %1166, %1183 : vector<16x16xf32>
    %c2_342 = arith.constant 2 : index
    %c0_343 = arith.constant 0 : index
    %c0_344 = arith.constant 0 : index
    %1185 = vector.load %arg7[%c2_342, %c0_343, %c0_344] : memref<4x18x18xf32, #tpu.memory_space<vmem>>, vector<1x16x16xf32>
    %1186 = vector.shape_cast %1185 : vector<1x16x16xf32> to vector<16x16xf32>
    %c18_345 = arith.constant 18 : index
    %1187 = memref.load %arg4[%c18_345] : memref<144xf32, #tpu.memory_space<smem>>
    %1188 = vector.broadcast %1187 : f32 to vector<16x16xf32>
    %1189 = arith.mulf %1188, %1186 : vector<16x16xf32>
    %1190 = arith.addf %1172, %1189 : vector<16x16xf32>
    %c54_346 = arith.constant 54 : index
    %1191 = memref.load %arg4[%c54_346] : memref<144xf32, #tpu.memory_space<smem>>
    %1192 = vector.broadcast %1191 : f32 to vector<16x16xf32>
    %1193 = arith.mulf %1192, %1186 : vector<16x16xf32>
    %1194 = arith.addf %1176, %1193 : vector<16x16xf32>
    %c90_347 = arith.constant 90 : index
    %1195 = memref.load %arg4[%c90_347] : memref<144xf32, #tpu.memory_space<smem>>
    %1196 = vector.broadcast %1195 : f32 to vector<16x16xf32>
    %1197 = arith.mulf %1196, %1186 : vector<16x16xf32>
    %1198 = arith.addf %1180, %1197 : vector<16x16xf32>
    %c126_348 = arith.constant 126 : index
    %1199 = memref.load %arg4[%c126_348] : memref<144xf32, #tpu.memory_space<smem>>
    %1200 = vector.broadcast %1199 : f32 to vector<16x16xf32>
    %1201 = arith.mulf %1200, %1186 : vector<16x16xf32>
    %1202 = arith.addf %1184, %1201 : vector<16x16xf32>
    %c2_349 = arith.constant 2 : index
    %c0_350 = arith.constant 0 : index
    %c1_351 = arith.constant 1 : index
    %1203 = vector.load %arg7[%c2_349, %c0_350, %c1_351] : memref<4x18x18xf32, #tpu.memory_space<vmem>>, vector<1x16x16xf32>
    %1204 = vector.shape_cast %1203 : vector<1x16x16xf32> to vector<16x16xf32>
    %c19_352 = arith.constant 19 : index
    %1205 = memref.load %arg4[%c19_352] : memref<144xf32, #tpu.memory_space<smem>>
    %1206 = vector.broadcast %1205 : f32 to vector<16x16xf32>
    %1207 = arith.mulf %1206, %1204 : vector<16x16xf32>
    %1208 = arith.addf %1190, %1207 : vector<16x16xf32>
    %c55_353 = arith.constant 55 : index
    %1209 = memref.load %arg4[%c55_353] : memref<144xf32, #tpu.memory_space<smem>>
    %1210 = vector.broadcast %1209 : f32 to vector<16x16xf32>
    %1211 = arith.mulf %1210, %1204 : vector<16x16xf32>
    %1212 = arith.addf %1194, %1211 : vector<16x16xf32>
    %c91_354 = arith.constant 91 : index
    %1213 = memref.load %arg4[%c91_354] : memref<144xf32, #tpu.memory_space<smem>>
    %1214 = vector.broadcast %1213 : f32 to vector<16x16xf32>
    %1215 = arith.mulf %1214, %1204 : vector<16x16xf32>
    %1216 = arith.addf %1198, %1215 : vector<16x16xf32>
    %c127_355 = arith.constant 127 : index
    %1217 = memref.load %arg4[%c127_355] : memref<144xf32, #tpu.memory_space<smem>>
    %1218 = vector.broadcast %1217 : f32 to vector<16x16xf32>
    %1219 = arith.mulf %1218, %1204 : vector<16x16xf32>
    %1220 = arith.addf %1202, %1219 : vector<16x16xf32>
    %c2_356 = arith.constant 2 : index
    %c0_357 = arith.constant 0 : index
    %c2_358 = arith.constant 2 : index
    %1221 = vector.load %arg7[%c2_356, %c0_357, %c2_358] : memref<4x18x18xf32, #tpu.memory_space<vmem>>, vector<1x16x16xf32>
    %1222 = vector.shape_cast %1221 : vector<1x16x16xf32> to vector<16x16xf32>
    %c20_359 = arith.constant 20 : index
    %1223 = memref.load %arg4[%c20_359] : memref<144xf32, #tpu.memory_space<smem>>
    %1224 = vector.broadcast %1223 : f32 to vector<16x16xf32>
    %1225 = arith.mulf %1224, %1222 : vector<16x16xf32>
    %1226 = arith.addf %1208, %1225 : vector<16x16xf32>
    %c56_360 = arith.constant 56 : index
    %1227 = memref.load %arg4[%c56_360] : memref<144xf32, #tpu.memory_space<smem>>
    %1228 = vector.broadcast %1227 : f32 to vector<16x16xf32>
    %1229 = arith.mulf %1228, %1222 : vector<16x16xf32>
    %1230 = arith.addf %1212, %1229 : vector<16x16xf32>
    %c92_361 = arith.constant 92 : index
    %1231 = memref.load %arg4[%c92_361] : memref<144xf32, #tpu.memory_space<smem>>
    %1232 = vector.broadcast %1231 : f32 to vector<16x16xf32>
    %1233 = arith.mulf %1232, %1222 : vector<16x16xf32>
    %1234 = arith.addf %1216, %1233 : vector<16x16xf32>
    %c128_362 = arith.constant 128 : index
    %1235 = memref.load %arg4[%c128_362] : memref<144xf32, #tpu.memory_space<smem>>
    %1236 = vector.broadcast %1235 : f32 to vector<16x16xf32>
    %1237 = arith.mulf %1236, %1222 : vector<16x16xf32>
    %1238 = arith.addf %1220, %1237 : vector<16x16xf32>
    %c2_363 = arith.constant 2 : index
    %c1_364 = arith.constant 1 : index
    %c0_365 = arith.constant 0 : index
    %1239 = vector.load %arg7[%c2_363, %c1_364, %c0_365] : memref<4x18x18xf32, #tpu.memory_space<vmem>>, vector<1x16x16xf32>
    %1240 = vector.shape_cast %1239 : vector<1x16x16xf32> to vector<16x16xf32>
    %c21_366 = arith.constant 21 : index
    %1241 = memref.load %arg4[%c21_366] : memref<144xf32, #tpu.memory_space<smem>>
    %1242 = vector.broadcast %1241 : f32 to vector<16x16xf32>
    %1243 = arith.mulf %1242, %1240 : vector<16x16xf32>
    %1244 = arith.addf %1226, %1243 : vector<16x16xf32>
    %c57_367 = arith.constant 57 : index
    %1245 = memref.load %arg4[%c57_367] : memref<144xf32, #tpu.memory_space<smem>>
    %1246 = vector.broadcast %1245 : f32 to vector<16x16xf32>
    %1247 = arith.mulf %1246, %1240 : vector<16x16xf32>
    %1248 = arith.addf %1230, %1247 : vector<16x16xf32>
    %c93_368 = arith.constant 93 : index
    %1249 = memref.load %arg4[%c93_368] : memref<144xf32, #tpu.memory_space<smem>>
    %1250 = vector.broadcast %1249 : f32 to vector<16x16xf32>
    %1251 = arith.mulf %1250, %1240 : vector<16x16xf32>
    %1252 = arith.addf %1234, %1251 : vector<16x16xf32>
    %c129_369 = arith.constant 129 : index
    %1253 = memref.load %arg4[%c129_369] : memref<144xf32, #tpu.memory_space<smem>>
    %1254 = vector.broadcast %1253 : f32 to vector<16x16xf32>
    %1255 = arith.mulf %1254, %1240 : vector<16x16xf32>
    %1256 = arith.addf %1238, %1255 : vector<16x16xf32>
    %c2_370 = arith.constant 2 : index
    %c1_371 = arith.constant 1 : index
    %c1_372 = arith.constant 1 : index
    %1257 = vector.load %arg7[%c2_370, %c1_371, %c1_372] : memref<4x18x18xf32, #tpu.memory_space<vmem>>, vector<1x16x16xf32>
    %1258 = vector.shape_cast %1257 : vector<1x16x16xf32> to vector<16x16xf32>
    %c22_373 = arith.constant 22 : index
    %1259 = memref.load %arg4[%c22_373] : memref<144xf32, #tpu.memory_space<smem>>
    %1260 = vector.broadcast %1259 : f32 to vector<16x16xf32>
    %1261 = arith.mulf %1260, %1258 : vector<16x16xf32>
    %1262 = arith.addf %1244, %1261 : vector<16x16xf32>
    %c58_374 = arith.constant 58 : index
    %1263 = memref.load %arg4[%c58_374] : memref<144xf32, #tpu.memory_space<smem>>
    %1264 = vector.broadcast %1263 : f32 to vector<16x16xf32>
    %1265 = arith.mulf %1264, %1258 : vector<16x16xf32>
    %1266 = arith.addf %1248, %1265 : vector<16x16xf32>
    %c94_375 = arith.constant 94 : index
    %1267 = memref.load %arg4[%c94_375] : memref<144xf32, #tpu.memory_space<smem>>
    %1268 = vector.broadcast %1267 : f32 to vector<16x16xf32>
    %1269 = arith.mulf %1268, %1258 : vector<16x16xf32>
    %1270 = arith.addf %1252, %1269 : vector<16x16xf32>
    %c130_376 = arith.constant 130 : index
    %1271 = memref.load %arg4[%c130_376] : memref<144xf32, #tpu.memory_space<smem>>
    %1272 = vector.broadcast %1271 : f32 to vector<16x16xf32>
    %1273 = arith.mulf %1272, %1258 : vector<16x16xf32>
    %1274 = arith.addf %1256, %1273 : vector<16x16xf32>
    %c2_377 = arith.constant 2 : index
    %c1_378 = arith.constant 1 : index
    %c2_379 = arith.constant 2 : index
    %1275 = vector.load %arg7[%c2_377, %c1_378, %c2_379] : memref<4x18x18xf32, #tpu.memory_space<vmem>>, vector<1x16x16xf32>
    %1276 = vector.shape_cast %1275 : vector<1x16x16xf32> to vector<16x16xf32>
    %c23_380 = arith.constant 23 : index
    %1277 = memref.load %arg4[%c23_380] : memref<144xf32, #tpu.memory_space<smem>>
    %1278 = vector.broadcast %1277 : f32 to vector<16x16xf32>
    %1279 = arith.mulf %1278, %1276 : vector<16x16xf32>
    %1280 = arith.addf %1262, %1279 : vector<16x16xf32>
    %c59_381 = arith.constant 59 : index
    %1281 = memref.load %arg4[%c59_381] : memref<144xf32, #tpu.memory_space<smem>>
    %1282 = vector.broadcast %1281 : f32 to vector<16x16xf32>
    %1283 = arith.mulf %1282, %1276 : vector<16x16xf32>
    %1284 = arith.addf %1266, %1283 : vector<16x16xf32>
    %c95_382 = arith.constant 95 : index
    %1285 = memref.load %arg4[%c95_382] : memref<144xf32, #tpu.memory_space<smem>>
    %1286 = vector.broadcast %1285 : f32 to vector<16x16xf32>
    %1287 = arith.mulf %1286, %1276 : vector<16x16xf32>
    %1288 = arith.addf %1270, %1287 : vector<16x16xf32>
    %c131_383 = arith.constant 131 : index
    %1289 = memref.load %arg4[%c131_383] : memref<144xf32, #tpu.memory_space<smem>>
    %1290 = vector.broadcast %1289 : f32 to vector<16x16xf32>
    %1291 = arith.mulf %1290, %1276 : vector<16x16xf32>
    %1292 = arith.addf %1274, %1291 : vector<16x16xf32>
    %c2_384 = arith.constant 2 : index
    %c2_385 = arith.constant 2 : index
    %c0_386 = arith.constant 0 : index
    %1293 = vector.load %arg7[%c2_384, %c2_385, %c0_386] : memref<4x18x18xf32, #tpu.memory_space<vmem>>, vector<1x16x16xf32>
    %1294 = vector.shape_cast %1293 : vector<1x16x16xf32> to vector<16x16xf32>
    %c24_387 = arith.constant 24 : index
    %1295 = memref.load %arg4[%c24_387] : memref<144xf32, #tpu.memory_space<smem>>
    %1296 = vector.broadcast %1295 : f32 to vector<16x16xf32>
    %1297 = arith.mulf %1296, %1294 : vector<16x16xf32>
    %1298 = arith.addf %1280, %1297 : vector<16x16xf32>
    %c60_388 = arith.constant 60 : index
    %1299 = memref.load %arg4[%c60_388] : memref<144xf32, #tpu.memory_space<smem>>
    %1300 = vector.broadcast %1299 : f32 to vector<16x16xf32>
    %1301 = arith.mulf %1300, %1294 : vector<16x16xf32>
    %1302 = arith.addf %1284, %1301 : vector<16x16xf32>
    %c96_389 = arith.constant 96 : index
    %1303 = memref.load %arg4[%c96_389] : memref<144xf32, #tpu.memory_space<smem>>
    %1304 = vector.broadcast %1303 : f32 to vector<16x16xf32>
    %1305 = arith.mulf %1304, %1294 : vector<16x16xf32>
    %1306 = arith.addf %1288, %1305 : vector<16x16xf32>
    %c132_390 = arith.constant 132 : index
    %1307 = memref.load %arg4[%c132_390] : memref<144xf32, #tpu.memory_space<smem>>
    %1308 = vector.broadcast %1307 : f32 to vector<16x16xf32>
    %1309 = arith.mulf %1308, %1294 : vector<16x16xf32>
    %1310 = arith.addf %1292, %1309 : vector<16x16xf32>
    %c2_391 = arith.constant 2 : index
    %c2_392 = arith.constant 2 : index
    %c1_393 = arith.constant 1 : index
    %1311 = vector.load %arg7[%c2_391, %c2_392, %c1_393] : memref<4x18x18xf32, #tpu.memory_space<vmem>>, vector<1x16x16xf32>
    %1312 = vector.shape_cast %1311 : vector<1x16x16xf32> to vector<16x16xf32>
    %c25_394 = arith.constant 25 : index
    %1313 = memref.load %arg4[%c25_394] : memref<144xf32, #tpu.memory_space<smem>>
    %1314 = vector.broadcast %1313 : f32 to vector<16x16xf32>
    %1315 = arith.mulf %1314, %1312 : vector<16x16xf32>
    %1316 = arith.addf %1298, %1315 : vector<16x16xf32>
    %c61_395 = arith.constant 61 : index
    %1317 = memref.load %arg4[%c61_395] : memref<144xf32, #tpu.memory_space<smem>>
    %1318 = vector.broadcast %1317 : f32 to vector<16x16xf32>
    %1319 = arith.mulf %1318, %1312 : vector<16x16xf32>
    %1320 = arith.addf %1302, %1319 : vector<16x16xf32>
    %c97_396 = arith.constant 97 : index
    %1321 = memref.load %arg4[%c97_396] : memref<144xf32, #tpu.memory_space<smem>>
    %1322 = vector.broadcast %1321 : f32 to vector<16x16xf32>
    %1323 = arith.mulf %1322, %1312 : vector<16x16xf32>
    %1324 = arith.addf %1306, %1323 : vector<16x16xf32>
    %c133_397 = arith.constant 133 : index
    %1325 = memref.load %arg4[%c133_397] : memref<144xf32, #tpu.memory_space<smem>>
    %1326 = vector.broadcast %1325 : f32 to vector<16x16xf32>
    %1327 = arith.mulf %1326, %1312 : vector<16x16xf32>
    %1328 = arith.addf %1310, %1327 : vector<16x16xf32>
    %c2_398 = arith.constant 2 : index
    %c2_399 = arith.constant 2 : index
    %c2_400 = arith.constant 2 : index
    %1329 = vector.load %arg7[%c2_398, %c2_399, %c2_400] : memref<4x18x18xf32, #tpu.memory_space<vmem>>, vector<1x16x16xf32>
    %1330 = vector.shape_cast %1329 : vector<1x16x16xf32> to vector<16x16xf32>
    %c26_401 = arith.constant 26 : index
    %1331 = memref.load %arg4[%c26_401] : memref<144xf32, #tpu.memory_space<smem>>
    %1332 = vector.broadcast %1331 : f32 to vector<16x16xf32>
    %1333 = arith.mulf %1332, %1330 : vector<16x16xf32>
    %1334 = arith.addf %1316, %1333 : vector<16x16xf32>
    %c62_402 = arith.constant 62 : index
    %1335 = memref.load %arg4[%c62_402] : memref<144xf32, #tpu.memory_space<smem>>
    %1336 = vector.broadcast %1335 : f32 to vector<16x16xf32>
    %1337 = arith.mulf %1336, %1330 : vector<16x16xf32>
    %1338 = arith.addf %1320, %1337 : vector<16x16xf32>
    %c98_403 = arith.constant 98 : index
    %1339 = memref.load %arg4[%c98_403] : memref<144xf32, #tpu.memory_space<smem>>
    %1340 = vector.broadcast %1339 : f32 to vector<16x16xf32>
    %1341 = arith.mulf %1340, %1330 : vector<16x16xf32>
    %1342 = arith.addf %1324, %1341 : vector<16x16xf32>
    %c134_404 = arith.constant 134 : index
    %1343 = memref.load %arg4[%c134_404] : memref<144xf32, #tpu.memory_space<smem>>
    %1344 = vector.broadcast %1343 : f32 to vector<16x16xf32>
    %1345 = arith.mulf %1344, %1330 : vector<16x16xf32>
    %1346 = arith.addf %1328, %1345 : vector<16x16xf32>
    %c3_405 = arith.constant 3 : index
    %c0_406 = arith.constant 0 : index
    %c0_407 = arith.constant 0 : index
    %1347 = vector.load %arg7[%c3_405, %c0_406, %c0_407] : memref<4x18x18xf32, #tpu.memory_space<vmem>>, vector<1x16x16xf32>
    %1348 = vector.shape_cast %1347 : vector<1x16x16xf32> to vector<16x16xf32>
    %c27_408 = arith.constant 27 : index
    %1349 = memref.load %arg4[%c27_408] : memref<144xf32, #tpu.memory_space<smem>>
    %1350 = vector.broadcast %1349 : f32 to vector<16x16xf32>
    %1351 = arith.mulf %1350, %1348 : vector<16x16xf32>
    %1352 = arith.addf %1334, %1351 : vector<16x16xf32>
    %c63_409 = arith.constant 63 : index
    %1353 = memref.load %arg4[%c63_409] : memref<144xf32, #tpu.memory_space<smem>>
    %1354 = vector.broadcast %1353 : f32 to vector<16x16xf32>
    %1355 = arith.mulf %1354, %1348 : vector<16x16xf32>
    %1356 = arith.addf %1338, %1355 : vector<16x16xf32>
    %c99_410 = arith.constant 99 : index
    %1357 = memref.load %arg4[%c99_410] : memref<144xf32, #tpu.memory_space<smem>>
    %1358 = vector.broadcast %1357 : f32 to vector<16x16xf32>
    %1359 = arith.mulf %1358, %1348 : vector<16x16xf32>
    %1360 = arith.addf %1342, %1359 : vector<16x16xf32>
    %c135_411 = arith.constant 135 : index
    %1361 = memref.load %arg4[%c135_411] : memref<144xf32, #tpu.memory_space<smem>>
    %1362 = vector.broadcast %1361 : f32 to vector<16x16xf32>
    %1363 = arith.mulf %1362, %1348 : vector<16x16xf32>
    %1364 = arith.addf %1346, %1363 : vector<16x16xf32>
    %c3_412 = arith.constant 3 : index
    %c0_413 = arith.constant 0 : index
    %c1_414 = arith.constant 1 : index
    %1365 = vector.load %arg7[%c3_412, %c0_413, %c1_414] : memref<4x18x18xf32, #tpu.memory_space<vmem>>, vector<1x16x16xf32>
    %1366 = vector.shape_cast %1365 : vector<1x16x16xf32> to vector<16x16xf32>
    %c28_415 = arith.constant 28 : index
    %1367 = memref.load %arg4[%c28_415] : memref<144xf32, #tpu.memory_space<smem>>
    %1368 = vector.broadcast %1367 : f32 to vector<16x16xf32>
    %1369 = arith.mulf %1368, %1366 : vector<16x16xf32>
    %1370 = arith.addf %1352, %1369 : vector<16x16xf32>
    %c64_416 = arith.constant 64 : index
    %1371 = memref.load %arg4[%c64_416] : memref<144xf32, #tpu.memory_space<smem>>
    %1372 = vector.broadcast %1371 : f32 to vector<16x16xf32>
    %1373 = arith.mulf %1372, %1366 : vector<16x16xf32>
    %1374 = arith.addf %1356, %1373 : vector<16x16xf32>
    %c100_417 = arith.constant 100 : index
    %1375 = memref.load %arg4[%c100_417] : memref<144xf32, #tpu.memory_space<smem>>
    %1376 = vector.broadcast %1375 : f32 to vector<16x16xf32>
    %1377 = arith.mulf %1376, %1366 : vector<16x16xf32>
    %1378 = arith.addf %1360, %1377 : vector<16x16xf32>
    %c136_418 = arith.constant 136 : index
    %1379 = memref.load %arg4[%c136_418] : memref<144xf32, #tpu.memory_space<smem>>
    %1380 = vector.broadcast %1379 : f32 to vector<16x16xf32>
    %1381 = arith.mulf %1380, %1366 : vector<16x16xf32>
    %1382 = arith.addf %1364, %1381 : vector<16x16xf32>
    %c3_419 = arith.constant 3 : index
    %c0_420 = arith.constant 0 : index
    %c2_421 = arith.constant 2 : index
    %1383 = vector.load %arg7[%c3_419, %c0_420, %c2_421] : memref<4x18x18xf32, #tpu.memory_space<vmem>>, vector<1x16x16xf32>
    %1384 = vector.shape_cast %1383 : vector<1x16x16xf32> to vector<16x16xf32>
    %c29_422 = arith.constant 29 : index
    %1385 = memref.load %arg4[%c29_422] : memref<144xf32, #tpu.memory_space<smem>>
    %1386 = vector.broadcast %1385 : f32 to vector<16x16xf32>
    %1387 = arith.mulf %1386, %1384 : vector<16x16xf32>
    %1388 = arith.addf %1370, %1387 : vector<16x16xf32>
    %c65_423 = arith.constant 65 : index
    %1389 = memref.load %arg4[%c65_423] : memref<144xf32, #tpu.memory_space<smem>>
    %1390 = vector.broadcast %1389 : f32 to vector<16x16xf32>
    %1391 = arith.mulf %1390, %1384 : vector<16x16xf32>
    %1392 = arith.addf %1374, %1391 : vector<16x16xf32>
    %c101_424 = arith.constant 101 : index
    %1393 = memref.load %arg4[%c101_424] : memref<144xf32, #tpu.memory_space<smem>>
    %1394 = vector.broadcast %1393 : f32 to vector<16x16xf32>
    %1395 = arith.mulf %1394, %1384 : vector<16x16xf32>
    %1396 = arith.addf %1378, %1395 : vector<16x16xf32>
    %c137_425 = arith.constant 137 : index
    %1397 = memref.load %arg4[%c137_425] : memref<144xf32, #tpu.memory_space<smem>>
    %1398 = vector.broadcast %1397 : f32 to vector<16x16xf32>
    %1399 = arith.mulf %1398, %1384 : vector<16x16xf32>
    %1400 = arith.addf %1382, %1399 : vector<16x16xf32>
    %c3_426 = arith.constant 3 : index
    %c1_427 = arith.constant 1 : index
    %c0_428 = arith.constant 0 : index
    %1401 = vector.load %arg7[%c3_426, %c1_427, %c0_428] : memref<4x18x18xf32, #tpu.memory_space<vmem>>, vector<1x16x16xf32>
    %1402 = vector.shape_cast %1401 : vector<1x16x16xf32> to vector<16x16xf32>
    %c30_429 = arith.constant 30 : index
    %1403 = memref.load %arg4[%c30_429] : memref<144xf32, #tpu.memory_space<smem>>
    %1404 = vector.broadcast %1403 : f32 to vector<16x16xf32>
    %1405 = arith.mulf %1404, %1402 : vector<16x16xf32>
    %1406 = arith.addf %1388, %1405 : vector<16x16xf32>
    %c66_430 = arith.constant 66 : index
    %1407 = memref.load %arg4[%c66_430] : memref<144xf32, #tpu.memory_space<smem>>
    %1408 = vector.broadcast %1407 : f32 to vector<16x16xf32>
    %1409 = arith.mulf %1408, %1402 : vector<16x16xf32>
    %1410 = arith.addf %1392, %1409 : vector<16x16xf32>
    %c102_431 = arith.constant 102 : index
    %1411 = memref.load %arg4[%c102_431] : memref<144xf32, #tpu.memory_space<smem>>
    %1412 = vector.broadcast %1411 : f32 to vector<16x16xf32>
    %1413 = arith.mulf %1412, %1402 : vector<16x16xf32>
    %1414 = arith.addf %1396, %1413 : vector<16x16xf32>
    %c138_432 = arith.constant 138 : index
    %1415 = memref.load %arg4[%c138_432] : memref<144xf32, #tpu.memory_space<smem>>
    %1416 = vector.broadcast %1415 : f32 to vector<16x16xf32>
    %1417 = arith.mulf %1416, %1402 : vector<16x16xf32>
    %1418 = arith.addf %1400, %1417 : vector<16x16xf32>
    %c3_433 = arith.constant 3 : index
    %c1_434 = arith.constant 1 : index
    %c1_435 = arith.constant 1 : index
    %1419 = vector.load %arg7[%c3_433, %c1_434, %c1_435] : memref<4x18x18xf32, #tpu.memory_space<vmem>>, vector<1x16x16xf32>
    %1420 = vector.shape_cast %1419 : vector<1x16x16xf32> to vector<16x16xf32>
    %c31_436 = arith.constant 31 : index
    %1421 = memref.load %arg4[%c31_436] : memref<144xf32, #tpu.memory_space<smem>>
    %1422 = vector.broadcast %1421 : f32 to vector<16x16xf32>
    %1423 = arith.mulf %1422, %1420 : vector<16x16xf32>
    %1424 = arith.addf %1406, %1423 : vector<16x16xf32>
    %c67_437 = arith.constant 67 : index
    %1425 = memref.load %arg4[%c67_437] : memref<144xf32, #tpu.memory_space<smem>>
    %1426 = vector.broadcast %1425 : f32 to vector<16x16xf32>
    %1427 = arith.mulf %1426, %1420 : vector<16x16xf32>
    %1428 = arith.addf %1410, %1427 : vector<16x16xf32>
    %c103_438 = arith.constant 103 : index
    %1429 = memref.load %arg4[%c103_438] : memref<144xf32, #tpu.memory_space<smem>>
    %1430 = vector.broadcast %1429 : f32 to vector<16x16xf32>
    %1431 = arith.mulf %1430, %1420 : vector<16x16xf32>
    %1432 = arith.addf %1414, %1431 : vector<16x16xf32>
    %c139_439 = arith.constant 139 : index
    %1433 = memref.load %arg4[%c139_439] : memref<144xf32, #tpu.memory_space<smem>>
    %1434 = vector.broadcast %1433 : f32 to vector<16x16xf32>
    %1435 = arith.mulf %1434, %1420 : vector<16x16xf32>
    %1436 = arith.addf %1418, %1435 : vector<16x16xf32>
    %c3_440 = arith.constant 3 : index
    %c1_441 = arith.constant 1 : index
    %c2_442 = arith.constant 2 : index
    %1437 = vector.load %arg7[%c3_440, %c1_441, %c2_442] : memref<4x18x18xf32, #tpu.memory_space<vmem>>, vector<1x16x16xf32>
    %1438 = vector.shape_cast %1437 : vector<1x16x16xf32> to vector<16x16xf32>
    %c32_443 = arith.constant 32 : index
    %1439 = memref.load %arg4[%c32_443] : memref<144xf32, #tpu.memory_space<smem>>
    %1440 = vector.broadcast %1439 : f32 to vector<16x16xf32>
    %1441 = arith.mulf %1440, %1438 : vector<16x16xf32>
    %1442 = arith.addf %1424, %1441 : vector<16x16xf32>
    %c68_444 = arith.constant 68 : index
    %1443 = memref.load %arg4[%c68_444] : memref<144xf32, #tpu.memory_space<smem>>
    %1444 = vector.broadcast %1443 : f32 to vector<16x16xf32>
    %1445 = arith.mulf %1444, %1438 : vector<16x16xf32>
    %1446 = arith.addf %1428, %1445 : vector<16x16xf32>
    %c104_445 = arith.constant 104 : index
    %1447 = memref.load %arg4[%c104_445] : memref<144xf32, #tpu.memory_space<smem>>
    %1448 = vector.broadcast %1447 : f32 to vector<16x16xf32>
    %1449 = arith.mulf %1448, %1438 : vector<16x16xf32>
    %1450 = arith.addf %1432, %1449 : vector<16x16xf32>
    %c140_446 = arith.constant 140 : index
    %1451 = memref.load %arg4[%c140_446] : memref<144xf32, #tpu.memory_space<smem>>
    %1452 = vector.broadcast %1451 : f32 to vector<16x16xf32>
    %1453 = arith.mulf %1452, %1438 : vector<16x16xf32>
    %1454 = arith.addf %1436, %1453 : vector<16x16xf32>
    %c3_447 = arith.constant 3 : index
    %c2_448 = arith.constant 2 : index
    %c0_449 = arith.constant 0 : index
    %1455 = vector.load %arg7[%c3_447, %c2_448, %c0_449] : memref<4x18x18xf32, #tpu.memory_space<vmem>>, vector<1x16x16xf32>
    %1456 = vector.shape_cast %1455 : vector<1x16x16xf32> to vector<16x16xf32>
    %c33_450 = arith.constant 33 : index
    %1457 = memref.load %arg4[%c33_450] : memref<144xf32, #tpu.memory_space<smem>>
    %1458 = vector.broadcast %1457 : f32 to vector<16x16xf32>
    %1459 = arith.mulf %1458, %1456 : vector<16x16xf32>
    %1460 = arith.addf %1442, %1459 : vector<16x16xf32>
    %c69_451 = arith.constant 69 : index
    %1461 = memref.load %arg4[%c69_451] : memref<144xf32, #tpu.memory_space<smem>>
    %1462 = vector.broadcast %1461 : f32 to vector<16x16xf32>
    %1463 = arith.mulf %1462, %1456 : vector<16x16xf32>
    %1464 = arith.addf %1446, %1463 : vector<16x16xf32>
    %c105_452 = arith.constant 105 : index
    %1465 = memref.load %arg4[%c105_452] : memref<144xf32, #tpu.memory_space<smem>>
    %1466 = vector.broadcast %1465 : f32 to vector<16x16xf32>
    %1467 = arith.mulf %1466, %1456 : vector<16x16xf32>
    %1468 = arith.addf %1450, %1467 : vector<16x16xf32>
    %c141_453 = arith.constant 141 : index
    %1469 = memref.load %arg4[%c141_453] : memref<144xf32, #tpu.memory_space<smem>>
    %1470 = vector.broadcast %1469 : f32 to vector<16x16xf32>
    %1471 = arith.mulf %1470, %1456 : vector<16x16xf32>
    %1472 = arith.addf %1454, %1471 : vector<16x16xf32>
    %c3_454 = arith.constant 3 : index
    %c2_455 = arith.constant 2 : index
    %c1_456 = arith.constant 1 : index
    %1473 = vector.load %arg7[%c3_454, %c2_455, %c1_456] : memref<4x18x18xf32, #tpu.memory_space<vmem>>, vector<1x16x16xf32>
    %1474 = vector.shape_cast %1473 : vector<1x16x16xf32> to vector<16x16xf32>
    %c34_457 = arith.constant 34 : index
    %1475 = memref.load %arg4[%c34_457] : memref<144xf32, #tpu.memory_space<smem>>
    %1476 = vector.broadcast %1475 : f32 to vector<16x16xf32>
    %1477 = arith.mulf %1476, %1474 : vector<16x16xf32>
    %1478 = arith.addf %1460, %1477 : vector<16x16xf32>
    %c70_458 = arith.constant 70 : index
    %1479 = memref.load %arg4[%c70_458] : memref<144xf32, #tpu.memory_space<smem>>
    %1480 = vector.broadcast %1479 : f32 to vector<16x16xf32>
    %1481 = arith.mulf %1480, %1474 : vector<16x16xf32>
    %1482 = arith.addf %1464, %1481 : vector<16x16xf32>
    %c106_459 = arith.constant 106 : index
    %1483 = memref.load %arg4[%c106_459] : memref<144xf32, #tpu.memory_space<smem>>
    %1484 = vector.broadcast %1483 : f32 to vector<16x16xf32>
    %1485 = arith.mulf %1484, %1474 : vector<16x16xf32>
    %1486 = arith.addf %1468, %1485 : vector<16x16xf32>
    %c142_460 = arith.constant 142 : index
    %1487 = memref.load %arg4[%c142_460] : memref<144xf32, #tpu.memory_space<smem>>
    %1488 = vector.broadcast %1487 : f32 to vector<16x16xf32>
    %1489 = arith.mulf %1488, %1474 : vector<16x16xf32>
    %1490 = arith.addf %1472, %1489 : vector<16x16xf32>
    %c3_461 = arith.constant 3 : index
    %c2_462 = arith.constant 2 : index
    %c2_463 = arith.constant 2 : index
    %1491 = vector.load %arg7[%c3_461, %c2_462, %c2_463] : memref<4x18x18xf32, #tpu.memory_space<vmem>>, vector<1x16x16xf32>
    %1492 = vector.shape_cast %1491 : vector<1x16x16xf32> to vector<16x16xf32>
    %c35_464 = arith.constant 35 : index
    %1493 = memref.load %arg4[%c35_464] : memref<144xf32, #tpu.memory_space<smem>>
    %1494 = vector.broadcast %1493 : f32 to vector<16x16xf32>
    %1495 = arith.mulf %1494, %1492 : vector<16x16xf32>
    %1496 = arith.addf %1478, %1495 : vector<16x16xf32>
    %c71_465 = arith.constant 71 : index
    %1497 = memref.load %arg4[%c71_465] : memref<144xf32, #tpu.memory_space<smem>>
    %1498 = vector.broadcast %1497 : f32 to vector<16x16xf32>
    %1499 = arith.mulf %1498, %1492 : vector<16x16xf32>
    %1500 = arith.addf %1482, %1499 : vector<16x16xf32>
    %c107_466 = arith.constant 107 : index
    %1501 = memref.load %arg4[%c107_466] : memref<144xf32, #tpu.memory_space<smem>>
    %1502 = vector.broadcast %1501 : f32 to vector<16x16xf32>
    %1503 = arith.mulf %1502, %1492 : vector<16x16xf32>
    %1504 = arith.addf %1486, %1503 : vector<16x16xf32>
    %c143_467 = arith.constant 143 : index
    %1505 = memref.load %arg4[%c143_467] : memref<144xf32, #tpu.memory_space<smem>>
    %1506 = vector.broadcast %1505 : f32 to vector<16x16xf32>
    %1507 = arith.mulf %1506, %1492 : vector<16x16xf32>
    %1508 = arith.addf %1490, %1507 : vector<16x16xf32>
    %c0_468 = arith.constant 0 : index
    %c0_469 = arith.constant 0 : index
    %c0_470 = arith.constant 0 : index
    %c0_471 = arith.constant 0 : index
    %1509 = vector.load %arg1[%c0_468, %c0_469, %c0_470, %c0_471] : memref<1x4x16x16xf32, #tpu.memory_space<vmem>>, vector<1x1x16x16xf32>
    %1510 = vector.shape_cast %1509 : vector<1x1x16x16xf32> to vector<16x16xf32>
    %1511 = arith.addf %1496, %1510 : vector<16x16xf32>
    %c0_472 = arith.constant 0 : index
    %c0_473 = arith.constant 0 : index
    %c0_474 = arith.constant 0 : index
    %c0_475 = arith.constant 0 : index
    %1512 = vector.load %arg6[%c0_472, %c0_473, %c0_474, %c0_475] : memref<1x4x16x16xf32, #tpu.memory_space<vmem>>, vector<1x1x16x16xf32>
    %1513 = vector.shape_cast %1512 : vector<1x1x16x16xf32> to vector<16x16xf32>
    %1514 = vector.shape_cast %1511 : vector<16x16xf32> to vector<1x1x16x16xf32>
    tpu.vector_store %arg6[%c0_472, %c0_473, %c0_474, %c0_475], %1514 {strides = array<i32>} : memref<1x4x16x16xf32, #tpu.memory_space<vmem>>, vector<1x1x16x16xf32>,
    %c0_476 = arith.constant 0 : index
    %c1_477 = arith.constant 1 : index
    %c0_478 = arith.constant 0 : index
    %c0_479 = arith.constant 0 : index
    %1515 = vector.load %arg1[%c0_476, %c1_477, %c0_478, %c0_479] : memref<1x4x16x16xf32, #tpu.memory_space<vmem>>, vector<1x1x16x16xf32>
    %1516 = vector.shape_cast %1515 : vector<1x1x16x16xf32> to vector<16x16xf32>
    %1517 = arith.addf %1500, %1516 : vector<16x16xf32>
    %c0_480 = arith.constant 0 : index
    %c1_481 = arith.constant 1 : index
    %c0_482 = arith.constant 0 : index
    %c0_483 = arith.constant 0 : index
    %1518 = vector.load %arg6[%c0_480, %c1_481, %c0_482, %c0_483] : memref<1x4x16x16xf32, #tpu.memory_space<vmem>>, vector<1x1x16x16xf32>
    %1519 = vector.shape_cast %1518 : vector<1x1x16x16xf32> to vector<16x16xf32>
    %1520 = vector.shape_cast %1517 : vector<16x16xf32> to vector<1x1x16x16xf32>
    tpu.vector_store %arg6[%c0_480, %c1_481, %c0_482, %c0_483], %1520 {strides = array<i32>} : memref<1x4x16x16xf32, #tpu.memory_space<vmem>>, vector<1x1x16x16xf32>,
    %c0_484 = arith.constant 0 : index
    %c2_485 = arith.constant 2 : index
    %c0_486 = arith.constant 0 : index
    %c0_487 = arith.constant 0 : index
    %1521 = vector.load %arg1[%c0_484, %c2_485, %c0_486, %c0_487] : memref<1x4x16x16xf32, #tpu.memory_space<vmem>>, vector<1x1x16x16xf32>
    %1522 = vector.shape_cast %1521 : vector<1x1x16x16xf32> to vector<16x16xf32>
    %1523 = arith.addf %1504, %1522 : vector<16x16xf32>
    %c0_488 = arith.constant 0 : index
    %c2_489 = arith.constant 2 : index
    %c0_490 = arith.constant 0 : index
    %c0_491 = arith.constant 0 : index
    %1524 = vector.load %arg6[%c0_488, %c2_489, %c0_490, %c0_491] : memref<1x4x16x16xf32, #tpu.memory_space<vmem>>, vector<1x1x16x16xf32>
    %1525 = vector.shape_cast %1524 : vector<1x1x16x16xf32> to vector<16x16xf32>
    %1526 = vector.shape_cast %1523 : vector<16x16xf32> to vector<1x1x16x16xf32>
    tpu.vector_store %arg6[%c0_488, %c2_489, %c0_490, %c0_491], %1526 {strides = array<i32>} : memref<1x4x16x16xf32, #tpu.memory_space<vmem>>, vector<1x1x16x16xf32>,
    %c0_492 = arith.constant 0 : index
    %c3_493 = arith.constant 3 : index
    %c0_494 = arith.constant 0 : index
    %c0_495 = arith.constant 0 : index
    %1527 = vector.load %arg1[%c0_492, %c3_493, %c0_494, %c0_495] : memref<1x4x16x16xf32, #tpu.memory_space<vmem>>, vector<1x1x16x16xf32>
    %1528 = vector.shape_cast %1527 : vector<1x1x16x16xf32> to vector<16x16xf32>
    %1529 = arith.addf %1508, %1528 : vector<16x16xf32>
    %c0_496 = arith.constant 0 : index
    %c3_497 = arith.constant 3 : index
    %c0_498 = arith.constant 0 : index
    %c0_499 = arith.constant 0 : index
    %1530 = vector.load %arg6[%c0_496, %c3_497, %c0_498, %c0_499] : memref<1x4x16x16xf32, #tpu.memory_space<vmem>>, vector<1x1x16x16xf32>
    %1531 = vector.shape_cast %1530 : vector<1x1x16x16xf32> to vector<16x16xf32>
    %1532 = vector.shape_cast %1529 : vector<16x16xf32> to vector<1x1x16x16xf32>
    tpu.vector_store %arg6[%c0_496, %c3_497, %c0_498, %c0_499], %1532 {strides = array<i32>} : memref<1x4x16x16xf32, #tpu.memory_space<vmem>>, vector<1x1x16x16xf32>,
    return
  }
  func.func @transform_0(%arg0: i32) -> (i32, i32, i32, i32) {
    %c0_i32 = arith.constant 0 : i32
    %c0_i32_0 = arith.constant 0 : i32
    %c0_i32_1 = arith.constant 0 : i32
    %c0_i32_2 = arith.constant 0 : i32
    return %arg0, %c0_i32, %c0_i32_0, %c0_i32_1 : i32, i32, i32, i32
  }
  func.func @transform_1(%arg0: i32) -> i32 {
    %c0_i32 = arith.constant 0 : i32
    %c0_i32_0 = arith.constant 0 : i32
    return %c0_i32 : i32
  }
  func.func @transform_2(%arg0: i32) -> i32 {
    %c0_i32 = arith.constant 0 : i32
    %c0_i32_0 = arith.constant 0 : i32
    return %c0_i32 : i32
  }
  func.func @transform_3(%arg0: i32) -> i32 {
    %c0_i32 = arith.constant 0 : i32
    %c0_i32_0 = arith.constant 0 : i32
    return %c0_i32 : i32
  }
  func.func @transform_4(%arg0: i32) -> i32 {
    %c0_i32 = arith.constant 0 : i32
    %c0_i32_0 = arith.constant 0 : i32
    return %c0_i32 : i32
  }
  func.func @transform_5(%arg0: i32) -> (i32, i32, i32, i32) {
    %c0_i32 = arith.constant 0 : i32
    %c0_i32_0 = arith.constant 0 : i32
    %c0_i32_1 = arith.constant 0 : i32
    %c0_i32_2 = arith.constant 0 : i32
    return %arg0, %c0_i32, %c0_i32_0, %c0_i32_1 : i32, i32, i32, i32
  }
}

</mosaic_0001>

<llo_original>
// kernel: tpu_custom_call.1
$region0: #{tpu_custom_call.1}
  #allocation0 [shape = 'u32[]', space=smem, size = 0x4, offset = 0x4, fixed_abs, tag = 'smem constant byte address 0x4 - core index']
  #allocation1 [shape = 'u32[144,128]{1,0:T(1,128)}', space=vmem, size = 0x12000, scoped, tag = 'internal scratch']
  #allocation2 [shape = 'f32[4,18,18]{2,1,0:T(8,128)}', space=vmem, size = 0xc000, scoped, tag = 'scratch operand']
  %s0 = inlined_call_operand.hbm [shape: f32[2,4,16,16], index: 0, kind: input, shape index: {}]
  %s1 = inlined_call_operand.vmem [shape: f32[144], index: 1, kind: input, shape index: {}]
  %s2 = inlined_call_operand.vmem [shape: f32[4], index: 2, kind: input, shape index: {}]
  %s3 = inlined_call_operand.vmem [shape: f32[144], index: 3, kind: input, shape index: {}]
  %s4 = inlined_call_operand.vmem [shape: f32[4], index: 4, kind: input, shape index: {}]
  %s5 = inlined_call_operand.hbm [shape: f32[2,4,16,16], index: 5, kind: output, shape index: {}]
  %s6 = sld [smem:[#allocation0]]
  $region73: #{tpu_custom_call.1} parent=0
    _
  %s8 = ssub.s32 1, %s6
  %s9 = scalar_select 0, %s8, %s6
  $region1: #{tpu_custom_call.1} parent=0
    #allocation3 [shape = 'u8[65536]{0}', space=vmem, size = 0x10000, scoped, tag = 'input window, operand 0']
    #allocation4 [shape = 's32[2]{0}', space=sflag, size = 0x8, scoped, tag = 'scoped memory for tpu_custom_call.1']
    #allocation5 [shape = 's32[2]{0}', space=sflag, size = 0x8, scoped, tag = 'scoped memory for tpu_custom_call.1']
    #allocation6 [shape = 's32[2]{0}', space=sflag, size = 0x8, scoped, tag = 'scoped memory for tpu_custom_call.1']
    #allocation7 [shape = 'u8[1024]{0}', space=smem, size = 0x400, scoped, tag = 'input window, operand 1, single buffered']
    #allocation8 [shape = 'u8[512]{0}', space=smem, size = 0x200, scoped, tag = 'input window, operand 2, single buffered']
    #allocation9 [shape = 's32[1]{0}', space=sflag, size = 0x4, scoped, tag = 'scoped memory for tpu_custom_call.1']
    #allocation10 [shape = 'u8[1024]{0}', space=smem, size = 0x400, scoped, tag = 'input window, operand 3, single buffered']
    #allocation11 [shape = 'u8[512]{0}', space=smem, size = 0x200, scoped, tag = 'input window, operand 4, single buffered']
    #allocation12 [shape = 's32[1]{0}', space=sflag, size = 0x4, scoped, tag = 'scoped memory for tpu_custom_call.1']
    #allocation13 [shape = 'u8[65536]{0}', space=vmem, size = 0x10000, scoped, tag = 'output window, operand 0']
    %10 = vsyncpa [#allocation4], 0
    %s11 = scalar_lea.sflag [#allocation4], 1
    %12 = vsyncpa %s11, 0
    %13 = vsyncpa [#allocation6], 0
    %14 = vsyncpa [#allocation9], 0
    %15 = vsyncpa [#allocation12], 0
    %16 = vsyncpa [#allocation5], 0
    %s17 = scalar_lea.sflag [#allocation5], 1
    %18 = vsyncpa %s17, 0
    loop: start=0, step=1, limit=4
    $region2: #{tpu_custom_call.1} parent=1 // loop_pre_header
      _
    $region3: #{tpu_custom_call.1} parent=1 // loop_header
      %s20 = sphi 0, %s24
      %p21 = scmp.ge.s32.totalorder %s20, 4
      %s30 = sphi 0, %s32
      %s33 = sphi 0, %s30
      %s34 = sphi 0, %s33
      %s50 = sphi 0, %s34
      %s54 = sphi 0, %s54
      %s56 = sphi 0, %s54
      %s57 = sphi 0, %s56
      %s71 = sphi 0, %s57
      %s75 = sphi 0, %s75
      %s77 = sphi 0, %s75
      %s78 = sphi 0, %s77
      %s92 = sphi 0, %s78
      %s96 = sphi 0, %s96
      %s98 = sphi 0, %s96
      %s99 = sphi 0, %s98
      %s113 = sphi 0, %s99
      %s117 = sphi 0, %s117
      %s119 = sphi 0, %s117
      %s120 = sphi 0, %s119
      %s134 = sphi 0, %s120
      %s140 = sphi 0, %s142
      %s143 = sphi 0, %s140
      %s144 = sphi 0, %s143
      %s160 = sphi 0, %s144
    $region4: #{tpu_custom_call.1} parent=1 // loop_header_branch
      %23 = sbr.rel (%p21) target = $region8
    $region5: #{tpu_custom_call.1} parent=1 // loop_body
      %s25 = ssub.s32 %s20, 1
      %s26 = ssub.s32 %s20, 2
      %s27 = sadd.s32 %s20, 1
      %s28 = ssub.s32 %s20, %s27
      %p29 = scmp.eq.s32.totalorder %s28, 0
      %s31 = sadd.s32 %s30, 1
      %s32 = scalar_select %p29, %s30, %s31
      %p35 = pneg %p29
      %p36 = scmp.eq.s32.totalorder %s20, 1
      %p37 = por %p35, %p36
      %p38 = scmp.ne.s32.totalorder %s30, %s33
      %p39 = scmp.eq.s32.totalorder %s20, 0
      %p40 = por %p38, %p39
      %p41 = scmp.ne.s32.totalorder %s30, %s33
      %p42 = scmp.eq.s32.totalorder %s25, 1
      %p43 = por %p41, %p42
      %p44 = scmp.ne.s32.totalorder %s33, %s34
      %p45 = scmp.eq.s32.totalorder %s25, 0
      %p46 = por %p44, %p45
      %p47 = scmp.ne.s32.totalorder %s33, %s34
      %p48 = scmp.eq.s32.totalorder %s26, 1
      %p49 = por %p47, %p48
      %p51 = scmp.ne.s32.totalorder %s34, %s50
      %p52 = scmp.eq.s32.totalorder %s26, 0
      %p53 = por %p51, %p52
      %s55 = sadd.s32 %s54, 1
      %p58 = scmp.eq.s32.totalorder %s20, 1
      %p59 = scmp.ne.s32.totalorder %s54, %s56
      %p60 = scmp.eq.s32.totalorder %s20, 0
      %p61 = por %p59, %p60
      %p62 = scmp.ne.s32.totalorder %s54, %s56
      %p63 = scmp.eq.s32.totalorder %s25, 1
      %p64 = por %p62, %p63
      %p65 = scmp.ne.s32.totalorder %s56, %s57
      %p66 = scmp.eq.s32.totalorder %s25, 0
      %p67 = por %p65, %p66
      %p68 = scmp.ne.s32.totalorder %s56, %s57
      %p69 = scmp.eq.s32.totalorder %s26, 1
      %p70 = por %p68, %p69
      %p72 = scmp.ne.s32.totalorder %s57, %s71
      %p73 = scmp.eq.s32.totalorder %s26, 0
      %p74 = por %p72, %p73
      %s76 = sadd.s32 %s75, 1
      %p79 = scmp.eq.s32.totalorder %s20, 1
      %p80 = scmp.ne.s32.totalorder %s75, %s77
      %p81 = scmp.eq.s32.totalorder %s20, 0
      %p82 = por %p80, %p81
      %p83 = scmp.ne.s32.totalorder %s75, %s77
      %p84 = scmp.eq.s32.totalorder %s25, 1
      %p85 = por %p83, %p84
      %p86 = scmp.ne.s32.totalorder %s77, %s78
      %p87 = scmp.eq.s32.totalorder %s25, 0
      %p88 = por %p86, %p87
      %p89 = scmp.ne.s32.totalorder %s77, %s78
      %p90 = scmp.eq.s32.totalorder %s26, 1
      %p91 = por %p89, %p90
      %p93 = scmp.ne.s32.totalorder %s78, %s92
      %p94 = scmp.eq.s32.totalorder %s26, 0
      %p95 = por %p93, %p94
      %s97 = sadd.s32 %s96, 1
      %p100 = scmp.eq.s32.totalorder %s20, 1
      %p101 = scmp.ne.s32.totalorder %s96, %s98
      %p102 = scmp.eq.s32.totalorder %s20, 0
      %p103 = por %p101, %p102
      %p104 = scmp.ne.s32.totalorder %s96, %s98
      %p105 = scmp.eq.s32.totalorder %s25, 1
      %p106 = por %p104, %p105
      %p107 = scmp.ne.s32.totalorder %s98, %s99
      %p108 = scmp.eq.s32.totalorder %s25, 0
      %p109 = por %p107, %p108
      %p110 = scmp.ne.s32.totalorder %s98, %s99
      %p111 = scmp.eq.s32.totalorder %s26, 1
      %p112 = por %p110, %p111
      %p114 = scmp.ne.s32.totalorder %s99, %s113
      %p115 = scmp.eq.s32.totalorder %s26, 0
      %p116 = por %p114, %p115
      %s118 = sadd.s32 %s117, 1
      %p121 = scmp.eq.s32.totalorder %s20, 1
      %p122 = scmp.ne.s32.totalorder %s117, %s119
      %p123 = scmp.eq.s32.totalorder %s20, 0
      %p124 = por %p122, %p123
      %p125 = scmp.ne.s32.totalorder %s117, %s119
      %p126 = scmp.eq.s32.totalorder %s25, 1
      %p127 = por %p125, %p126
      %p128 = scmp.ne.s32.totalorder %s119, %s120
      %p129 = scmp.eq.s32.totalorder %s25, 0
      %p130 = por %p128, %p129
      %p131 = scmp.ne.s32.totalorder %s119, %s120
      %p132 = scmp.eq.s32.totalorder %s26, 1
      %p133 = por %p131, %p132
      %p135 = scmp.ne.s32.totalorder %s120, %s134
      %p136 = scmp.eq.s32.totalorder %s26, 0
      %p137 = por %p135, %p136
      %s138 = ssub.s32 %s20, %s27
      %p139 = scmp.eq.s32.totalorder %s138, 0
      %s141 = sadd.s32 %s140, 1
      %s142 = scalar_select %p139, %s140, %s141
      %p145 = pneg %p139
      %p146 = scmp.eq.s32.totalorder %s20, 1
      %p147 = por %p145, %p146
      %p148 = scmp.ne.s32.totalorder %s140, %s143
      %p149 = scmp.eq.s32.totalorder %s20, 0
      %p150 = por %p148, %p149
      %p151 = scmp.ne.s32.totalorder %s140, %s143
      %p152 = scmp.eq.s32.totalorder %s25, 1
      %p153 = por %p151, %p152
      %p154 = scmp.ne.s32.totalorder %s143, %s144
      %p155 = scmp.eq.s32.totalorder %s25, 0
      %p156 = por %p154, %p155
      %p157 = scmp.ne.s32.totalorder %s143, %s144
      %p158 = scmp.eq.s32.totalorder %s26, 1
      %p159 = por %p157, %p158
      %p161 = scmp.ne.s32.totalorder %s144, %s160
      %p162 = scmp.eq.s32.totalorder %s26, 0
      %p163 = por %p161, %p162
      %p164 = scmp.le.s32.totalorder 1, %s20
      %p165 = scmp.lt.s32.totalorder %s20, 3
      %p166 = pnand %p164, %p165
      %p167 = pneg %p166
      // Predicated region
      $region9: #{tpu_custom_call.1} parent=5 // pred_check
        _
      $region10: #{tpu_custom_call.1} parent=5 // pred_check_branch
        %169 = sbr.rel (%p166) target = $region12
      $region11: #{tpu_custom_call.1} parent=5 // pred_region
        %s170 = ssub.s32 %s20, 1
        // Predicated region
        $region13: #{tpu_custom_call.1} parent=11 // pred_check
          %p171 = pneg %p67
        $region14: #{tpu_custom_call.1} parent=11 // pred_check_branch
          %173 = sbr.rel (%p171) target = $region16
        $region15: #{tpu_custom_call.1} parent=11 // pred_region
          %s175 = ssub.s32 32, 32
          %176 = vsyncadd [#allocation6], %s175
          %s178 = sshll.u32 %s1, 4
          %s179 = int_to_ptr.vmem [resolvable:$true] %s178
          %181 = dma.vmem_to_smem %s179, 32, [#allocation7], [#allocation6]
        $region16: #{tpu_custom_call.1} parent=11 // pred_fallthru
          _
        // Predicated region
        $region17: #{tpu_custom_call.1} parent=11 // pred_check
          %p182 = pneg %p88
        $region18: #{tpu_custom_call.1} parent=11 // pred_check_branch
          %184 = sbr.rel (%p182) target = $region20
        $region19: #{tpu_custom_call.1} parent=11 // pred_region
          %s186 = ssub.s32 16, 16
          %187 = vsyncadd [#allocation9], %s186
          %s189 = sshll.u32 %s2, 4
          %s190 = int_to_ptr.vmem [resolvable:$true] %s189
          %192 = dma.vmem_to_smem %s190, 16, [#allocation8], [#allocation9]
        $region20: #{tpu_custom_call.1} parent=11 // pred_fallthru
          _
        // Predicated region
        $region21: #{tpu_custom_call.1} parent=11 // pred_check
          %p193 = pneg %p109
        $region22: #{tpu_custom_call.1} parent=11 // pred_check_branch
          %195 = sbr.rel (%p193) target = $region24
        $region23: #{tpu_custom_call.1} parent=11 // pred_region
          %s197 = ssub.s32 32, 32
          %198 = vsyncadd [#allocation9], %s197
          %s200 = sshll.u32 %s3, 4
          %s201 = int_to_ptr.vmem [resolvable:$true] %s200
          %203 = dma.vmem_to_smem %s201, 32, [#allocation10], [#allocation9]
        $region24: #{tpu_custom_call.1} parent=11 // pred_fallthru
          _
        // Predicated region
        $region25: #{tpu_custom_call.1} parent=11 // pred_check
          %p204 = pneg %p130
        $region26: #{tpu_custom_call.1} parent=11 // pred_check_branch
          %206 = sbr.rel (%p204) target = $region28
        $region27: #{tpu_custom_call.1} parent=11 // pred_region
          %s208 = ssub.s32 16, 16
          %209 = vsyncadd [#allocation12], %s208
          %s211 = sshll.u32 %s4, 4
          %s212 = int_to_ptr.vmem [resolvable:$true] %s211
          %214 = dma.vmem_to_smem %s212, 16, [#allocation11], [#allocation12]
        $region28: #{tpu_custom_call.1} parent=11 // pred_fallthru
          _
      $region12: #{tpu_custom_call.1} parent=5 // pred_fallthru
        _
      %p215 = scmp.lt.s32.totalorder %s20, 2
      // Predicated region
      $region29: #{tpu_custom_call.1} parent=5 // pred_check
        %p216 = pneg %p215
      $region30: #{tpu_custom_call.1} parent=5 // pred_check_branch
        %218 = sbr.rel (%p216) target = $region32
      $region31: #{tpu_custom_call.1} parent=5 // pred_region
        // Predicated region
        $region33: #{tpu_custom_call.1} parent=31 // pred_check
          %p219 = pneg %p40
        $region34: #{tpu_custom_call.1} parent=31 // pred_check_branch
          %221 = sbr.rel (%p219) target = $region36
        $region35: #{tpu_custom_call.1} parent=31 // pred_region
          %s222 = sand.u32 %s30, 1
          %s223 = scalar_lea.sflag [#allocation4], %s222
          %s224 = sand.u32 %s30, 1
          %s225 = smul.addr %s224, 64
          %s226 = scalar_lea.vmem [#allocation3], %s225
          %s228 = ssub.s32 1024, 1024
          %229 = vsyncadd %s223, %s228
          %s230 = smul.addr %s20, 8
          %s231 = smul.addr %s230, 128
          %s232 = scalar_lea.hbm %s0, %s231
          %s233 = sshll.u32 %s226, 4
          %s234 = int_to_ptr.vmem [resolvable:$true] %s233
          %239 = dma.hbm_to_vmem [thread:$0]  %s232, 1024, %s234, %s223, 128, 128, 8
        $region36: #{tpu_custom_call.1} parent=31 // pred_fallthru
          _
      $region32: #{tpu_custom_call.1} parent=5 // pred_fallthru
        _
      %p240 = scmp.le.s32.totalorder 1, %s20
      %p241 = scmp.lt.s32.totalorder %s20, 3
      %p242 = pnand %p240, %p241
      %p243 = pneg %p242
      // Predicated region
      $region37: #{tpu_custom_call.1} parent=5 // pred_check
        _
      $region38: #{tpu_custom_call.1} parent=5 // pred_check_branch
        %245 = sbr.rel (%p242) target = $region40
      $region39: #{tpu_custom_call.1} parent=5 // pred_region
        %s246 = ssub.s32 %s20, 1
        %s247 = sand.u32 %s33, 1
        %s248 = scalar_lea.sflag [#allocation4], %s247
        %s249 = sand.u32 %s33, 1
        %s250 = smul.addr %s249, 64
        %s251 = scalar_lea.vmem [#allocation3], %s250
        // Predicated region
        $region41: #{tpu_custom_call.1} parent=39 // pred_check
          %p252 = pneg %p46
        $region42: #{tpu_custom_call.1} parent=39 // pred_check_branch
          %254 = sbr.rel (%p252) target = $region44
        $region43: #{tpu_custom_call.1} parent=39 // pred_region
          %255 = dma.done %s248, 1024
        $region44: #{tpu_custom_call.1} parent=39 // pred_fallthru
          _
        // Predicated region
        $region45: #{tpu_custom_call.1} parent=39 // pred_check
          %p256 = pneg %p67
        $region46: #{tpu_custom_call.1} parent=39 // pred_check_branch
          %258 = sbr.rel (%p256) target = $region48
        $region47: #{tpu_custom_call.1} parent=39 // pred_region
          %259 = dma.done [#allocation6], 32
        $region48: #{tpu_custom_call.1} parent=39 // pred_fallthru
          _
        // Predicated region
        $region49: #{tpu_custom_call.1} parent=39 // pred_check
          %p260 = pneg %p88
        $region50: #{tpu_custom_call.1} parent=39 // pred_check_branch
          %262 = sbr.rel (%p260) target = $region52
        $region51: #{tpu_custom_call.1} parent=39 // pred_region
          %263 = dma.done [#allocation9], 16
        $region52: #{tpu_custom_call.1} parent=39 // pred_fallthru
          _
        // Predicated region
        $region53: #{tpu_custom_call.1} parent=39 // pred_check
          %p264 = pneg %p109
        $region54: #{tpu_custom_call.1} parent=39 // pred_check_branch
          %266 = sbr.rel (%p264) target = $region56
        $region55: #{tpu_custom_call.1} parent=39 // pred_region
          %267 = dma.done [#allocation9], 32
        $region56: #{tpu_custom_call.1} parent=39 // pred_fallthru
          _
        // Predicated region
        $region57: #{tpu_custom_call.1} parent=39 // pred_check
          %p268 = pneg %p130
        $region58: #{tpu_custom_call.1} parent=39 // pred_check_branch
          %270 = sbr.rel (%p268) target = $region60
        $region59: #{tpu_custom_call.1} parent=39 // pred_region
          %271 = dma.done [#allocation12], 16
        $region60: #{tpu_custom_call.1} parent=39 // pred_fallthru
          _
        %272 = sfence
        %s273 = sand.u32 %s33, 1
        %s274 = scalar_lea.sflag [#allocation4], %s273
        %s275 = sand.u32 %s33, 1
        %s276 = smul.addr %s275, 64
        %s277 = scalar_lea.vmem [#allocation3], %s276
        %p278 = pneg %p46
        %p279 = pneg %p43
        %p280 = pneg %p67
        %p281 = pneg %p64
        %p282 = pneg %p88
        %p283 = pneg %p85
        %p284 = pneg %p109
        %p285 = pneg %p106
        %p286 = pneg %p130
        %p287 = pneg %p127
        %p288 = pneg %p156
        %p289 = pneg %p153
        %s290 = sand.u32 %s143, 1
        %s291 = scalar_lea.sflag [#allocation5], %s290
        %s292 = sand.u32 %s143, 1
        %s293 = smul.addr %s292, 64
        %s294 = scalar_lea.vmem [#allocation13], %s293
        %vm295 = vcmask 139264
        %296 = vst.msk [vmem:[#allocation2] sm:$0x1] %vm295, 0.0
        %297 = vst.msk [vmem:[#allocation2 + $0x18] sm:$0x1] %vm295, 0.0
        %298 = vst.msk [vmem:[#allocation2 + $0x30] sm:$0x1] %vm295, 0.0
        %299 = vst.msk [vmem:[#allocation2 + $0x48] sm:$0x1] %vm295, 0.0
        %300 = vst.msk [vmem:[#allocation2 + $0x11] sm:$0x1] %vm295, 0.0
        %301 = vst.msk [vmem:[#allocation2 + $0x29] sm:$0x1] %vm295, 0.0
        %302 = vst.msk [vmem:[#allocation2 + $0x41] sm:$0x1] %vm295, 0.0
        %303 = vst.msk [vmem:[#allocation2 + $0x59] sm:$0x1] %vm295, 0.0
        %vm304 = vcmask 7168
        %305 = vst.msk [vmem:[#allocation2] sm:$0xff] %vm304, 0.0
        %306 = vst.msk [vmem:[#allocation2 + $0x8] sm:$0xff] %vm304, 0.0
        %vm307 = vcmask 1024
        %308 = vst.msk [vmem:[#allocation2 + $0x10] sm:$0x3] %vm307, 0.0
        %309 = vst.msk [vmem:[#allocation2 + $0x18] sm:$0xff] %vm304, 0.0
        %310 = vst.msk [vmem:[#allocation2 + $0x20] sm:$0xff] %vm304, 0.0
        %311 = vst.msk [vmem:[#allocation2 + $0x28] sm:$0x3] %vm307, 0.0
        %312 = vst.msk [vmem:[#allocation2 + $0x30] sm:$0xff] %vm304, 0.0
        %313 = vst.msk [vmem:[#allocation2 + $0x38] sm:$0xff] %vm304, 0.0
        %314 = vst.msk [vmem:[#allocation2 + $0x40] sm:$0x3] %vm307, 0.0
        %315 = vst.msk [vmem:[#allocation2 + $0x48] sm:$0xff] %vm304, 0.0
        %316 = vst.msk [vmem:[#allocation2 + $0x50] sm:$0xff] %vm304, 0.0
        %317 = vst.msk [vmem:[#allocation2 + $0x58] sm:$0x3] %vm307, 0.0
        %vm318 = vcmask 146568
        %319 = vst.msk [vmem:[#allocation2] sm:$0xff] %vm318, 0.0
        %320 = vst.msk [vmem:[#allocation2 + $0x8] sm:$0xff] %vm318, 0.0
        %vm321 = vcmask 140424
        %322 = vst.msk [vmem:[#allocation2 + $0x10] sm:$0x3] %vm321, 0.0
        %323 = vst.msk [vmem:[#allocation2 + $0x18] sm:$0xff] %vm318, 0.0
        %324 = vst.msk [vmem:[#allocation2 + $0x20] sm:$0xff] %vm318, 0.0
        %325 = vst.msk [vmem:[#allocation2 + $0x28] sm:$0x3] %vm321, 0.0
        %326 = vst.msk [vmem:[#allocation2 + $0x30] sm:$0xff] %vm318, 0.0
        %327 = vst.msk [vmem:[#allocation2 + $0x38] sm:$0xff] %vm318, 0.0
        %328 = vst.msk [vmem:[#allocation2 + $0x40] sm:$0x3] %vm321, 0.0
        %329 = vst.msk [vmem:[#allocation2 + $0x48] sm:$0xff] %vm318, 0.0
        %330 = vst.msk [vmem:[#allocation2 + $0x50] sm:$0xff] %vm318, 0.0
        %331 = vst.msk [vmem:[#allocation2 + $0x58] sm:$0x3] %vm321, 0.0
        %v332 = vld [vmem:[%s251] sm:$0xff]
        %v333 = vld [vmem:[%s251 + $0x8] sm:$0xff]
        %v334 = vld [vmem:[%s251 + $0x10] sm:$0xff]
        %v335 = vld [vmem:[%s251 + $0x18] sm:$0xff]
        %v336 = vld [vmem:[%s251 + $0x20] sm:$0xff]
        %v337 = vld [vmem:[%s251 + $0x28] sm:$0xff]
        %v338 = vld [vmem:[%s251 + $0x30] sm:$0xff]
        %v339 = vld [vmem:[%s251 + $0x38] sm:$0xff]
        %348 = vrot.lane.b32.xlu0 %v332, 1
        %v349 = vpop.permute.xlu0 %348
        %350 = vrot.lane.b32.xlu0 %v333, 1
        %v351 = vpop.permute.xlu0 %350
        %352 = vrot.lane.b32.xlu0 %v334, 1
        %v353 = vpop.permute.xlu0 %352
        %354 = vrot.lane.b32.xlu0 %v335, 1
        %v355 = vpop.permute.xlu0 %354
        %356 = vrot.lane.b32.xlu0 %v336, 1
        %v357 = vpop.permute.xlu0 %356
        %358 = vrot.lane.b32.xlu0 %v337, 1
        %v359 = vpop.permute.xlu0 %358
        %360 = vrot.lane.b32.xlu0 %v338, 1
        %v361 = vpop.permute.xlu0 %360
        %362 = vrot.lane.b32.xlu0 %v339, 1
        %v363 = vpop.permute.xlu0 %362
        %vm372 = vcmask 138248
        %373 = vst.msk [vmem:[#allocation2 + $0x1] sm:$0xff] %vm372, %v349
        %374 = vst.msk [vmem:[#allocation2 + $0x9] sm:$0xff] %vm372, %v351
        %375 = vst.msk [vmem:[#allocation2 + $0x19] sm:$0xff] %vm372, %v353
        %376 = vst.msk [vmem:[#allocation2 + $0x21] sm:$0xff] %vm372, %v355
        %377 = vst.msk [vmem:[#allocation2 + $0x31] sm:$0xff] %vm372, %v357
        %378 = vst.msk [vmem:[#allocation2 + $0x39] sm:$0xff] %vm372, %v359
        %379 = vst.msk [vmem:[#allocation2 + $0x49] sm:$0xff] %vm372, %v361
        %380 = vst.msk [vmem:[#allocation2 + $0x51] sm:$0xff] %vm372, %v363
        %s381 = sld [smem:[#allocation8]]
        %v382 = vstv %s381
        %v383 = vadd.f32 %v382, 0.0
        %s384 = sld [smem:[#allocation8 + $0x1]]
        %v385 = vstv %s384
        %v386 = vadd.f32 %v385, 0.0
        %s387 = sld [smem:[#allocation8 + $0x2]]
        %v388 = vstv %s387
        %v389 = vadd.f32 %v388, 0.0
        %s390 = sld [smem:[#allocation8 + $0x3]]
        %v391 = vstv %s390
        %v392 = vadd.f32 %v391, 0.0
        %v393 = vld [vmem:[#allocation2] sm:$0xff]
        %v394 = vld [vmem:[#allocation2 + $0x8] sm:$0xff]
        %s395 = sld [smem:[#allocation7]]
        %v396 = vstv %s395
        %v397 = vmul.f32 %v396, %v393
        %v398 = vmul.f32 %v396, %v394
        %v399 = vadd.f32 %v383, %v397
        %v400 = vadd.f32 %v383, %v398
        %s401 = sld [smem:[#allocation7 + $0x24]]
        %v402 = vstv %s401
        %v403 = vmul.f32 %v402, %v393
        %v404 = vmul.f32 %v402, %v394
        %v405 = vadd.f32 %v386, %v403
        %v406 = vadd.f32 %v386, %v404
        %s407 = sld [smem:[#allocation7 + $0x48]]
        %v408 = vstv %s407
        %v409 = vmul.f32 %v408, %v393
        %v410 = vmul.f32 %v408, %v394
        %v411 = vadd.f32 %v389, %v409
        %v412 = vadd.f32 %v389, %v410
        %s413 = sld [smem:[#allocation7 + $0x6c]]
        %v414 = vstv %s413
        %v415 = vmul.f32 %v414, %v393
        %v416 = vmul.f32 %v414, %v394
        %v417 = vadd.f32 %v392, %v415
        %v418 = vadd.f32 %v392, %v416
        %s419 = sld [smem:[#allocation7 + $0x1]]
        %v420 = vstv %s419
        %v421 = vmul.f32 %v420, %v393
        %v422 = vmul.f32 %v420, %v394
        %425 = vrot.lane.b32.xlu0 %v421, 127
        %v426 = vpop.permute.xlu0 %425
        %427 = vrot.lane.b32.xlu0 %v422, 127
        %v428 = vpop.permute.xlu0 %427
        %v431 = vadd.f32 %v399, %v426
        %v432 = vadd.f32 %v400, %v428
        %s433 = sld [smem:[#allocation7 + $0x25]]
        %v434 = vstv %s433
        %v435 = vmul.f32 %v434, %v393
        %v436 = vmul.f32 %v434, %v394
        %439 = vrot.lane.b32.xlu0 %v435, 127
        %v440 = vpop.permute.xlu0 %439
        %441 = vrot.lane.b32.xlu0 %v436, 127
        %v442 = vpop.permute.xlu0 %441
        %v445 = vadd.f32 %v405, %v440
        %v446 = vadd.f32 %v406, %v442
        %s447 = sld [smem:[#allocation7 + $0x49]]
        %v448 = vstv %s447
        %v449 = vmul.f32 %v448, %v393
        %v450 = vmul.f32 %v448, %v394
        %453 = vrot.lane.b32.xlu0 %v449, 127
        %v454 = vpop.permute.xlu0 %453
        %455 = vrot.lane.b32.xlu0 %v450, 127
        %v456 = vpop.permute.xlu0 %455
        %v459 = vadd.f32 %v411, %v454
        %v460 = vadd.f32 %v412, %v456
        %s461 = sld [smem:[#allocation7 + $0x6d]]
        %v462 = vstv %s461
        %v463 = vmul.f32 %v462, %v393
        %v464 = vmul.f32 %v462, %v394
        %467 = vrot.lane.b32.xlu0 %v463, 127
        %v468 = vpop.permute.xlu0 %467
        %469 = vrot.lane.b32.xlu0 %v464, 127
        %v470 = vpop.permute.xlu0 %469
        %v473 = vadd.f32 %v417, %v468
        %v474 = vadd.f32 %v418, %v470
        %s475 = sld [smem:[#allocation7 + $0x2]]
        %v476 = vstv %s475
        %v477 = vmul.f32 %v476, %v393
        %v478 = vmul.f32 %v476, %v394
        %481 = vrot.lane.b32.xlu0 %v477, 126
        %v482 = vpop.permute.xlu0 %481
        %483 = vrot.lane.b32.xlu0 %v478, 126
        %v484 = vpop.permute.xlu0 %483
        %v487 = vadd.f32 %v431, %v482
        %v488 = vadd.f32 %v432, %v484
        %s489 = sld [smem:[#allocation7 + $0x26]]
        %v490 = vstv %s489
        %v491 = vmul.f32 %v490, %v393
        %v492 = vmul.f32 %v490, %v394
        %495 = vrot.lane.b32.xlu0 %v491, 126
        %v496 = vpop.permute.xlu0 %495
        %497 = vrot.lane.b32.xlu0 %v492, 126
        %v498 = vpop.permute.xlu0 %497
        %v501 = vadd.f32 %v445, %v496
        %v502 = vadd.f32 %v446, %v498
        %s503 = sld [smem:[#allocation7 + $0x4a]]
        %v504 = vstv %s503
        %v505 = vmul.f32 %v504, %v393
        %v506 = vmul.f32 %v504, %v394
        %509 = vrot.lane.b32.xlu0 %v505, 126
        %v510 = vpop.permute.xlu0 %509
        %511 = vrot.lane.b32.xlu0 %v506, 126
        %v512 = vpop.permute.xlu0 %511
        %v515 = vadd.f32 %v459, %v510
        %v516 = vadd.f32 %v460, %v512
        %s517 = sld [smem:[#allocation7 + $0x6e]]
        %v518 = vstv %s517
        %v519 = vmul.f32 %v518, %v393
        %v520 = vmul.f32 %v518, %v394
        %523 = vrot.lane.b32.xlu0 %v519, 126
        %v524 = vpop.permute.xlu0 %523
        %525 = vrot.lane.b32.xlu0 %v520, 126
        %v526 = vpop.permute.xlu0 %525
        %v529 = vadd.f32 %v473, %v524
        %v530 = vadd.f32 %v474, %v526
        %v531 = vld [vmem:[#allocation2 + $0x1] sm:$0xff]
        %v532 = vld [vmem:[#allocation2 + $0x9] sm:$0xff]
        %s533 = sld [smem:[#allocation7 + $0x3]]
        %v534 = vstv %s533
        %v535 = vmul.f32 %v534, %v531
        %v536 = vmul.f32 %v534, %v532
        %v537 = vadd.f32 %v487, %v535
        %v538 = vadd.f32 %v488, %v536
        %s539 = sld [smem:[#allocation7 + $0x27]]
        %v540 = vstv %s539
        %v541 = vmul.f32 %v540, %v531
        %v542 = vmul.f32 %v540, %v532
        %v543 = vadd.f32 %v501, %v541
        %v544 = vadd.f32 %v502, %v542
        %s545 = sld [smem:[#allocation7 + $0x4b]]
        %v546 = vstv %s545
        %v547 = vmul.f32 %v546, %v531
        %v548 = vmul.f32 %v546, %v532
        %v549 = vadd.f32 %v515, %v547
        %v550 = vadd.f32 %v516, %v548
        %s551 = sld [smem:[#allocation7 + $0x6f]]
        %v552 = vstv %s551
        %v553 = vmul.f32 %v552, %v531
        %v554 = vmul.f32 %v552, %v532
        %v555 = vadd.f32 %v529, %v553
        %v556 = vadd.f32 %v530, %v554
        %s557 = sld [smem:[#allocation7 + $0x4]]
        %v558 = vstv %s557
        %v559 = vmul.f32 %v558, %v531
        %v560 = vmul.f32 %v558, %v532
        %563 = vrot.lane.b32.xlu0 %v559, 127
        %v564 = vpop.permute.xlu0 %563
        %565 = vrot.lane.b32.xlu0 %v560, 127
        %v566 = vpop.permute.xlu0 %565
        %v569 = vadd.f32 %v537, %v564
        %v570 = vadd.f32 %v538, %v566
        %s571 = sld [smem:[#allocation7 + $0x28]]
        %v572 = vstv %s571
        %v573 = vmul.f32 %v572, %v531
        %v574 = vmul.f32 %v572, %v532
        %577 = vrot.lane.b32.xlu0 %v573, 127
        %v578 = vpop.permute.xlu0 %577
        %579 = vrot.lane.b32.xlu0 %v574, 127
        %v580 = vpop.permute.xlu0 %579
        %v583 = vadd.f32 %v543, %v578
        %v584 = vadd.f32 %v544, %v580
        %s585 = sld [smem:[#allocation7 + $0x4c]]
        %v586 = vstv %s585
        %v587 = vmul.f32 %v586, %v531
        %v588 = vmul.f32 %v586, %v532
        %591 = vrot.lane.b32.xlu0 %v587, 127
        %v592 = vpop.permute.xlu0 %591
        %593 = vrot.lane.b32.xlu0 %v588, 127
        %v594 = vpop.permute.xlu0 %593
        %v597 = vadd.f32 %v549, %v592
        %v598 = vadd.f32 %v550, %v594
        %s599 = sld [smem:[#allocation7 + $0x70]]
        %v600 = vstv %s599
        %v601 = vmul.f32 %v600, %v531
        %v602 = vmul.f32 %v600, %v532
        %605 = vrot.lane.b32.xlu0 %v601, 127
        %v606 = vpop.permute.xlu0 %605
        %607 = vrot.lane.b32.xlu0 %v602, 127
        %v608 = vpop.permute.xlu0 %607
        %v611 = vadd.f32 %v555, %v606
        %v612 = vadd.f32 %v556, %v608
        %s613 = sld [smem:[#allocation7 + $0x5]]
        %v614 = vstv %s613
        %v615 = vmul.f32 %v614, %v531
        %v616 = vmul.f32 %v614, %v532
        %619 = vrot.lane.b32.xlu0 %v615, 126
        %v620 = vpop.permute.xlu0 %619
        %621 = vrot.lane.b32.xlu0 %v616, 126
        %v622 = vpop.permute.xlu0 %621
        %v625 = vadd.f32 %v569, %v620
        %v626 = vadd.f32 %v570, %v622
        %s627 = sld [smem:[#allocation7 + $0x29]]
        %v628 = vstv %s627
        %v629 = vmul.f32 %v628, %v531
        %v630 = vmul.f32 %v628, %v532
        %633 = vrot.lane.b32.xlu0 %v629, 126
        %v634 = vpop.permute.xlu0 %633
        %635 = vrot.lane.b32.xlu0 %v630, 126
        %v636 = vpop.permute.xlu0 %635
        %v639 = vadd.f32 %v583, %v634
        %v640 = vadd.f32 %v584, %v636
        %s641 = sld [smem:[#allocation7 + $0x4d]]
        %v642 = vstv %s641
        %v643 = vmul.f32 %v642, %v531
        %v644 = vmul.f32 %v642, %v532
        %647 = vrot.lane.b32.xlu0 %v643, 126
        %v648 = vpop.permute.xlu0 %647
        %649 = vrot.lane.b32.xlu0 %v644, 126
        %v650 = vpop.permute.xlu0 %649
        %v653 = vadd.f32 %v597, %v648
        %v654 = vadd.f32 %v598, %v650
        %s655 = sld [smem:[#allocation7 + $0x71]]
        %v656 = vstv %s655
        %v657 = vmul.f32 %v656, %v531
        %v658 = vmul.f32 %v656, %v532
        %661 = vrot.lane.b32.xlu0 %v657, 126
        %v662 = vpop.permute.xlu0 %661
        %663 = vrot.lane.b32.xlu0 %v658, 126
        %v664 = vpop.permute.xlu0 %663
        %v667 = vadd.f32 %v611, %v662
        %v668 = vadd.f32 %v612, %v664
        %v669 = vld [vmem:[#allocation2 + $0x2] sm:$0xff]
        %v670 = vld [vmem:[#allocation2 + $0xa] sm:$0xff]
        %s671 = sld [smem:[#allocation7 + $0x6]]
        %v672 = vstv %s671
        %v673 = vmul.f32 %v672, %v669
        %v674 = vmul.f32 %v672, %v670
        %v675 = vadd.f32 %v625, %v673
        %v676 = vadd.f32 %v626, %v674
        %s677 = sld [smem:[#allocation7 + $0x2a]]
        %v678 = vstv %s677
        %v679 = vmul.f32 %v678, %v669
        %v680 = vmul.f32 %v678, %v670
        %v681 = vadd.f32 %v639, %v679
        %v682 = vadd.f32 %v640, %v680
        %s683 = sld [smem:[#allocation7 + $0x4e]]
        %v684 = vstv %s683
        %v685 = vmul.f32 %v684, %v669
        %v686 = vmul.f32 %v684, %v670
        %v687 = vadd.f32 %v653, %v685
        %v688 = vadd.f32 %v654, %v686
        %s689 = sld [smem:[#allocation7 + $0x72]]
        %v690 = vstv %s689
        %v691 = vmul.f32 %v690, %v669
        %v692 = vmul.f32 %v690, %v670
        %v693 = vadd.f32 %v667, %v691
        %v694 = vadd.f32 %v668, %v692
        %s695 = sld [smem:[#allocation7 + $0x7]]
        %v696 = vstv %s695
        %v697 = vmul.f32 %v696, %v669
        %v698 = vmul.f32 %v696, %v670
        %701 = vrot.lane.b32.xlu0 %v697, 127
        %v702 = vpop.permute.xlu0 %701
        %703 = vrot.lane.b32.xlu0 %v698, 127
        %v704 = vpop.permute.xlu0 %703
        %v707 = vadd.f32 %v675, %v702
        %v708 = vadd.f32 %v676, %v704
        %s709 = sld [smem:[#allocation7 + $0x2b]]
        %v710 = vstv %s709
        %v711 = vmul.f32 %v710, %v669
        %v712 = vmul.f32 %v710, %v670
        %715 = vrot.lane.b32.xlu0 %v711, 127
        %v716 = vpop.permute.xlu0 %715
        %717 = vrot.lane.b32.xlu0 %v712, 127
        %v718 = vpop.permute.xlu0 %717
        %v721 = vadd.f32 %v681, %v716
        %v722 = vadd.f32 %v682, %v718
        %s723 = sld [smem:[#allocation7 + $0x4f]]
        %v724 = vstv %s723
        %v725 = vmul.f32 %v724, %v669
        %v726 = vmul.f32 %v724, %v670
        %729 = vrot.lane.b32.xlu0 %v725, 127
        %v730 = vpop.permute.xlu0 %729
        %731 = vrot.lane.b32.xlu0 %v726, 127
        %v732 = vpop.permute.xlu0 %731
        %v735 = vadd.f32 %v687, %v730
        %v736 = vadd.f32 %v688, %v732
        %s737 = sld [smem:[#allocation7 + $0x73]]
        %v738 = vstv %s737
        %v739 = vmul.f32 %v738, %v669
        %v740 = vmul.f32 %v738, %v670
        %743 = vrot.lane.b32.xlu0 %v739, 127
        %v744 = vpop.permute.xlu0 %743
        %745 = vrot.lane.b32.xlu0 %v740, 127
        %v746 = vpop.permute.xlu0 %745
        %v749 = vadd.f32 %v693, %v744
        %v750 = vadd.f32 %v694, %v746
        %s751 = sld [smem:[#allocation7 + $0x8]]
        %v752 = vstv %s751
        %v753 = vmul.f32 %v752, %v669
        %v754 = vmul.f32 %v752, %v670
        %757 = vrot.lane.b32.xlu0 %v753, 126
        %v758 = vpop.permute.xlu0 %757
        %759 = vrot.lane.b32.xlu0 %v754, 126
        %v760 = vpop.permute.xlu0 %759
        %v763 = vadd.f32 %v707, %v758
        %v764 = vadd.f32 %v708, %v760
        %s765 = sld [smem:[#allocation7 + $0x2c]]
        %v766 = vstv %s765
        %v767 = vmul.f32 %v766, %v669
        %v768 = vmul.f32 %v766, %v670
        %771 = vrot.lane.b32.xlu0 %v767, 126
        %v772 = vpop.permute.xlu0 %771
        %773 = vrot.lane.b32.xlu0 %v768, 126
        %v774 = vpop.permute.xlu0 %773
        %v777 = vadd.f32 %v721, %v772
        %v778 = vadd.f32 %v722, %v774
        %s779 = sld [smem:[#allocation7 + $0x50]]
        %v780 = vstv %s779
        %v781 = vmul.f32 %v780, %v669
        %v782 = vmul.f32 %v780, %v670
        %785 = vrot.lane.b32.xlu0 %v781, 126
        %v786 = vpop.permute.xlu0 %785
        %787 = vrot.lane.b32.xlu0 %v782, 126
        %v788 = vpop.permute.xlu0 %787
        %v791 = vadd.f32 %v735, %v786
        %v792 = vadd.f32 %v736, %v788
        %s793 = sld [smem:[#allocation7 + $0x74]]
        %v794 = vstv %s793
        %v795 = vmul.f32 %v794, %v669
        %v796 = vmul.f32 %v794, %v670
        %799 = vrot.lane.b32.xlu0 %v795, 126
        %v800 = vpop.permute.xlu0 %799
        %801 = vrot.lane.b32.xlu0 %v796, 126
        %v802 = vpop.permute.xlu0 %801
        %v805 = vadd.f32 %v749, %v800
        %v806 = vadd.f32 %v750, %v802
        %s807 = scalar_lea.vmem [#allocation2], 24
        %v808 = vld [vmem:[%s807] sm:$0xff]
        %v809 = vld [vmem:[%s807 + $0x8] sm:$0xff]
        %s810 = sld [smem:[#allocation7 + $0x9]]
        %v811 = vstv %s810
        %v812 = vmul.f32 %v811, %v808
        %v813 = vmul.f32 %v811, %v809
        %v814 = vadd.f32 %v763, %v812
        %v815 = vadd.f32 %v764, %v813
        %s816 = sld [smem:[#allocation7 + $0x2d]]
        %v817 = vstv %s816
        %v818 = vmul.f32 %v817, %v808
        %v819 = vmul.f32 %v817, %v809
        %v820 = vadd.f32 %v777, %v818
        %v821 = vadd.f32 %v778, %v819
        %s822 = sld [smem:[#allocation7 + $0x51]]
        %v823 = vstv %s822
        %v824 = vmul.f32 %v823, %v808
        %v825 = vmul.f32 %v823, %v809
        %v826 = vadd.f32 %v791, %v824
        %v827 = vadd.f32 %v792, %v825
        %s828 = sld [smem:[#allocation7 + $0x75]]
        %v829 = vstv %s828
        %v830 = vmul.f32 %v829, %v808
        %v831 = vmul.f32 %v829, %v809
        %v832 = vadd.f32 %v805, %v830
        %v833 = vadd.f32 %v806, %v831
        %s834 = sld [smem:[#allocation7 + $0xa]]
        %v835 = vstv %s834
        %v836 = vmul.f32 %v835, %v808
        %v837 = vmul.f32 %v835, %v809
        %840 = vrot.lane.b32.xlu0 %v836, 127
        %v841 = vpop.permute.xlu0 %840
        %842 = vrot.lane.b32.xlu0 %v837, 127
        %v843 = vpop.permute.xlu0 %842
        %v846 = vadd.f32 %v814, %v841
        %v847 = vadd.f32 %v815, %v843
        %s848 = sld [smem:[#allocation7 + $0x2e]]
        %v849 = vstv %s848
        %v850 = vmul.f32 %v849, %v808
        %v851 = vmul.f32 %v849, %v809
        %854 = vrot.lane.b32.xlu0 %v850, 127
        %v855 = vpop.permute.xlu0 %854
        %856 = vrot.lane.b32.xlu0 %v851, 127
        %v857 = vpop.permute.xlu0 %856
        %v860 = vadd.f32 %v820, %v855
        %v861 = vadd.f32 %v821, %v857
        %s862 = sld [smem:[#allocation7 + $0x52]]
        %v863 = vstv %s862
        %v864 = vmul.f32 %v863, %v808
        %v865 = vmul.f32 %v863, %v809
        %868 = vrot.lane.b32.xlu0 %v864, 127
        %v869 = vpop.permute.xlu0 %868
        %870 = vrot.lane.b32.xlu0 %v865, 127
        %v871 = vpop.permute.xlu0 %870
        %v874 = vadd.f32 %v826, %v869
        %v875 = vadd.f32 %v827, %v871
        %s876 = sld [smem:[#allocation7 + $0x76]]
        %v877 = vstv %s876
        %v878 = vmul.f32 %v877, %v808
        %v879 = vmul.f32 %v877, %v809
        %882 = vrot.lane.b32.xlu0 %v878, 127
        %v883 = vpop.permute.xlu0 %882
        %884 = vrot.lane.b32.xlu0 %v879, 127
        %v885 = vpop.permute.xlu0 %884
        %v888 = vadd.f32 %v832, %v883
        %v889 = vadd.f32 %v833, %v885
        %s890 = sld [smem:[#allocation7 + $0xb]]
        %v891 = vstv %s890
        %v892 = vmul.f32 %v891, %v808
        %v893 = vmul.f32 %v891, %v809
        %896 = vrot.lane.b32.xlu0 %v892, 126
        %v897 = vpop.permute.xlu0 %896
        %898 = vrot.lane.b32.xlu0 %v893, 126
        %v899 = vpop.permute.xlu0 %898
        %v902 = vadd.f32 %v846, %v897
        %v903 = vadd.f32 %v847, %v899
        %s904 = sld [smem:[#allocation7 + $0x2f]]
        %v905 = vstv %s904
        %v906 = vmul.f32 %v905, %v808
        %v907 = vmul.f32 %v905, %v809
        %910 = vrot.lane.b32.xlu0 %v906, 126
        %v911 = vpop.permute.xlu0 %910
        %912 = vrot.lane.b32.xlu0 %v907, 126
        %v913 = vpop.permute.xlu0 %912
        %v916 = vadd.f32 %v860, %v911
        %v917 = vadd.f32 %v861, %v913
        %s918 = sld [smem:[#allocation7 + $0x53]]
        %v919 = vstv %s918
        %v920 = vmul.f32 %v919, %v808
        %v921 = vmul.f32 %v919, %v809
        %924 = vrot.lane.b32.xlu0 %v920, 126
        %v925 = vpop.permute.xlu0 %924
        %926 = vrot.lane.b32.xlu0 %v921, 126
        %v927 = vpop.permute.xlu0 %926
        %v930 = vadd.f32 %v874, %v925
        %v931 = vadd.f32 %v875, %v927
        %s932 = sld [smem:[#allocation7 + $0x77]]
        %v933 = vstv %s932
        %v934 = vmul.f32 %v933, %v808
        %v935 = vmul.f32 %v933, %v809
        %938 = vrot.lane.b32.xlu0 %v934, 126
        %v939 = vpop.permute.xlu0 %938
        %940 = vrot.lane.b32.xlu0 %v935, 126
        %v941 = vpop.permute.xlu0 %940
        %v944 = vadd.f32 %v888, %v939
        %v945 = vadd.f32 %v889, %v941
        %v946 = vld [vmem:[%s807 + $0x1] sm:$0xff]
        %v947 = vld [vmem:[%s807 + $0x9] sm:$0xff]
        %s948 = sld [smem:[#allocation7 + $0xc]]
        %v949 = vstv %s948
        %v950 = vmul.f32 %v949, %v946
        %v951 = vmul.f32 %v949, %v947
        %v952 = vadd.f32 %v902, %v950
        %v953 = vadd.f32 %v903, %v951
        %s954 = sld [smem:[#allocation7 + $0x30]]
        %v955 = vstv %s954
        %v956 = vmul.f32 %v955, %v946
        %v957 = vmul.f32 %v955, %v947
        %v958 = vadd.f32 %v916, %v956
        %v959 = vadd.f32 %v917, %v957
        %s960 = sld [smem:[#allocation7 + $0x54]]
        %v961 = vstv %s960
        %v962 = vmul.f32 %v961, %v946
        %v963 = vmul.f32 %v961, %v947
        %v964 = vadd.f32 %v930, %v962
        %v965 = vadd.f32 %v931, %v963
        %s966 = sld [smem:[#allocation7 + $0x78]]
        %v967 = vstv %s966
        %v968 = vmul.f32 %v967, %v946
        %v969 = vmul.f32 %v967, %v947
        %v970 = vadd.f32 %v944, %v968
        %v971 = vadd.f32 %v945, %v969
        %s972 = sld [smem:[#allocation7 + $0xd]]
        %v973 = vstv %s972
        %v974 = vmul.f32 %v973, %v946
        %v975 = vmul.f32 %v973, %v947
        %978 = vrot.lane.b32.xlu0 %v974, 127
        %v979 = vpop.permute.xlu0 %978
        %980 = vrot.lane.b32.xlu0 %v975, 127
        %v981 = vpop.permute.xlu0 %980
        %v984 = vadd.f32 %v952, %v979
        %v985 = vadd.f32 %v953, %v981
        %s986 = sld [smem:[#allocation7 + $0x31]]
        %v987 = vstv %s986
        %v988 = vmul.f32 %v987, %v946
        %v989 = vmul.f32 %v987, %v947
        %992 = vrot.lane.b32.xlu0 %v988, 127
        %v993 = vpop.permute.xlu0 %992
        %994 = vrot.lane.b32.xlu0 %v989, 127
        %v995 = vpop.permute.xlu0 %994
        %v998 = vadd.f32 %v958, %v993
        %v999 = vadd.f32 %v959, %v995
        %s1000 = sld [smem:[#allocation7 + $0x55]]
        %v1001 = vstv %s1000
        %v1002 = vmul.f32 %v1001, %v946
        %v1003 = vmul.f32 %v1001, %v947
        %1006 = vrot.lane.b32.xlu0 %v1002, 127
        %v1007 = vpop.permute.xlu0 %1006
        %1008 = vrot.lane.b32.xlu0 %v1003, 127
        %v1009 = vpop.permute.xlu0 %1008
        %v1012 = vadd.f32 %v964, %v1007
        %v1013 = vadd.f32 %v965, %v1009
        %s1014 = sld [smem:[#allocation7 + $0x79]]
        %v1015 = vstv %s1014
        %v1016 = vmul.f32 %v1015, %v946
        %v1017 = vmul.f32 %v1015, %v947
        %1020 = vrot.lane.b32.xlu0 %v1016, 127
        %v1021 = vpop.permute.xlu0 %1020
        %1022 = vrot.lane.b32.xlu0 %v1017, 127
        %v1023 = vpop.permute.xlu0 %1022
        %v1026 = vadd.f32 %v970, %v1021
        %v1027 = vadd.f32 %v971, %v1023
        %s1028 = sld [smem:[#allocation7 + $0xe]]
        %v1029 = vstv %s1028
        %v1030 = vmul.f32 %v1029, %v946
        %v1031 = vmul.f32 %v1029, %v947
        %1034 = vrot.lane.b32.xlu0 %v1030, 126
        %v1035 = vpop.permute.xlu0 %1034
        %1036 = vrot.lane.b32.xlu0 %v1031, 126
        %v1037 = vpop.permute.xlu0 %1036
        %v1040 = vadd.f32 %v984, %v1035
        %v1041 = vadd.f32 %v985, %v1037
        %s1042 = sld [smem:[#allocation7 + $0x32]]
        %v1043 = vstv %s1042
        %v1044 = vmul.f32 %v1043, %v946
        %v1045 = vmul.f32 %v1043, %v947
        %1048 = vrot.lane.b32.xlu0 %v1044, 126
        %v1049 = vpop.permute.xlu0 %1048
        %1050 = vrot.lane.b32.xlu0 %v1045, 126
        %v1051 = vpop.permute.xlu0 %1050
        %v1054 = vadd.f32 %v998, %v1049
        %v1055 = vadd.f32 %v999, %v1051
        %s1056 = sld [smem:[#allocation7 + $0x56]]
        %v1057 = vstv %s1056
        %v1058 = vmul.f32 %v1057, %v946
        %v1059 = vmul.f32 %v1057, %v947
        %1062 = vrot.lane.b32.xlu0 %v1058, 126
        %v1063 = vpop.permute.xlu0 %1062
        %1064 = vrot.lane.b32.xlu0 %v1059, 126
        %v1065 = vpop.permute.xlu0 %1064
        %v1068 = vadd.f32 %v1012, %v1063
        %v1069 = vadd.f32 %v1013, %v1065
        %s1070 = sld [smem:[#allocation7 + $0x7a]]
        %v1071 = vstv %s1070
        %v1072 = vmul.f32 %v1071, %v946
        %v1073 = vmul.f32 %v1071, %v947
        %1076 = vrot.lane.b32.xlu0 %v1072, 126
        %v1077 = vpop.permute.xlu0 %1076
        %1078 = vrot.lane.b32.xlu0 %v1073, 126
        %v1079 = vpop.permute.xlu0 %1078
        %v1082 = vadd.f32 %v1026, %v1077
        %v1083 = vadd.f32 %v1027, %v1079
        %v1084 = vld [vmem:[%s807 + $0x2] sm:$0xff]
        %v1085 = vld [vmem:[%s807 + $0xa] sm:$0xff]
        %s1086 = sld [smem:[#allocation7 + $0xf]]
        %v1087 = vstv %s1086
        %v1088 = vmul.f32 %v1087, %v1084
        %v1089 = vmul.f32 %v1087, %v1085
        %v1090 = vadd.f32 %v1040, %v1088
        %v1091 = vadd.f32 %v1041, %v1089
        %s1092 = sld [smem:[#allocation7 + $0x33]]
        %v1093 = vstv %s1092
        %v1094 = vmul.f32 %v1093, %v1084
        %v1095 = vmul.f32 %v1093, %v1085
        %v1096 = vadd.f32 %v1054, %v1094
        %v1097 = vadd.f32 %v1055, %v1095
        %s1098 = sld [smem:[#allocation7 + $0x57]]
        %v1099 = vstv %s1098
        %v1100 = vmul.f32 %v1099, %v1084
        %v1101 = vmul.f32 %v1099, %v1085
        %v1102 = vadd.f32 %v1068, %v1100
        %v1103 = vadd.f32 %v1069, %v1101
        %s1104 = sld [smem:[#allocation7 + $0x7b]]
        %v1105 = vstv %s1104
        %v1106 = vmul.f32 %v1105, %v1084
        %v1107 = vmul.f32 %v1105, %v1085
        %v1108 = vadd.f32 %v1082, %v1106
        %v1109 = vadd.f32 %v1083, %v1107
        %s1110 = sld [smem:[#allocation7 + $0x10]]
        %v1111 = vstv %s1110
        %v1112 = vmul.f32 %v1111, %v1084
        %v1113 = vmul.f32 %v1111, %v1085
        %1116 = vrot.lane.b32.xlu0 %v1112, 127
        %v1117 = vpop.permute.xlu0 %1116
        %1118 = vrot.lane.b32.xlu0 %v1113, 127
        %v1119 = vpop.permute.xlu0 %1118
        %v1122 = vadd.f32 %v1090, %v1117
        %v1123 = vadd.f32 %v1091, %v1119
        %s1124 = sld [smem:[#allocation7 + $0x34]]
        %v1125 = vstv %s1124
        %v1126 = vmul.f32 %v1125, %v1084
        %v1127 = vmul.f32 %v1125, %v1085
        %1130 = vrot.lane.b32.xlu0 %v1126, 127
        %v1131 = vpop.permute.xlu0 %1130
        %1132 = vrot.lane.b32.xlu0 %v1127, 127
        %v1133 = vpop.permute.xlu0 %1132
        %v1136 = vadd.f32 %v1096, %v1131
        %v1137 = vadd.f32 %v1097, %v1133
        %s1138 = sld [smem:[#allocation7 + $0x58]]
        %v1139 = vstv %s1138
        %v1140 = vmul.f32 %v1139, %v1084
        %v1141 = vmul.f32 %v1139, %v1085
        %1144 = vrot.lane.b32.xlu0 %v1140, 127
        %v1145 = vpop.permute.xlu0 %1144
        %1146 = vrot.lane.b32.xlu0 %v1141, 127
        %v1147 = vpop.permute.xlu0 %1146
        %v1150 = vadd.f32 %v1102, %v1145
        %v1151 = vadd.f32 %v1103, %v1147
        %s1152 = sld [smem:[#allocation7 + $0x7c]]
        %v1153 = vstv %s1152
        %v1154 = vmul.f32 %v1153, %v1084
        %v1155 = vmul.f32 %v1153, %v1085
        %1158 = vrot.lane.b32.xlu0 %v1154, 127
        %v1159 = vpop.permute.xlu0 %1158
        %1160 = vrot.lane.b32.xlu0 %v1155, 127
        %v1161 = vpop.permute.xlu0 %1160
        %v1164 = vadd.f32 %v1108, %v1159
        %v1165 = vadd.f32 %v1109, %v1161
        %s1166 = sld [smem:[#allocation7 + $0x11]]
        %v1167 = vstv %s1166
        %v1168 = vmul.f32 %v1167, %v1084
        %v1169 = vmul.f32 %v1167, %v1085
        %1172 = vrot.lane.b32.xlu0 %v1168, 126
        %v1173 = vpop.permute.xlu0 %1172
        %1174 = vrot.lane.b32.xlu0 %v1169, 126
        %v1175 = vpop.permute.xlu0 %1174
        %v1178 = vadd.f32 %v1122, %v1173
        %v1179 = vadd.f32 %v1123, %v1175
        %s1180 = sld [smem:[#allocation7 + $0x35]]
        %v1181 = vstv %s1180
        %v1182 = vmul.f32 %v1181, %v1084
        %v1183 = vmul.f32 %v1181, %v1085
        %1186 = vrot.lane.b32.xlu0 %v1182, 126
        %v1187 = vpop.permute.xlu0 %1186
        %1188 = vrot.lane.b32.xlu0 %v1183, 126
        %v1189 = vpop.permute.xlu0 %1188
        %v1192 = vadd.f32 %v1136, %v1187
        %v1193 = vadd.f32 %v1137, %v1189
        %s1194 = sld [smem:[#allocation7 + $0x59]]
        %v1195 = vstv %s1194
        %v1196 = vmul.f32 %v1195, %v1084
        %v1197 = vmul.f32 %v1195, %v1085
        %1200 = vrot.lane.b32.xlu0 %v1196, 126
        %v1201 = vpop.permute.xlu0 %1200
        %1202 = vrot.lane.b32.xlu0 %v1197, 126
        %v1203 = vpop.permute.xlu0 %1202
        %v1206 = vadd.f32 %v1150, %v1201
        %v1207 = vadd.f32 %v1151, %v1203
        %s1208 = sld [smem:[#allocation7 + $0x7d]]
        %v1209 = vstv %s1208
        %v1210 = vmul.f32 %v1209, %v1084
        %v1211 = vmul.f32 %v1209, %v1085
        %1214 = vrot.lane.b32.xlu0 %v1210, 126
        %v1215 = vpop.permute.xlu0 %1214
        %1216 = vrot.lane.b32.xlu0 %v1211, 126
        %v1217 = vpop.permute.xlu0 %1216
        %v1220 = vadd.f32 %v1164, %v1215
        %v1221 = vadd.f32 %v1165, %v1217
        %s1222 = scalar_lea.vmem [#allocation2], 48
        %v1223 = vld [vmem:[%s1222] sm:$0xff]
        %v1224 = vld [vmem:[%s1222 + $0x8] sm:$0xff]
        %s1225 = sld [smem:[#allocation7 + $0x12]]
        %v1226 = vstv %s1225
        %v1227 = vmul.f32 %v1226, %v1223
        %v1228 = vmul.f32 %v1226, %v1224
        %v1229 = vadd.f32 %v1178, %v1227
        %v1230 = vadd.f32 %v1179, %v1228
        %s1231 = sld [smem:[#allocation7 + $0x36]]
        %v1232 = vstv %s1231
        %v1233 = vmul.f32 %v1232, %v1223
        %v1234 = vmul.f32 %v1232, %v1224
        %v1235 = vadd.f32 %v1192, %v1233
        %v1236 = vadd.f32 %v1193, %v1234
        %s1237 = sld [smem:[#allocation7 + $0x5a]]
        %v1238 = vstv %s1237
        %v1239 = vmul.f32 %v1238, %v1223
        %v1240 = vmul.f32 %v1238, %v1224
        %v1241 = vadd.f32 %v1206, %v1239
        %v1242 = vadd.f32 %v1207, %v1240
        %s1243 = sld [smem:[#allocation7 + $0x7e]]
        %v1244 = vstv %s1243
        %v1245 = vmul.f32 %v1244, %v1223
        %v1246 = vmul.f32 %v1244, %v1224
        %v1247 = vadd.f32 %v1220, %v1245
        %v1248 = vadd.f32 %v1221, %v1246
        %s1249 = sld [smem:[#allocation7 + $0x13]]
        %v1250 = vstv %s1249
        %v1251 = vmul.f32 %v1250, %v1223
        %v1252 = vmul.f32 %v1250, %v1224
        %1255 = vrot.lane.b32.xlu0 %v1251, 127
        %v1256 = vpop.permute.xlu0 %1255
        %1257 = vrot.lane.b32.xlu0 %v1252, 127
        %v1258 = vpop.permute.xlu0 %1257
        %v1261 = vadd.f32 %v1229, %v1256
        %v1262 = vadd.f32 %v1230, %v1258
        %s1263 = sld [smem:[#allocation7 + $0x37]]
        %v1264 = vstv %s1263
        %v1265 = vmul.f32 %v1264, %v1223
        %v1266 = vmul.f32 %v1264, %v1224
        %1269 = vrot.lane.b32.xlu0 %v1265, 127
        %v1270 = vpop.permute.xlu0 %1269
        %1271 = vrot.lane.b32.xlu0 %v1266, 127
        %v1272 = vpop.permute.xlu0 %1271
        %v1275 = vadd.f32 %v1235, %v1270
        %v1276 = vadd.f32 %v1236, %v1272
        %s1277 = sld [smem:[#allocation7 + $0x5b]]
        %v1278 = vstv %s1277
        %v1279 = vmul.f32 %v1278, %v1223
        %v1280 = vmul.f32 %v1278, %v1224
        %1283 = vrot.lane.b32.xlu0 %v1279, 127
        %v1284 = vpop.permute.xlu0 %1283
        %1285 = vrot.lane.b32.xlu0 %v1280, 127
        %v1286 = vpop.permute.xlu0 %1285
        %v1289 = vadd.f32 %v1241, %v1284
        %v1290 = vadd.f32 %v1242, %v1286
        %s1291 = sld [smem:[#allocation7 + $0x7f]]
        %v1292 = vstv %s1291
        %v1293 = vmul.f32 %v1292, %v1223
        %v1294 = vmul.f32 %v1292, %v1224
        %1297 = vrot.lane.b32.xlu0 %v1293, 127
        %v1298 = vpop.permute.xlu0 %1297
        %1299 = vrot.lane.b32.xlu0 %v1294, 127
        %v1300 = vpop.permute.xlu0 %1299
        %v1303 = vadd.f32 %v1247, %v1298
        %v1304 = vadd.f32 %v1248, %v1300
        %s1305 = sld [smem:[#allocation7 + $0x14]]
        %v1306 = vstv %s1305
        %v1307 = vmul.f32 %v1306, %v1223
        %v1308 = vmul.f32 %v1306, %v1224
        %1311 = vrot.lane.b32.xlu0 %v1307, 126
        %v1312 = vpop.permute.xlu0 %1311
        %1313 = vrot.lane.b32.xlu0 %v1308, 126
        %v1314 = vpop.permute.xlu0 %1313
        %v1317 = vadd.f32 %v1261, %v1312
        %v1318 = vadd.f32 %v1262, %v1314
        %s1319 = sld [smem:[#allocation7 + $0x38]]
        %v1320 = vstv %s1319
        %v1321 = vmul.f32 %v1320, %v1223
        %v1322 = vmul.f32 %v1320, %v1224
        %1325 = vrot.lane.b32.xlu0 %v1321, 126
        %v1326 = vpop.permute.xlu0 %1325
        %1327 = vrot.lane.b32.xlu0 %v1322, 126
        %v1328 = vpop.permute.xlu0 %1327
        %v1331 = vadd.f32 %v1275, %v1326
        %v1332 = vadd.f32 %v1276, %v1328
        %s1333 = sld [smem:[#allocation7 + $0x5c]]
        %v1334 = vstv %s1333
        %v1335 = vmul.f32 %v1334, %v1223
        %v1336 = vmul.f32 %v1334, %v1224
        %1339 = vrot.lane.b32.xlu0 %v1335, 126
        %v1340 = vpop.permute.xlu0 %1339
        %1341 = vrot.lane.b32.xlu0 %v1336, 126
        %v1342 = vpop.permute.xlu0 %1341
        %v1345 = vadd.f32 %v1289, %v1340
        %v1346 = vadd.f32 %v1290, %v1342
        %s1347 = sld [smem:[#allocation7 + $0x80]]
        %v1348 = vstv %s1347
        %v1349 = vmul.f32 %v1348, %v1223
        %v1350 = vmul.f32 %v1348, %v1224
        %1353 = vrot.lane.b32.xlu0 %v1349, 126
        %v1354 = vpop.permute.xlu0 %1353
        %1355 = vrot.lane.b32.xlu0 %v1350, 126
        %v1356 = vpop.permute.xlu0 %1355
        %v1359 = vadd.f32 %v1303, %v1354
        %v1360 = vadd.f32 %v1304, %v1356
        %v1361 = vld [vmem:[%s1222 + $0x1] sm:$0xff]
        %v1362 = vld [vmem:[%s1222 + $0x9] sm:$0xff]
        %s1363 = sld [smem:[#allocation7 + $0x15]]
        %v1364 = vstv %s1363
        %v1365 = vmul.f32 %v1364, %v1361
        %v1366 = vmul.f32 %v1364, %v1362
        %v1367 = vadd.f32 %v1317, %v1365
        %v1368 = vadd.f32 %v1318, %v1366
        %s1369 = sld [smem:[#allocation7 + $0x39]]
        %v1370 = vstv %s1369
        %v1371 = vmul.f32 %v1370, %v1361
        %v1372 = vmul.f32 %v1370, %v1362
        %v1373 = vadd.f32 %v1331, %v1371
        %v1374 = vadd.f32 %v1332, %v1372
        %s1375 = sld [smem:[#allocation7 + $0x5d]]
        %v1376 = vstv %s1375
        %v1377 = vmul.f32 %v1376, %v1361
        %v1378 = vmul.f32 %v1376, %v1362
        %v1379 = vadd.f32 %v1345, %v1377
        %v1380 = vadd.f32 %v1346, %v1378
        %s1381 = sld [smem:[#allocation7 + $0x81]]
        %v1382 = vstv %s1381
        %v1383 = vmul.f32 %v1382, %v1361
        %v1384 = vmul.f32 %v1382, %v1362
        %v1385 = vadd.f32 %v1359, %v1383
        %v1386 = vadd.f32 %v1360, %v1384
        %s1387 = sld [smem:[#allocation7 + $0x16]]
        %v1388 = vstv %s1387
        %v1389 = vmul.f32 %v1388, %v1361
        %v1390 = vmul.f32 %v1388, %v1362
        %1393 = vrot.lane.b32.xlu0 %v1389, 127
        %v1394 = vpop.permute.xlu0 %1393
        %1395 = vrot.lane.b32.xlu0 %v1390, 127
        %v1396 = vpop.permute.xlu0 %1395
        %v1399 = vadd.f32 %v1367, %v1394
        %v1400 = vadd.f32 %v1368, %v1396
        %s1401 = sld [smem:[#allocation7 + $0x3a]]
        %v1402 = vstv %s1401
        %v1403 = vmul.f32 %v1402, %v1361
        %v1404 = vmul.f32 %v1402, %v1362
        %1407 = vrot.lane.b32.xlu0 %v1403, 127
        %v1408 = vpop.permute.xlu0 %1407
        %1409 = vrot.lane.b32.xlu0 %v1404, 127
        %v1410 = vpop.permute.xlu0 %1409
        %v1413 = vadd.f32 %v1373, %v1408
        %v1414 = vadd.f32 %v1374, %v1410
        %s1415 = sld [smem:[#allocation7 + $0x5e]]
        %v1416 = vstv %s1415
        %v1417 = vmul.f32 %v1416, %v1361
        %v1418 = vmul.f32 %v1416, %v1362
        %1421 = vrot.lane.b32.xlu0 %v1417, 127
        %v1422 = vpop.permute.xlu0 %1421
        %1423 = vrot.lane.b32.xlu0 %v1418, 127
        %v1424 = vpop.permute.xlu0 %1423
        %v1427 = vadd.f32 %v1379, %v1422
        %v1428 = vadd.f32 %v1380, %v1424
        %s1429 = sld [smem:[#allocation7 + $0x82]]
        %v1430 = vstv %s1429
        %v1431 = vmul.f32 %v1430, %v1361
        %v1432 = vmul.f32 %v1430, %v1362
        %1435 = vrot.lane.b32.xlu0 %v1431, 127
        %v1436 = vpop.permute.xlu0 %1435
        %1437 = vrot.lane.b32.xlu0 %v1432, 127
        %v1438 = vpop.permute.xlu0 %1437
        %v1441 = vadd.f32 %v1385, %v1436
        %v1442 = vadd.f32 %v1386, %v1438
        %s1443 = sld [smem:[#allocation7 + $0x17]]
        %v1444 = vstv %s1443
        %v1445 = vmul.f32 %v1444, %v1361
        %v1446 = vmul.f32 %v1444, %v1362
        %1449 = vrot.lane.b32.xlu0 %v1445, 126
        %v1450 = vpop.permute.xlu0 %1449
        %1451 = vrot.lane.b32.xlu0 %v1446, 126
        %v1452 = vpop.permute.xlu0 %1451
        %v1455 = vadd.f32 %v1399, %v1450
        %v1456 = vadd.f32 %v1400, %v1452
        %s1457 = sld [smem:[#allocation7 + $0x3b]]
        %v1458 = vstv %s1457
        %v1459 = vmul.f32 %v1458, %v1361
        %v1460 = vmul.f32 %v1458, %v1362
        %1463 = vrot.lane.b32.xlu0 %v1459, 126
        %v1464 = vpop.permute.xlu0 %1463
        %1465 = vrot.lane.b32.xlu0 %v1460, 126
        %v1466 = vpop.permute.xlu0 %1465
        %v1469 = vadd.f32 %v1413, %v1464
        %v1470 = vadd.f32 %v1414, %v1466
        %s1471 = sld [smem:[#allocation7 + $0x5f]]
        %v1472 = vstv %s1471
        %v1473 = vmul.f32 %v1472, %v1361
        %v1474 = vmul.f32 %v1472, %v1362
        %1477 = vrot.lane.b32.xlu0 %v1473, 126
        %v1478 = vpop.permute.xlu0 %1477
        %1479 = vrot.lane.b32.xlu0 %v1474, 126
        %v1480 = vpop.permute.xlu0 %1479
        %v1483 = vadd.f32 %v1427, %v1478
        %v1484 = vadd.f32 %v1428, %v1480
        %s1485 = sld [smem:[#allocation7 + $0x83]]
        %v1486 = vstv %s1485
        %v1487 = vmul.f32 %v1486, %v1361
        %v1488 = vmul.f32 %v1486, %v1362
        %1491 = vrot.lane.b32.xlu0 %v1487, 126
        %v1492 = vpop.permute.xlu0 %1491
        %1493 = vrot.lane.b32.xlu0 %v1488, 126
        %v1494 = vpop.permute.xlu0 %1493
        %v1497 = vadd.f32 %v1441, %v1492
        %v1498 = vadd.f32 %v1442, %v1494
        %v1499 = vld [vmem:[%s1222 + $0x2] sm:$0xff]
        %v1500 = vld [vmem:[%s1222 + $0xa] sm:$0xff]
        %s1501 = sld [smem:[#allocation7 + $0x18]]
        %v1502 = vstv %s1501
        %v1503 = vmul.f32 %v1502, %v1499
        %v1504 = vmul.f32 %v1502, %v1500
        %v1505 = vadd.f32 %v1455, %v1503
        %v1506 = vadd.f32 %v1456, %v1504
        %s1507 = sld [smem:[#allocation7 + $0x3c]]
        %v1508 = vstv %s1507
        %v1509 = vmul.f32 %v1508, %v1499
        %v1510 = vmul.f32 %v1508, %v1500
        %v1511 = vadd.f32 %v1469, %v1509
        %v1512 = vadd.f32 %v1470, %v1510
        %s1513 = sld [smem:[#allocation7 + $0x60]]
        %v1514 = vstv %s1513
        %v1515 = vmul.f32 %v1514, %v1499
        %v1516 = vmul.f32 %v1514, %v1500
        %v1517 = vadd.f32 %v1483, %v1515
        %v1518 = vadd.f32 %v1484, %v1516
        %s1519 = sld [smem:[#allocation7 + $0x84]]
        %v1520 = vstv %s1519
        %v1521 = vmul.f32 %v1520, %v1499
        %v1522 = vmul.f32 %v1520, %v1500
        %v1523 = vadd.f32 %v1497, %v1521
        %v1524 = vadd.f32 %v1498, %v1522
        %s1525 = sld [smem:[#allocation7 + $0x19]]
        %v1526 = vstv %s1525
        %v1527 = vmul.f32 %v1526, %v1499
        %v1528 = vmul.f32 %v1526, %v1500
        %1531 = vrot.lane.b32.xlu0 %v1527, 127
        %v1532 = vpop.permute.xlu0 %1531
        %1533 = vrot.lane.b32.xlu0 %v1528, 127
        %v1534 = vpop.permute.xlu0 %1533
        %v1537 = vadd.f32 %v1505, %v1532
        %v1538 = vadd.f32 %v1506, %v1534
        %s1539 = sld [smem:[#allocation7 + $0x3d]]
        %v1540 = vstv %s1539
        %v1541 = vmul.f32 %v1540, %v1499
        %v1542 = vmul.f32 %v1540, %v1500
        %1545 = vrot.lane.b32.xlu0 %v1541, 127
        %v1546 = vpop.permute.xlu0 %1545
        %1547 = vrot.lane.b32.xlu0 %v1542, 127
        %v1548 = vpop.permute.xlu0 %1547
        %v1551 = vadd.f32 %v1511, %v1546
        %v1552 = vadd.f32 %v1512, %v1548
        %s1553 = sld [smem:[#allocation7 + $0x61]]
        %v1554 = vstv %s1553
        %v1555 = vmul.f32 %v1554, %v1499
        %v1556 = vmul.f32 %v1554, %v1500
        %1559 = vrot.lane.b32.xlu0 %v1555, 127
        %v1560 = vpop.permute.xlu0 %1559
        %1561 = vrot.lane.b32.xlu0 %v1556, 127
        %v1562 = vpop.permute.xlu0 %1561
        %v1565 = vadd.f32 %v1517, %v1560
        %v1566 = vadd.f32 %v1518, %v1562
        %s1567 = sld [smem:[#allocation7 + $0x85]]
        %v1568 = vstv %s1567
        %v1569 = vmul.f32 %v1568, %v1499
        %v1570 = vmul.f32 %v1568, %v1500
        %1573 = vrot.lane.b32.xlu0 %v1569, 127
        %v1574 = vpop.permute.xlu0 %1573
        %1575 = vrot.lane.b32.xlu0 %v1570, 127
        %v1576 = vpop.permute.xlu0 %1575
        %v1579 = vadd.f32 %v1523, %v1574
        %v1580 = vadd.f32 %v1524, %v1576
        %s1581 = sld [smem:[#allocation7 + $0x1a]]
        %v1582 = vstv %s1581
        %v1583 = vmul.f32 %v1582, %v1499
        %v1584 = vmul.f32 %v1582, %v1500
        %1587 = vrot.lane.b32.xlu0 %v1583, 126
        %v1588 = vpop.permute.xlu0 %1587
        %1589 = vrot.lane.b32.xlu0 %v1584, 126
        %v1590 = vpop.permute.xlu0 %1589
        %v1593 = vadd.f32 %v1537, %v1588
        %v1594 = vadd.f32 %v1538, %v1590
        %s1595 = sld [smem:[#allocation7 + $0x3e]]
        %v1596 = vstv %s1595
        %v1597 = vmul.f32 %v1596, %v1499
        %v1598 = vmul.f32 %v1596, %v1500
        %1601 = vrot.lane.b32.xlu0 %v1597, 126
        %v1602 = vpop.permute.xlu0 %1601
        %1603 = vrot.lane.b32.xlu0 %v1598, 126
        %v1604 = vpop.permute.xlu0 %1603
        %v1607 = vadd.f32 %v1551, %v1602
        %v1608 = vadd.f32 %v1552, %v1604
        %s1609 = sld [smem:[#allocation7 + $0x62]]
        %v1610 = vstv %s1609
        %v1611 = vmul.f32 %v1610, %v1499
        %v1612 = vmul.f32 %v1610, %v1500
        %1615 = vrot.lane.b32.xlu0 %v1611, 126
        %v1616 = vpop.permute.xlu0 %1615
        %1617 = vrot.lane.b32.xlu0 %v1612, 126
        %v1618 = vpop.permute.xlu0 %1617
        %v1621 = vadd.f32 %v1565, %v1616
        %v1622 = vadd.f32 %v1566, %v1618
        %s1623 = sld [smem:[#allocation7 + $0x86]]
        %v1624 = vstv %s1623
        %v1625 = vmul.f32 %v1624, %v1499
        %v1626 = vmul.f32 %v1624, %v1500
        %1629 = vrot.lane.b32.xlu0 %v1625, 126
        %v1630 = vpop.permute.xlu0 %1629
        %1631 = vrot.lane.b32.xlu0 %v1626, 126
        %v1632 = vpop.permute.xlu0 %1631
        %v1635 = vadd.f32 %v1579, %v1630
        %v1636 = vadd.f32 %v1580, %v1632
        %s1637 = scalar_lea.vmem [#allocation2], 72
        %v1638 = vld [vmem:[%s1637] sm:$0xff]
        %v1639 = vld [vmem:[%s1637 + $0x8] sm:$0xff]
        %s1640 = sld [smem:[#allocation7 + $0x1b]]
        %v1641 = vstv %s1640
        %v1642 = vmul.f32 %v1641, %v1638
        %v1643 = vmul.f32 %v1641, %v1639
        %v1644 = vadd.f32 %v1593, %v1642
        %v1645 = vadd.f32 %v1594, %v1643
        %s1646 = sld [smem:[#allocation7 + $0x3f]]
        %v1647 = vstv %s1646
        %v1648 = vmul.f32 %v1647, %v1638
        %v1649 = vmul.f32 %v1647, %v1639
        %v1650 = vadd.f32 %v1607, %v1648
        %v1651 = vadd.f32 %v1608, %v1649
        %s1652 = sld [smem:[#allocation7 + $0x63]]
        %v1653 = vstv %s1652
        %v1654 = vmul.f32 %v1653, %v1638
        %v1655 = vmul.f32 %v1653, %v1639
        %v1656 = vadd.f32 %v1621, %v1654
        %v1657 = vadd.f32 %v1622, %v1655
        %s1658 = sld [smem:[#allocation7 + $0x87]]
        %v1659 = vstv %s1658
        %v1660 = vmul.f32 %v1659, %v1638
        %v1661 = vmul.f32 %v1659, %v1639
        %v1662 = vadd.f32 %v1635, %v1660
        %v1663 = vadd.f32 %v1636, %v1661
        %s1664 = sld [smem:[#allocation7 + $0x1c]]
        %v1665 = vstv %s1664
        %v1666 = vmul.f32 %v1665, %v1638
        %v1667 = vmul.f32 %v1665, %v1639
        %1670 = vrot.lane.b32.xlu0 %v1666, 127
        %v1671 = vpop.permute.xlu0 %1670
        %1672 = vrot.lane.b32.xlu0 %v1667, 127
        %v1673 = vpop.permute.xlu0 %1672
        %v1676 = vadd.f32 %v1644, %v1671
        %v1677 = vadd.f32 %v1645, %v1673
        %s1678 = sld [smem:[#allocation7 + $0x40]]
        %v1679 = vstv %s1678
        %v1680 = vmul.f32 %v1679, %v1638
        %v1681 = vmul.f32 %v1679, %v1639
        %1684 = vrot.lane.b32.xlu0 %v1680, 127
        %v1685 = vpop.permute.xlu0 %1684
        %1686 = vrot.lane.b32.xlu0 %v1681, 127
        %v1687 = vpop.permute.xlu0 %1686
        %v1690 = vadd.f32 %v1650, %v1685
        %v1691 = vadd.f32 %v1651, %v1687
        %s1692 = sld [smem:[#allocation7 + $0x64]]
        %v1693 = vstv %s1692
        %v1694 = vmul.f32 %v1693, %v1638
        %v1695 = vmul.f32 %v1693, %v1639
        %1698 = vrot.lane.b32.xlu0 %v1694, 127
        %v1699 = vpop.permute.xlu0 %1698
        %1700 = vrot.lane.b32.xlu0 %v1695, 127
        %v1701 = vpop.permute.xlu0 %1700
        %v1704 = vadd.f32 %v1656, %v1699
        %v1705 = vadd.f32 %v1657, %v1701
        %s1706 = sld [smem:[#allocation7 + $0x88]]
        %v1707 = vstv %s1706
        %v1708 = vmul.f32 %v1707, %v1638
        %v1709 = vmul.f32 %v1707, %v1639
        %1712 = vrot.lane.b32.xlu0 %v1708, 127
        %v1713 = vpop.permute.xlu0 %1712
        %1714 = vrot.lane.b32.xlu0 %v1709, 127
        %v1715 = vpop.permute.xlu0 %1714
        %v1718 = vadd.f32 %v1662, %v1713
        %v1719 = vadd.f32 %v1663, %v1715
        %s1720 = sld [smem:[#allocation7 + $0x1d]]
        %v1721 = vstv %s1720
        %v1722 = vmul.f32 %v1721, %v1638
        %v1723 = vmul.f32 %v1721, %v1639
        %1726 = vrot.lane.b32.xlu0 %v1722, 126
        %v1727 = vpop.permute.xlu0 %1726
        %1728 = vrot.lane.b32.xlu0 %v1723, 126
        %v1729 = vpop.permute.xlu0 %1728
        %v1732 = vadd.f32 %v1676, %v1727
        %v1733 = vadd.f32 %v1677, %v1729
        %s1734 = sld [smem:[#allocation7 + $0x41]]
        %v1735 = vstv %s1734
        %v1736 = vmul.f32 %v1735, %v1638
        %v1737 = vmul.f32 %v1735, %v1639
        %1740 = vrot.lane.b32.xlu0 %v1736, 126
        %v1741 = vpop.permute.xlu0 %1740
        %1742 = vrot.lane.b32.xlu0 %v1737, 126
        %v1743 = vpop.permute.xlu0 %1742
        %v1746 = vadd.f32 %v1690, %v1741
        %v1747 = vadd.f32 %v1691, %v1743
        %s1748 = sld [smem:[#allocation7 + $0x65]]
        %v1749 = vstv %s1748
        %v1750 = vmul.f32 %v1749, %v1638
        %v1751 = vmul.f32 %v1749, %v1639
        %1754 = vrot.lane.b32.xlu0 %v1750, 126
        %v1755 = vpop.permute.xlu0 %1754
        %1756 = vrot.lane.b32.xlu0 %v1751, 126
        %v1757 = vpop.permute.xlu0 %1756
        %v1760 = vadd.f32 %v1704, %v1755
        %v1761 = vadd.f32 %v1705, %v1757
        %s1762 = sld [smem:[#allocation7 + $0x89]]
        %v1763 = vstv %s1762
        %v1764 = vmul.f32 %v1763, %v1638
        %v1765 = vmul.f32 %v1763, %v1639
        %1768 = vrot.lane.b32.xlu0 %v1764, 126
        %v1769 = vpop.permute.xlu0 %1768
        %1770 = vrot.lane.b32.xlu0 %v1765, 126
        %v1771 = vpop.permute.xlu0 %1770
        %v1774 = vadd.f32 %v1718, %v1769
        %v1775 = vadd.f32 %v1719, %v1771
        %v1776 = vld [vmem:[%s1637 + $0x1] sm:$0xff]
        %v1777 = vld [vmem:[%s1637 + $0x9] sm:$0xff]
        %s1778 = sld [smem:[#allocation7 + $0x1e]]
        %v1779 = vstv %s1778
        %v1780 = vmul.f32 %v1779, %v1776
        %v1781 = vmul.f32 %v1779, %v1777
        %v1782 = vadd.f32 %v1732, %v1780
        %v1783 = vadd.f32 %v1733, %v1781
        %s1784 = sld [smem:[#allocation7 + $0x42]]
        %v1785 = vstv %s1784
        %v1786 = vmul.f32 %v1785, %v1776
        %v1787 = vmul.f32 %v1785, %v1777
        %v1788 = vadd.f32 %v1746, %v1786
        %v1789 = vadd.f32 %v1747, %v1787
        %s1790 = sld [smem:[#allocation7 + $0x66]]
        %v1791 = vstv %s1790
        %v1792 = vmul.f32 %v1791, %v1776
        %v1793 = vmul.f32 %v1791, %v1777
        %v1794 = vadd.f32 %v1760, %v1792
        %v1795 = vadd.f32 %v1761, %v1793
        %s1796 = sld [smem:[#allocation7 + $0x8a]]
        %v1797 = vstv %s1796
        %v1798 = vmul.f32 %v1797, %v1776
        %v1799 = vmul.f32 %v1797, %v1777
        %v1800 = vadd.f32 %v1774, %v1798
        %v1801 = vadd.f32 %v1775, %v1799
        %s1802 = sld [smem:[#allocation7 + $0x1f]]
        %v1803 = vstv %s1802
        %v1804 = vmul.f32 %v1803, %v1776
        %v1805 = vmul.f32 %v1803, %v1777
        %1808 = vrot.lane.b32.xlu0 %v1804, 127
        %v1809 = vpop.permute.xlu0 %1808
        %1810 = vrot.lane.b32.xlu0 %v1805, 127
        %v1811 = vpop.permute.xlu0 %1810
        %v1814 = vadd.f32 %v1782, %v1809
        %v1815 = vadd.f32 %v1783, %v1811
        %s1816 = sld [smem:[#allocation7 + $0x43]]
        %v1817 = vstv %s1816
        %v1818 = vmul.f32 %v1817, %v1776
        %v1819 = vmul.f32 %v1817, %v1777
        %1822 = vrot.lane.b32.xlu0 %v1818, 127
        %v1823 = vpop.permute.xlu0 %1822
        %1824 = vrot.lane.b32.xlu0 %v1819, 127
        %v1825 = vpop.permute.xlu0 %1824
        %v1828 = vadd.f32 %v1788, %v1823
        %v1829 = vadd.f32 %v1789, %v1825
        %s1830 = sld [smem:[#allocation7 + $0x67]]
        %v1831 = vstv %s1830
        %v1832 = vmul.f32 %v1831, %v1776
        %v1833 = vmul.f32 %v1831, %v1777
        %1836 = vrot.lane.b32.xlu0 %v1832, 127
        %v1837 = vpop.permute.xlu0 %1836
        %1838 = vrot.lane.b32.xlu0 %v1833, 127
        %v1839 = vpop.permute.xlu0 %1838
        %v1842 = vadd.f32 %v1794, %v1837
        %v1843 = vadd.f32 %v1795, %v1839
        %s1844 = sld [smem:[#allocation7 + $0x8b]]
        %v1845 = vstv %s1844
        %v1846 = vmul.f32 %v1845, %v1776
        %v1847 = vmul.f32 %v1845, %v1777
        %1850 = vrot.lane.b32.xlu0 %v1846, 127
        %v1851 = vpop.permute.xlu0 %1850
        %1852 = vrot.lane.b32.xlu0 %v1847, 127
        %v1853 = vpop.permute.xlu0 %1852
        %v1856 = vadd.f32 %v1800, %v1851
        %v1857 = vadd.f32 %v1801, %v1853
        %s1858 = sld [smem:[#allocation7 + $0x20]]
        %v1859 = vstv %s1858
        %v1860 = vmul.f32 %v1859, %v1776
        %v1861 = vmul.f32 %v1859, %v1777
        %1864 = vrot.lane.b32.xlu0 %v1860, 126
        %v1865 = vpop.permute.xlu0 %1864
        %1866 = vrot.lane.b32.xlu0 %v1861, 126
        %v1867 = vpop.permute.xlu0 %1866
        %v1870 = vadd.f32 %v1814, %v1865
        %v1871 = vadd.f32 %v1815, %v1867
        %s1872 = sld [smem:[#allocation7 + $0x44]]
        %v1873 = vstv %s1872
        %v1874 = vmul.f32 %v1873, %v1776
        %v1875 = vmul.f32 %v1873, %v1777
        %1878 = vrot.lane.b32.xlu0 %v1874, 126
        %v1879 = vpop.permute.xlu0 %1878
        %1880 = vrot.lane.b32.xlu0 %v1875, 126
        %v1881 = vpop.permute.xlu0 %1880
        %v1884 = vadd.f32 %v1828, %v1879
        %v1885 = vadd.f32 %v1829, %v1881
        %s1886 = sld [smem:[#allocation7 + $0x68]]
        %v1887 = vstv %s1886
        %v1888 = vmul.f32 %v1887, %v1776
        %v1889 = vmul.f32 %v1887, %v1777
        %1892 = vrot.lane.b32.xlu0 %v1888, 126
        %v1893 = vpop.permute.xlu0 %1892
        %1894 = vrot.lane.b32.xlu0 %v1889, 126
        %v1895 = vpop.permute.xlu0 %1894
        %v1898 = vadd.f32 %v1842, %v1893
        %v1899 = vadd.f32 %v1843, %v1895
        %s1900 = sld [smem:[#allocation7 + $0x8c]]
        %v1901 = vstv %s1900
        %v1902 = vmul.f32 %v1901, %v1776
        %v1903 = vmul.f32 %v1901, %v1777
        %1906 = vrot.lane.b32.xlu0 %v1902, 126
        %v1907 = vpop.permute.xlu0 %1906
        %1908 = vrot.lane.b32.xlu0 %v1903, 126
        %v1909 = vpop.permute.xlu0 %1908
        %v1912 = vadd.f32 %v1856, %v1907
        %v1913 = vadd.f32 %v1857, %v1909
        %v1914 = vld [vmem:[%s1637 + $0x2] sm:$0xff]
        %v1915 = vld [vmem:[%s1637 + $0xa] sm:$0xff]
        %s1916 = sld [smem:[#allocation7 + $0x21]]
        %v1917 = vstv %s1916
        %v1918 = vmul.f32 %v1917, %v1914
        %v1919 = vmul.f32 %v1917, %v1915
        %v1920 = vadd.f32 %v1870, %v1918
        %v1921 = vadd.f32 %v1871, %v1919
        %s1922 = sld [smem:[#allocation7 + $0x45]]
        %v1923 = vstv %s1922
        %v1924 = vmul.f32 %v1923, %v1914
        %v1925 = vmul.f32 %v1923, %v1915
        %v1926 = vadd.f32 %v1884, %v1924
        %v1927 = vadd.f32 %v1885, %v1925
        %s1928 = sld [smem:[#allocation7 + $0x69]]
        %v1929 = vstv %s1928
        %v1930 = vmul.f32 %v1929, %v1914
        %v1931 = vmul.f32 %v1929, %v1915
        %v1932 = vadd.f32 %v1898, %v1930
        %v1933 = vadd.f32 %v1899, %v1931
        %s1934 = sld [smem:[#allocation7 + $0x8d]]
        %v1935 = vstv %s1934
        %v1936 = vmul.f32 %v1935, %v1914
        %v1937 = vmul.f32 %v1935, %v1915
        %v1938 = vadd.f32 %v1912, %v1936
        %v1939 = vadd.f32 %v1913, %v1937
        %s1940 = sld [smem:[#allocation7 + $0x22]]
        %v1941 = vstv %s1940
        %v1942 = vmul.f32 %v1941, %v1914
        %v1943 = vmul.f32 %v1941, %v1915
        %1946 = vrot.lane.b32.xlu0 %v1942, 127
        %v1947 = vpop.permute.xlu0 %1946
        %1948 = vrot.lane.b32.xlu0 %v1943, 127
        %v1949 = vpop.permute.xlu0 %1948
        %v1952 = vadd.f32 %v1920, %v1947
        %v1953 = vadd.f32 %v1921, %v1949
        %s1954 = sld [smem:[#allocation7 + $0x46]]
        %v1955 = vstv %s1954
        %v1956 = vmul.f32 %v1955, %v1914
        %v1957 = vmul.f32 %v1955, %v1915
        %1960 = vrot.lane.b32.xlu0 %v1956, 127
        %v1961 = vpop.permute.xlu0 %1960
        %1962 = vrot.lane.b32.xlu0 %v1957, 127
        %v1963 = vpop.permute.xlu0 %1962
        %v1966 = vadd.f32 %v1926, %v1961
        %v1967 = vadd.f32 %v1927, %v1963
        %s1968 = sld [smem:[#allocation7 + $0x6a]]
        %v1969 = vstv %s1968
        %v1970 = vmul.f32 %v1969, %v1914
        %v1971 = vmul.f32 %v1969, %v1915
        %1974 = vrot.lane.b32.xlu0 %v1970, 127
        %v1975 = vpop.permute.xlu0 %1974
        %1976 = vrot.lane.b32.xlu0 %v1971, 127
        %v1977 = vpop.permute.xlu0 %1976
        %v1980 = vadd.f32 %v1932, %v1975
        %v1981 = vadd.f32 %v1933, %v1977
        %s1982 = sld [smem:[#allocation7 + $0x8e]]
        %v1983 = vstv %s1982
        %v1984 = vmul.f32 %v1983, %v1914
        %v1985 = vmul.f32 %v1983, %v1915
        %1988 = vrot.lane.b32.xlu0 %v1984, 127
        %v1989 = vpop.permute.xlu0 %1988
        %1990 = vrot.lane.b32.xlu0 %v1985, 127
        %v1991 = vpop.permute.xlu0 %1990
        %v1994 = vadd.f32 %v1938, %v1989
        %v1995 = vadd.f32 %v1939, %v1991
        %s1996 = sld [smem:[#allocation7 + $0x23]]
        %v1997 = vstv %s1996
        %v1998 = vmul.f32 %v1997, %v1914
        %v1999 = vmul.f32 %v1997, %v1915
        %2002 = vrot.lane.b32.xlu0 %v1998, 126
        %v2003 = vpop.permute.xlu0 %2002
        %2004 = vrot.lane.b32.xlu0 %v1999, 126
        %v2005 = vpop.permute.xlu0 %2004
        %v2008 = vadd.f32 %v1952, %v2003
        %v2009 = vadd.f32 %v1953, %v2005
        %s2010 = sld [smem:[#allocation7 + $0x47]]
        %v2011 = vstv %s2010
        %v2012 = vmul.f32 %v2011, %v1914
        %v2013 = vmul.f32 %v2011, %v1915
        %2016 = vrot.lane.b32.xlu0 %v2012, 126
        %v2017 = vpop.permute.xlu0 %2016
        %2018 = vrot.lane.b32.xlu0 %v2013, 126
        %v2019 = vpop.permute.xlu0 %2018
        %v2022 = vadd.f32 %v1966, %v2017
        %v2023 = vadd.f32 %v1967, %v2019
        %s2024 = sld [smem:[#allocation7 + $0x6b]]
        %v2025 = vstv %s2024
        %v2026 = vmul.f32 %v2025, %v1914
        %v2027 = vmul.f32 %v2025, %v1915
        %2030 = vrot.lane.b32.xlu0 %v2026, 126
        %v2031 = vpop.permute.xlu0 %2030
        %2032 = vrot.lane.b32.xlu0 %v2027, 126
        %v2033 = vpop.permute.xlu0 %2032
        %v2036 = vadd.f32 %v1980, %v2031
        %v2037 = vadd.f32 %v1981, %v2033
        %s2038 = sld [smem:[#allocation7 + $0x8f]]
        %v2039 = vstv %s2038
        %v2040 = vmul.f32 %v2039, %v1914
        %v2041 = vmul.f32 %v2039, %v1915
        %2044 = vrot.lane.b32.xlu0 %v2040, 126
        %v2045 = vpop.permute.xlu0 %2044
        %2046 = vrot.lane.b32.xlu0 %v2041, 126
        %v2047 = vpop.permute.xlu0 %2046
        %v2050 = vadd.f32 %v1994, %v2045
        %v2051 = vadd.f32 %v1995, %v2047
        %v2052 = vmul.f32 %v2008, 0.70710677
        %v2053 = vmul.f32 %v2009, 0.70710677
        %v2054 = vand.u32 2147483647, %v2052
        %v2055 = vand.u32 2147483647, %v2053
        %v2056 = vmul.f32 %v2054, 0.3275911
        %v2057 = vmul.f32 %v2055, 0.3275911
        %v2058 = vadd.f32 %v2056, 1.0
        %v2059 = vadd.f32 %v2057, 1.0
        %v2060 = vrcp.pop %v2058
        %v2061 = vmul.f32 1.0, %v2060
        %v2062 = vrcp.pop %v2059
        %v2063 = vmul.f32 1.0, %v2062
        %v2064 = vmul.f32 %v2061, 1.0614054
        %v2065 = vmul.f32 %v2063, 1.0614054
        %v2066 = vadd.f32 %v2064, -1.4531521
        %v2067 = vadd.f32 %v2065, -1.4531521
        %v2068 = vmul.f32 %v2061, %v2066
        %v2069 = vmul.f32 %v2063, %v2067
        %v2070 = vadd.f32 %v2068, 1.4214138
        %v2071 = vadd.f32 %v2069, 1.4214138
        %v2072 = vmul.f32 %v2061, %v2070
        %v2073 = vmul.f32 %v2063, %v2071
        %v2074 = vadd.f32 %v2072, -0.28449672
        %v2075 = vadd.f32 %v2073, -0.28449672
        %v2076 = vmul.f32 %v2061, %v2074
        %v2077 = vmul.f32 %v2063, %v2075
        %v2078 = vadd.f32 %v2076, 0.2548296
        %v2079 = vadd.f32 %v2077, 0.2548296
        %v2080 = vmul.f32 %v2061, %v2078
        %v2081 = vmul.f32 %v2063, %v2079
        %v2082 = vsub.f32 0.0, %v2054
        %v2083 = vsub.f32 0.0, %v2055
        %v2084 = vmul.f32 %v2082, %v2054
        %v2085 = vmul.f32 %v2083, %v2055
        %v2086 = vmul.f32 %v2084, 1.442695
        %v2087 = vpow.pop %v2086
        %v2088 = vmul.f32 %v2085, 1.442695
        %v2089 = vpow.pop %v2088
        %v2090 = vmul.f32 %v2080, %v2087
        %v2091 = vmul.f32 %v2081, %v2089
        %v2092 = vsub.f32 1.0, %v2090
        %v2093 = vsub.f32 1.0, %v2091
        %vm2094 = vcmp.ge.f32.partialorder %v2052, 0.0
        %vm2095 = vcmp.ge.f32.partialorder %v2053, 0.0
        %v2096 = vsub.f32 0.0, %v2092
        %v2097 = vsub.f32 0.0, %v2093
        %v2098 = vsel %vm2094, %v2092, %v2096
        %v2099 = vsel %vm2095, %v2093, %v2097
        %v2100 = vmul.f32 %v2008, 0.5
        %v2101 = vmul.f32 %v2009, 0.5
        %v2102 = vadd.f32 %v2098, 1.0
        %v2103 = vadd.f32 %v2099, 1.0
        %v2104 = vmul.f32 %v2100, %v2102
        %v2105 = vmul.f32 %v2101, %v2103
        %2108 = vrot.lane.b32.xlu0 %v2104, 1
        %v2109 = vpop.permute.xlu0 %2108
        %2110 = vrot.lane.b32.xlu0 %v2105, 1
        %v2111 = vpop.permute.xlu0 %2110
        %2114 = vst.msk [vmem:[#allocation2 + $0x1] sm:$0xff] %vm372, %v2109
        %2115 = vst.msk [vmem:[#allocation2 + $0x9] sm:$0xff] %vm372, %v2111
        %v2116 = vmul.f32 %v2022, 0.70710677
        %v2117 = vmul.f32 %v2023, 0.70710677
        %v2118 = vand.u32 2147483647, %v2116
        %v2119 = vand.u32 2147483647, %v2117
        %v2120 = vmul.f32 %v2118, 0.3275911
        %v2121 = vmul.f32 %v2119, 0.3275911
        %v2122 = vadd.f32 %v2120, 1.0
        %v2123 = vadd.f32 %v2121, 1.0
        %v2124 = vrcp.pop %v2122
        %v2125 = vmul.f32 1.0, %v2124
        %v2126 = vrcp.pop %v2123
        %v2127 = vmul.f32 1.0, %v2126
        %v2128 = vmul.f32 %v2125, 1.0614054
        %v2129 = vmul.f32 %v2127, 1.0614054
        %v2130 = vadd.f32 %v2128, -1.4531521
        %v2131 = vadd.f32 %v2129, -1.4531521
        %v2132 = vmul.f32 %v2125, %v2130
        %v2133 = vmul.f32 %v2127, %v2131
        %v2134 = vadd.f32 %v2132, 1.4214138
        %v2135 = vadd.f32 %v2133, 1.4214138
        %v2136 = vmul.f32 %v2125, %v2134
        %v2137 = vmul.f32 %v2127, %v2135
        %v2138 = vadd.f32 %v2136, -0.28449672
        %v2139 = vadd.f32 %v2137, -0.28449672
        %v2140 = vmul.f32 %v2125, %v2138
        %v2141 = vmul.f32 %v2127, %v2139
        %v2142 = vadd.f32 %v2140, 0.2548296
        %v2143 = vadd.f32 %v2141, 0.2548296
        %v2144 = vmul.f32 %v2125, %v2142
        %v2145 = vmul.f32 %v2127, %v2143
        %v2146 = vsub.f32 0.0, %v2118
        %v2147 = vsub.f32 0.0, %v2119
        %v2148 = vmul.f32 %v2146, %v2118
        %v2149 = vmul.f32 %v2147, %v2119
        %v2150 = vmul.f32 %v2148, 1.442695
        %v2151 = vpow.pop %v2150
        %v2152 = vmul.f32 %v2149, 1.442695
        %v2153 = vpow.pop %v2152
        %v2154 = vmul.f32 %v2144, %v2151
        %v2155 = vmul.f32 %v2145, %v2153
        %v2156 = vsub.f32 1.0, %v2154
        %v2157 = vsub.f32 1.0, %v2155
        %vm2158 = vcmp.ge.f32.partialorder %v2116, 0.0
        %vm2159 = vcmp.ge.f32.partialorder %v2117, 0.0
        %v2160 = vsub.f32 0.0, %v2156
        %v2161 = vsub.f32 0.0, %v2157
        %v2162 = vsel %vm2158, %v2156, %v2160
        %v2163 = vsel %vm2159, %v2157, %v2161
        %v2164 = vmul.f32 %v2022, 0.5
        %v2165 = vmul.f32 %v2023, 0.5
        %v2166 = vadd.f32 %v2162, 1.0
        %v2167 = vadd.f32 %v2163, 1.0
        %v2168 = vmul.f32 %v2164, %v2166
        %v2169 = vmul.f32 %v2165, %v2167
        %2172 = vrot.lane.b32.xlu0 %v2168, 1
        %v2173 = vpop.permute.xlu0 %2172
        %2174 = vrot.lane.b32.xlu0 %v2169, 1
        %v2175 = vpop.permute.xlu0 %2174
        %2178 = vst.msk [vmem:[%s807 + $0x1] sm:$0xff] %vm372, %v2173
        %2179 = vst.msk [vmem:[%s807 + $0x9] sm:$0xff] %vm372, %v2175
        %v2180 = vmul.f32 %v2036, 0.70710677
        %v2181 = vmul.f32 %v2037, 0.70710677
        %v2182 = vand.u32 2147483647, %v2180
        %v2183 = vand.u32 2147483647, %v2181
        %v2184 = vmul.f32 %v2182, 0.3275911
        %v2185 = vmul.f32 %v2183, 0.3275911
        %v2186 = vadd.f32 %v2184, 1.0
        %v2187 = vadd.f32 %v2185, 1.0
        %v2188 = vrcp.pop %v2186
        %v2189 = vmul.f32 1.0, %v2188
        %v2190 = vrcp.pop %v2187
        %v2191 = vmul.f32 1.0, %v2190
        %v2192 = vmul.f32 %v2189, 1.0614054
        %v2193 = vmul.f32 %v2191, 1.0614054
        %v2194 = vadd.f32 %v2192, -1.4531521
        %v2195 = vadd.f32 %v2193, -1.4531521
        %v2196 = vmul.f32 %v2189, %v2194
        %v2197 = vmul.f32 %v2191, %v2195
        %v2198 = vadd.f32 %v2196, 1.4214138
        %v2199 = vadd.f32 %v2197, 1.4214138
        %v2200 = vmul.f32 %v2189, %v2198
        %v2201 = vmul.f32 %v2191, %v2199
        %v2202 = vadd.f32 %v2200, -0.28449672
        %v2203 = vadd.f32 %v2201, -0.28449672
        %v2204 = vmul.f32 %v2189, %v2202
        %v2205 = vmul.f32 %v2191, %v2203
        %v2206 = vadd.f32 %v2204, 0.2548296
        %v2207 = vadd.f32 %v2205, 0.2548296
        %v2208 = vmul.f32 %v2189, %v2206
        %v2209 = vmul.f32 %v2191, %v2207
        %v2210 = vsub.f32 0.0, %v2182
        %v2211 = vsub.f32 0.0, %v2183
        %v2212 = vmul.f32 %v2210, %v2182
        %v2213 = vmul.f32 %v2211, %v2183
        %v2214 = vmul.f32 %v2212, 1.442695
        %v2215 = vpow.pop %v2214
        %v2216 = vmul.f32 %v2213, 1.442695
        %v2217 = vpow.pop %v2216
        %v2218 = vmul.f32 %v2208, %v2215
        %v2219 = vmul.f32 %v2209, %v2217
        %v2220 = vsub.f32 1.0, %v2218
        %v2221 = vsub.f32 1.0, %v2219
        %vm2222 = vcmp.ge.f32.partialorder %v2180, 0.0
        %vm2223 = vcmp.ge.f32.partialorder %v2181, 0.0
        %v2224 = vsub.f32 0.0, %v2220
        %v2225 = vsub.f32 0.0, %v2221
        %v2226 = vsel %vm2222, %v2220, %v2224
        %v2227 = vsel %vm2223, %v2221, %v2225
        %v2228 = vmul.f32 %v2036, 0.5
        %v2229 = vmul.f32 %v2037, 0.5
        %v2230 = vadd.f32 %v2226, 1.0
        %v2231 = vadd.f32 %v2227, 1.0
        %v2232 = vmul.f32 %v2228, %v2230
        %v2233 = vmul.f32 %v2229, %v2231
        %2236 = vrot.lane.b32.xlu0 %v2232, 1
        %v2237 = vpop.permute.xlu0 %2236
        %2238 = vrot.lane.b32.xlu0 %v2233, 1
        %v2239 = vpop.permute.xlu0 %2238
        %2242 = vst.msk [vmem:[%s1222 + $0x1] sm:$0xff] %vm372, %v2237
        %2243 = vst.msk [vmem:[%s1222 + $0x9] sm:$0xff] %vm372, %v2239
        %v2244 = vmul.f32 %v2050, 0.70710677
        %v2245 = vmul.f32 %v2051, 0.70710677
        %v2246 = vand.u32 2147483647, %v2244
        %v2247 = vand.u32 2147483647, %v2245
        %v2248 = vmul.f32 %v2246, 0.3275911
        %v2249 = vmul.f32 %v2247, 0.3275911
        %v2250 = vadd.f32 %v2248, 1.0
        %v2251 = vadd.f32 %v2249, 1.0
        %v2252 = vrcp.pop %v2250
        %v2253 = vmul.f32 1.0, %v2252
        %v2254 = vrcp.pop %v2251
        %v2255 = vmul.f32 1.0, %v2254
        %v2256 = vmul.f32 %v2253, 1.0614054
        %v2257 = vmul.f32 %v2255, 1.0614054
        %v2258 = vadd.f32 %v2256, -1.4531521
        %v2259 = vadd.f32 %v2257, -1.4531521
        %v2260 = vmul.f32 %v2253, %v2258
        %v2261 = vmul.f32 %v2255, %v2259
        %v2262 = vadd.f32 %v2260, 1.4214138
        %v2263 = vadd.f32 %v2261, 1.4214138
        %v2264 = vmul.f32 %v2253, %v2262
        %v2265 = vmul.f32 %v2255, %v2263
        %v2266 = vadd.f32 %v2264, -0.28449672
        %v2267 = vadd.f32 %v2265, -0.28449672
        %v2268 = vmul.f32 %v2253, %v2266
        %v2269 = vmul.f32 %v2255, %v2267
        %v2270 = vadd.f32 %v2268, 0.2548296
        %v2271 = vadd.f32 %v2269, 0.2548296
        %v2272 = vmul.f32 %v2253, %v2270
        %v2273 = vmul.f32 %v2255, %v2271
        %v2274 = vsub.f32 0.0, %v2246
        %v2275 = vsub.f32 0.0, %v2247
        %v2276 = vmul.f32 %v2274, %v2246
        %v2277 = vmul.f32 %v2275, %v2247
        %v2278 = vmul.f32 %v2276, 1.442695
        %v2279 = vpow.pop %v2278
        %v2280 = vmul.f32 %v2277, 1.442695
        %v2281 = vpow.pop %v2280
        %v2282 = vmul.f32 %v2272, %v2279
        %v2283 = vmul.f32 %v2273, %v2281
        %v2284 = vsub.f32 1.0, %v2282
        %v2285 = vsub.f32 1.0, %v2283
        %vm2286 = vcmp.ge.f32.partialorder %v2244, 0.0
        %vm2287 = vcmp.ge.f32.partialorder %v2245, 0.0
        %v2288 = vsub.f32 0.0, %v2284
        %v2289 = vsub.f32 0.0, %v2285
        %v2290 = vsel %vm2286, %v2284, %v2288
        %v2291 = vsel %vm2287, %v2285, %v2289
        %v2292 = vmul.f32 %v2050, 0.5
        %v2293 = vmul.f32 %v2051, 0.5
        %v2294 = vadd.f32 %v2290, 1.0
        %v2295 = vadd.f32 %v2291, 1.0
        %v2296 = vmul.f32 %v2292, %v2294
        %v2297 = vmul.f32 %v2293, %v2295
        %2300 = vrot.lane.b32.xlu0 %v2296, 1
        %v2301 = vpop.permute.xlu0 %2300
        %2302 = vrot.lane.b32.xlu0 %v2297, 1
        %v2303 = vpop.permute.xlu0 %2302
        %2306 = vst.msk [vmem:[%s1637 + $0x1] sm:$0xff] %vm372, %v2301
        %2307 = vst.msk [vmem:[%s1637 + $0x9] sm:$0xff] %vm372, %v2303
        %s2308 = sld [smem:[#allocation11]]
        %v2309 = vstv %s2308
        %v2310 = vadd.f32 %v2309, 0.0
        %s2311 = sld [smem:[#allocation11 + $0x1]]
        %v2312 = vstv %s2311
        %v2313 = vadd.f32 %v2312, 0.0
        %s2314 = sld [smem:[#allocation11 + $0x2]]
        %v2315 = vstv %s2314
        %v2316 = vadd.f32 %v2315, 0.0
        %s2317 = sld [smem:[#allocation11 + $0x3]]
        %v2318 = vstv %s2317
        %v2319 = vadd.f32 %v2318, 0.0
        %v2320 = vld [vmem:[#allocation2] sm:$0xff]
        %v2321 = vld [vmem:[#allocation2 + $0x8] sm:$0xff]
        %s2322 = sld [smem:[#allocation10]]
        %v2323 = vstv %s2322
        %v2324 = vmul.f32 %v2323, %v2320
        %v2325 = vmul.f32 %v2323, %v2321
        %v2326 = vadd.f32 %v2310, %v2324
        %v2327 = vadd.f32 %v2310, %v2325
        %s2328 = sld [smem:[#allocation10 + $0x24]]
        %v2329 = vstv %s2328
        %v2330 = vmul.f32 %v2329, %v2320
        %v2331 = vmul.f32 %v2329, %v2321
        %v2332 = vadd.f32 %v2313, %v2330
        %v2333 = vadd.f32 %v2313, %v2331
        %s2334 = sld [smem:[#allocation10 + $0x48]]
        %v2335 = vstv %s2334
        %v2336 = vmul.f32 %v2335, %v2320
        %v2337 = vmul.f32 %v2335, %v2321
        %v2338 = vadd.f32 %v2316, %v2336
        %v2339 = vadd.f32 %v2316, %v2337
        %s2340 = sld [smem:[#allocation10 + $0x6c]]
        %v2341 = vstv %s2340
        %v2342 = vmul.f32 %v2341, %v2320
        %v2343 = vmul.f32 %v2341, %v2321
        %v2344 = vadd.f32 %v2319, %v2342
        %v2345 = vadd.f32 %v2319, %v2343
        %s2346 = sld [smem:[#allocation10 + $0x1]]
        %v2347 = vstv %s2346
        %v2348 = vmul.f32 %v2347, %v2320
        %v2349 = vmul.f32 %v2347, %v2321
        %2352 = vrot.lane.b32.xlu0 %v2348, 127
        %v2353 = vpop.permute.xlu0 %2352
        %2354 = vrot.lane.b32.xlu0 %v2349, 127
        %v2355 = vpop.permute.xlu0 %2354
        %v2358 = vadd.f32 %v2326, %v2353
        %v2359 = vadd.f32 %v2327, %v2355
        %s2360 = sld [smem:[#allocation10 + $0x25]]
        %v2361 = vstv %s2360
        %v2362 = vmul.f32 %v2361, %v2320
        %v2363 = vmul.f32 %v2361, %v2321
        %2366 = vrot.lane.b32.xlu0 %v2362, 127
        %v2367 = vpop.permute.xlu0 %2366
        %2368 = vrot.lane.b32.xlu0 %v2363, 127
        %v2369 = vpop.permute.xlu0 %2368
        %v2372 = vadd.f32 %v2332, %v2367
        %v2373 = vadd.f32 %v2333, %v2369
        %s2374 = sld [smem:[#allocation10 + $0x49]]
        %v2375 = vstv %s2374
        %v2376 = vmul.f32 %v2375, %v2320
        %v2377 = vmul.f32 %v2375, %v2321
        %2380 = vrot.lane.b32.xlu0 %v2376, 127
        %v2381 = vpop.permute.xlu0 %2380
        %2382 = vrot.lane.b32.xlu0 %v2377, 127
        %v2383 = vpop.permute.xlu0 %2382
        %v2386 = vadd.f32 %v2338, %v2381
        %v2387 = vadd.f32 %v2339, %v2383
        %s2388 = sld [smem:[#allocation10 + $0x6d]]
        %v2389 = vstv %s2388
        %v2390 = vmul.f32 %v2389, %v2320
        %v2391 = vmul.f32 %v2389, %v2321
        %2394 = vrot.lane.b32.xlu0 %v2390, 127
        %v2395 = vpop.permute.xlu0 %2394
        %2396 = vrot.lane.b32.xlu0 %v2391, 127
        %v2397 = vpop.permute.xlu0 %2396
        %v2400 = vadd.f32 %v2344, %v2395
        %v2401 = vadd.f32 %v2345, %v2397
        %s2402 = sld [smem:[#allocation10 + $0x2]]
        %v2403 = vstv %s2402
        %v2404 = vmul.f32 %v2403, %v2320
        %v2405 = vmul.f32 %v2403, %v2321
        %2408 = vrot.lane.b32.xlu0 %v2404, 126
        %v2409 = vpop.permute.xlu0 %2408
        %2410 = vrot.lane.b32.xlu0 %v2405, 126
        %v2411 = vpop.permute.xlu0 %2410
        %v2414 = vadd.f32 %v2358, %v2409
        %v2415 = vadd.f32 %v2359, %v2411
        %s2416 = sld [smem:[#allocation10 + $0x26]]
        %v2417 = vstv %s2416
        %v2418 = vmul.f32 %v2417, %v2320
        %v2419 = vmul.f32 %v2417, %v2321
        %2422 = vrot.lane.b32.xlu0 %v2418, 126
        %v2423 = vpop.permute.xlu0 %2422
        %2424 = vrot.lane.b32.xlu0 %v2419, 126
        %v2425 = vpop.permute.xlu0 %2424
        %v2428 = vadd.f32 %v2372, %v2423
        %v2429 = vadd.f32 %v2373, %v2425
        %s2430 = sld [smem:[#allocation10 + $0x4a]]
        %v2431 = vstv %s2430
        %v2432 = vmul.f32 %v2431, %v2320
        %v2433 = vmul.f32 %v2431, %v2321
        %2436 = vrot.lane.b32.xlu0 %v2432, 126
        %v2437 = vpop.permute.xlu0 %2436
        %2438 = vrot.lane.b32.xlu0 %v2433, 126
        %v2439 = vpop.permute.xlu0 %2438
        %v2442 = vadd.f32 %v2386, %v2437
        %v2443 = vadd.f32 %v2387, %v2439
        %s2444 = sld [smem:[#allocation10 + $0x6e]]
        %v2445 = vstv %s2444
        %v2446 = vmul.f32 %v2445, %v2320
        %v2447 = vmul.f32 %v2445, %v2321
        %2450 = vrot.lane.b32.xlu0 %v2446, 126
        %v2451 = vpop.permute.xlu0 %2450
        %2452 = vrot.lane.b32.xlu0 %v2447, 126
        %v2453 = vpop.permute.xlu0 %2452
        %v2456 = vadd.f32 %v2400, %v2451
        %v2457 = vadd.f32 %v2401, %v2453
        %v2458 = vld [vmem:[#allocation2 + $0x1] sm:$0xff]
        %v2459 = vld [vmem:[#allocation2 + $0x9] sm:$0xff]
        %s2460 = sld [smem:[#allocation10 + $0x3]]
        %v2461 = vstv %s2460
        %v2462 = vmul.f32 %v2461, %v2458
        %v2463 = vmul.f32 %v2461, %v2459
        %v2464 = vadd.f32 %v2414, %v2462
        %v2465 = vadd.f32 %v2415, %v2463
        %s2466 = sld [smem:[#allocation10 + $0x27]]
        %v2467 = vstv %s2466
        %v2468 = vmul.f32 %v2467, %v2458
        %v2469 = vmul.f32 %v2467, %v2459
        %v2470 = vadd.f32 %v2428, %v2468
        %v2471 = vadd.f32 %v2429, %v2469
        %s2472 = sld [smem:[#allocation10 + $0x4b]]
        %v2473 = vstv %s2472
        %v2474 = vmul.f32 %v2473, %v2458
        %v2475 = vmul.f32 %v2473, %v2459
        %v2476 = vadd.f32 %v2442, %v2474
        %v2477 = vadd.f32 %v2443, %v2475
        %s2478 = sld [smem:[#allocation10 + $0x6f]]
        %v2479 = vstv %s2478
        %v2480 = vmul.f32 %v2479, %v2458
        %v2481 = vmul.f32 %v2479, %v2459
        %v2482 = vadd.f32 %v2456, %v2480
        %v2483 = vadd.f32 %v2457, %v2481
        %s2484 = sld [smem:[#allocation10 + $0x4]]
        %v2485 = vstv %s2484
        %v2486 = vmul.f32 %v2485, %v2458
        %v2487 = vmul.f32 %v2485, %v2459
        %2490 = vrot.lane.b32.xlu0 %v2486, 127
        %v2491 = vpop.permute.xlu0 %2490
        %2492 = vrot.lane.b32.xlu0 %v2487, 127
        %v2493 = vpop.permute.xlu0 %2492
        %v2496 = vadd.f32 %v2464, %v2491
        %v2497 = vadd.f32 %v2465, %v2493
        %s2498 = sld [smem:[#allocation10 + $0x28]]
        %v2499 = vstv %s2498
        %v2500 = vmul.f32 %v2499, %v2458
        %v2501 = vmul.f32 %v2499, %v2459
        %2504 = vrot.lane.b32.xlu0 %v2500, 127
        %v2505 = vpop.permute.xlu0 %2504
        %2506 = vrot.lane.b32.xlu0 %v2501, 127
        %v2507 = vpop.permute.xlu0 %2506
        %v2510 = vadd.f32 %v2470, %v2505
        %v2511 = vadd.f32 %v2471, %v2507
        %s2512 = sld [smem:[#allocation10 + $0x4c]]
        %v2513 = vstv %s2512
        %v2514 = vmul.f32 %v2513, %v2458
        %v2515 = vmul.f32 %v2513, %v2459
        %2518 = vrot.lane.b32.xlu0 %v2514, 127
        %v2519 = vpop.permute.xlu0 %2518
        %2520 = vrot.lane.b32.xlu0 %v2515, 127
        %v2521 = vpop.permute.xlu0 %2520
        %v2524 = vadd.f32 %v2476, %v2519
        %v2525 = vadd.f32 %v2477, %v2521
        %s2526 = sld [smem:[#allocation10 + $0x70]]
        %v2527 = vstv %s2526
        %v2528 = vmul.f32 %v2527, %v2458
        %v2529 = vmul.f32 %v2527, %v2459
        %2532 = vrot.lane.b32.xlu0 %v2528, 127
        %v2533 = vpop.permute.xlu0 %2532
        %2534 = vrot.lane.b32.xlu0 %v2529, 127
        %v2535 = vpop.permute.xlu0 %2534
        %v2538 = vadd.f32 %v2482, %v2533
        %v2539 = vadd.f32 %v2483, %v2535
        %s2540 = sld [smem:[#allocation10 + $0x5]]
        %v2541 = vstv %s2540
        %v2542 = vmul.f32 %v2541, %v2458
        %v2543 = vmul.f32 %v2541, %v2459
        %2546 = vrot.lane.b32.xlu0 %v2542, 126
        %v2547 = vpop.permute.xlu0 %2546
        %2548 = vrot.lane.b32.xlu0 %v2543, 126
        %v2549 = vpop.permute.xlu0 %2548
        %v2552 = vadd.f32 %v2496, %v2547
        %v2553 = vadd.f32 %v2497, %v2549
        %s2554 = sld [smem:[#allocation10 + $0x29]]
        %v2555 = vstv %s2554
        %v2556 = vmul.f32 %v2555, %v2458
        %v2557 = vmul.f32 %v2555, %v2459
        %2560 = vrot.lane.b32.xlu0 %v2556, 126
        %v2561 = vpop.permute.xlu0 %2560
        %2562 = vrot.lane.b32.xlu0 %v2557, 126
        %v2563 = vpop.permute.xlu0 %2562
        %v2566 = vadd.f32 %v2510, %v2561
        %v2567 = vadd.f32 %v2511, %v2563
        %s2568 = sld [smem:[#allocation10 + $0x4d]]
        %v2569 = vstv %s2568
        %v2570 = vmul.f32 %v2569, %v2458
        %v2571 = vmul.f32 %v2569, %v2459
        %2574 = vrot.lane.b32.xlu0 %v2570, 126
        %v2575 = vpop.permute.xlu0 %2574
        %2576 = vrot.lane.b32.xlu0 %v2571, 126
        %v2577 = vpop.permute.xlu0 %2576
        %v2580 = vadd.f32 %v2524, %v2575
        %v2581 = vadd.f32 %v2525, %v2577
        %s2582 = sld [smem:[#allocation10 + $0x71]]
        %v2583 = vstv %s2582
        %v2584 = vmul.f32 %v2583, %v2458
        %v2585 = vmul.f32 %v2583, %v2459
        %2588 = vrot.lane.b32.xlu0 %v2584, 126
        %v2589 = vpop.permute.xlu0 %2588
        %2590 = vrot.lane.b32.xlu0 %v2585, 126
        %v2591 = vpop.permute.xlu0 %2590
        %v2594 = vadd.f32 %v2538, %v2589
        %v2595 = vadd.f32 %v2539, %v2591
        %v2596 = vld [vmem:[#allocation2 + $0x2] sm:$0xff]
        %v2597 = vld [vmem:[#allocation2 + $0xa] sm:$0xff]
        %s2598 = sld [smem:[#allocation10 + $0x6]]
        %v2599 = vstv %s2598
        %v2600 = vmul.f32 %v2599, %v2596
        %v2601 = vmul.f32 %v2599, %v2597
        %v2602 = vadd.f32 %v2552, %v2600
        %v2603 = vadd.f32 %v2553, %v2601
        %s2604 = sld [smem:[#allocation10 + $0x2a]]
        %v2605 = vstv %s2604
        %v2606 = vmul.f32 %v2605, %v2596
        %v2607 = vmul.f32 %v2605, %v2597
        %v2608 = vadd.f32 %v2566, %v2606
        %v2609 = vadd.f32 %v2567, %v2607
        %s2610 = sld [smem:[#allocation10 + $0x4e]]
        %v2611 = vstv %s2610
        %v2612 = vmul.f32 %v2611, %v2596
        %v2613 = vmul.f32 %v2611, %v2597
        %v2614 = vadd.f32 %v2580, %v2612
        %v2615 = vadd.f32 %v2581, %v2613
        %s2616 = sld [smem:[#allocation10 + $0x72]]
        %v2617 = vstv %s2616
        %v2618 = vmul.f32 %v2617, %v2596
        %v2619 = vmul.f32 %v2617, %v2597
        %v2620 = vadd.f32 %v2594, %v2618
        %v2621 = vadd.f32 %v2595, %v2619
        %s2622 = sld [smem:[#allocation10 + $0x7]]
        %v2623 = vstv %s2622
        %v2624 = vmul.f32 %v2623, %v2596
        %v2625 = vmul.f32 %v2623, %v2597
        %2628 = vrot.lane.b32.xlu0 %v2624, 127
        %v2629 = vpop.permute.xlu0 %2628
        %2630 = vrot.lane.b32.xlu0 %v2625, 127
        %v2631 = vpop.permute.xlu0 %2630
        %v2634 = vadd.f32 %v2602, %v2629
        %v2635 = vadd.f32 %v2603, %v2631
        %s2636 = sld [smem:[#allocation10 + $0x2b]]
        %v2637 = vstv %s2636
        %v2638 = vmul.f32 %v2637, %v2596
        %v2639 = vmul.f32 %v2637, %v2597
        %2642 = vrot.lane.b32.xlu0 %v2638, 127
        %v2643 = vpop.permute.xlu0 %2642
        %2644 = vrot.lane.b32.xlu0 %v2639, 127
        %v2645 = vpop.permute.xlu0 %2644
        %v2648 = vadd.f32 %v2608, %v2643
        %v2649 = vadd.f32 %v2609, %v2645
        %s2650 = sld [smem:[#allocation10 + $0x4f]]
        %v2651 = vstv %s2650
        %v2652 = vmul.f32 %v2651, %v2596
        %v2653 = vmul.f32 %v2651, %v2597
        %2656 = vrot.lane.b32.xlu0 %v2652, 127
        %v2657 = vpop.permute.xlu0 %2656
        %2658 = vrot.lane.b32.xlu0 %v2653, 127
        %v2659 = vpop.permute.xlu0 %2658
        %v2662 = vadd.f32 %v2614, %v2657
        %v2663 = vadd.f32 %v2615, %v2659
        %s2664 = sld [smem:[#allocation10 + $0x73]]
        %v2665 = vstv %s2664
        %v2666 = vmul.f32 %v2665, %v2596
        %v2667 = vmul.f32 %v2665, %v2597
        %2670 = vrot.lane.b32.xlu0 %v2666, 127
        %v2671 = vpop.permute.xlu0 %2670
        %2672 = vrot.lane.b32.xlu0 %v2667, 127
        %v2673 = vpop.permute.xlu0 %2672
        %v2676 = vadd.f32 %v2620, %v2671
        %v2677 = vadd.f32 %v2621, %v2673
        %s2678 = sld [smem:[#allocation10 + $0x8]]
        %v2679 = vstv %s2678
        %v2680 = vmul.f32 %v2679, %v2596
        %v2681 = vmul.f32 %v2679, %v2597
        %2684 = vrot.lane.b32.xlu0 %v2680, 126
        %v2685 = vpop.permute.xlu0 %2684
        %2686 = vrot.lane.b32.xlu0 %v2681, 126
        %v2687 = vpop.permute.xlu0 %2686
        %v2690 = vadd.f32 %v2634, %v2685
        %v2691 = vadd.f32 %v2635, %v2687
        %s2692 = sld [smem:[#allocation10 + $0x2c]]
        %v2693 = vstv %s2692
        %v2694 = vmul.f32 %v2693, %v2596
        %v2695 = vmul.f32 %v2693, %v2597
        %2698 = vrot.lane.b32.xlu0 %v2694, 126
        %v2699 = vpop.permute.xlu0 %2698
        %2700 = vrot.lane.b32.xlu0 %v2695, 126
        %v2701 = vpop.permute.xlu0 %2700
        %v2704 = vadd.f32 %v2648, %v2699
        %v2705 = vadd.f32 %v2649, %v2701
        %s2706 = sld [smem:[#allocation10 + $0x50]]
        %v2707 = vstv %s2706
        %v2708 = vmul.f32 %v2707, %v2596
        %v2709 = vmul.f32 %v2707, %v2597
        %2712 = vrot.lane.b32.xlu0 %v2708, 126
        %v2713 = vpop.permute.xlu0 %2712
        %2714 = vrot.lane.b32.xlu0 %v2709, 126
        %v2715 = vpop.permute.xlu0 %2714
        %v2718 = vadd.f32 %v2662, %v2713
        %v2719 = vadd.f32 %v2663, %v2715
        %s2720 = sld [smem:[#allocation10 + $0x74]]
        %v2721 = vstv %s2720
        %v2722 = vmul.f32 %v2721, %v2596
        %v2723 = vmul.f32 %v2721, %v2597
        %2726 = vrot.lane.b32.xlu0 %v2722, 126
        %v2727 = vpop.permute.xlu0 %2726
        %2728 = vrot.lane.b32.xlu0 %v2723, 126
        %v2729 = vpop.permute.xlu0 %2728
        %v2732 = vadd.f32 %v2676, %v2727
        %v2733 = vadd.f32 %v2677, %v2729
        %v2734 = vld [vmem:[%s807] sm:$0xff]
        %v2735 = vld [vmem:[%s807 + $0x8] sm:$0xff]
        %s2736 = sld [smem:[#allocation10 + $0x9]]
        %v2737 = vstv %s2736
        %v2738 = vmul.f32 %v2737, %v2734
        %v2739 = vmul.f32 %v2737, %v2735
        %v2740 = vadd.f32 %v2690, %v2738
        %v2741 = vadd.f32 %v2691, %v2739
        %s2742 = sld [smem:[#allocation10 + $0x2d]]
        %v2743 = vstv %s2742
        %v2744 = vmul.f32 %v2743, %v2734
        %v2745 = vmul.f32 %v2743, %v2735
        %v2746 = vadd.f32 %v2704, %v2744
        %v2747 = vadd.f32 %v2705, %v2745
        %s2748 = sld [smem:[#allocation10 + $0x51]]
        %v2749 = vstv %s2748
        %v2750 = vmul.f32 %v2749, %v2734
        %v2751 = vmul.f32 %v2749, %v2735
        %v2752 = vadd.f32 %v2718, %v2750
        %v2753 = vadd.f32 %v2719, %v2751
        %s2754 = sld [smem:[#allocation10 + $0x75]]
        %v2755 = vstv %s2754
        %v2756 = vmul.f32 %v2755, %v2734
        %v2757 = vmul.f32 %v2755, %v2735
        %v2758 = vadd.f32 %v2732, %v2756
        %v2759 = vadd.f32 %v2733, %v2757
        %s2760 = sld [smem:[#allocation10 + $0xa]]
        %v2761 = vstv %s2760
        %v2762 = vmul.f32 %v2761, %v2734
        %v2763 = vmul.f32 %v2761, %v2735
        %2766 = vrot.lane.b32.xlu0 %v2762, 127
        %v2767 = vpop.permute.xlu0 %2766
        %2768 = vrot.lane.b32.xlu0 %v2763, 127
        %v2769 = vpop.permute.xlu0 %2768
        %v2772 = vadd.f32 %v2740, %v2767
        %v2773 = vadd.f32 %v2741, %v2769
        %s2774 = sld [smem:[#allocation10 + $0x2e]]
        %v2775 = vstv %s2774
        %v2776 = vmul.f32 %v2775, %v2734
        %v2777 = vmul.f32 %v2775, %v2735
        %2780 = vrot.lane.b32.xlu0 %v2776, 127
        %v2781 = vpop.permute.xlu0 %2780
        %2782 = vrot.lane.b32.xlu0 %v2777, 127
        %v2783 = vpop.permute.xlu0 %2782
        %v2786 = vadd.f32 %v2746, %v2781
        %v2787 = vadd.f32 %v2747, %v2783
        %s2788 = sld [smem:[#allocation10 + $0x52]]
        %v2789 = vstv %s2788
        %v2790 = vmul.f32 %v2789, %v2734
        %v2791 = vmul.f32 %v2789, %v2735
        %2794 = vrot.lane.b32.xlu0 %v2790, 127
        %v2795 = vpop.permute.xlu0 %2794
        %2796 = vrot.lane.b32.xlu0 %v2791, 127
        %v2797 = vpop.permute.xlu0 %2796
        %v2800 = vadd.f32 %v2752, %v2795
        %v2801 = vadd.f32 %v2753, %v2797
        %s2802 = sld [smem:[#allocation10 + $0x76]]
        %v2803 = vstv %s2802
        %v2804 = vmul.f32 %v2803, %v2734
        %v2805 = vmul.f32 %v2803, %v2735
        %2808 = vrot.lane.b32.xlu0 %v2804, 127
        %v2809 = vpop.permute.xlu0 %2808
        %2810 = vrot.lane.b32.xlu0 %v2805, 127
        %v2811 = vpop.permute.xlu0 %2810
        %v2814 = vadd.f32 %v2758, %v2809
        %v2815 = vadd.f32 %v2759, %v2811
        %s2816 = sld [smem:[#allocation10 + $0xb]]
        %v2817 = vstv %s2816
        %v2818 = vmul.f32 %v2817, %v2734
        %v2819 = vmul.f32 %v2817, %v2735
        %2822 = vrot.lane.b32.xlu0 %v2818, 126
        %v2823 = vpop.permute.xlu0 %2822
        %2824 = vrot.lane.b32.xlu0 %v2819, 126
        %v2825 = vpop.permute.xlu0 %2824
        %v2828 = vadd.f32 %v2772, %v2823
        %v2829 = vadd.f32 %v2773, %v2825
        %s2830 = sld [smem:[#allocation10 + $0x2f]]
        %v2831 = vstv %s2830
        %v2832 = vmul.f32 %v2831, %v2734
        %v2833 = vmul.f32 %v2831, %v2735
        %2836 = vrot.lane.b32.xlu0 %v2832, 126
        %v2837 = vpop.permute.xlu0 %2836
        %2838 = vrot.lane.b32.xlu0 %v2833, 126
        %v2839 = vpop.permute.xlu0 %2838
        %v2842 = vadd.f32 %v2786, %v2837
        %v2843 = vadd.f32 %v2787, %v2839
        %s2844 = sld [smem:[#allocation10 + $0x53]]
        %v2845 = vstv %s2844
        %v2846 = vmul.f32 %v2845, %v2734
        %v2847 = vmul.f32 %v2845, %v2735
        %2850 = vrot.lane.b32.xlu0 %v2846, 126
        %v2851 = vpop.permute.xlu0 %2850
        %2852 = vrot.lane.b32.xlu0 %v2847, 126
        %v2853 = vpop.permute.xlu0 %2852
        %v2856 = vadd.f32 %v2800, %v2851
        %v2857 = vadd.f32 %v2801, %v2853
        %s2858 = sld [smem:[#allocation10 + $0x77]]
        %v2859 = vstv %s2858
        %v2860 = vmul.f32 %v2859, %v2734
        %v2861 = vmul.f32 %v2859, %v2735
        %2864 = vrot.lane.b32.xlu0 %v2860, 126
        %v2865 = vpop.permute.xlu0 %2864
        %2866 = vrot.lane.b32.xlu0 %v2861, 126
        %v2867 = vpop.permute.xlu0 %2866
        %v2870 = vadd.f32 %v2814, %v2865
        %v2871 = vadd.f32 %v2815, %v2867
        %v2872 = vld [vmem:[%s807 + $0x1] sm:$0xff]
        %v2873 = vld [vmem:[%s807 + $0x9] sm:$0xff]
        %s2874 = sld [smem:[#allocation10 + $0xc]]
        %v2875 = vstv %s2874
        %v2876 = vmul.f32 %v2875, %v2872
        %v2877 = vmul.f32 %v2875, %v2873
        %v2878 = vadd.f32 %v2828, %v2876
        %v2879 = vadd.f32 %v2829, %v2877
        %s2880 = sld [smem:[#allocation10 + $0x30]]
        %v2881 = vstv %s2880
        %v2882 = vmul.f32 %v2881, %v2872
        %v2883 = vmul.f32 %v2881, %v2873
        %v2884 = vadd.f32 %v2842, %v2882
        %v2885 = vadd.f32 %v2843, %v2883
        %s2886 = sld [smem:[#allocation10 + $0x54]]
        %v2887 = vstv %s2886
        %v2888 = vmul.f32 %v2887, %v2872
        %v2889 = vmul.f32 %v2887, %v2873
        %v2890 = vadd.f32 %v2856, %v2888
        %v2891 = vadd.f32 %v2857, %v2889
        %s2892 = sld [smem:[#allocation10 + $0x78]]
        %v2893 = vstv %s2892
        %v2894 = vmul.f32 %v2893, %v2872
        %v2895 = vmul.f32 %v2893, %v2873
        %v2896 = vadd.f32 %v2870, %v2894
        %v2897 = vadd.f32 %v2871, %v2895
        %s2898 = sld [smem:[#allocation10 + $0xd]]
        %v2899 = vstv %s2898
        %v2900 = vmul.f32 %v2899, %v2872
        %v2901 = vmul.f32 %v2899, %v2873
        %2904 = vrot.lane.b32.xlu0 %v2900, 127
        %v2905 = vpop.permute.xlu0 %2904
        %2906 = vrot.lane.b32.xlu0 %v2901, 127
        %v2907 = vpop.permute.xlu0 %2906
        %v2910 = vadd.f32 %v2878, %v2905
        %v2911 = vadd.f32 %v2879, %v2907
        %s2912 = sld [smem:[#allocation10 + $0x31]]
        %v2913 = vstv %s2912
        %v2914 = vmul.f32 %v2913, %v2872
        %v2915 = vmul.f32 %v2913, %v2873
        %2918 = vrot.lane.b32.xlu0 %v2914, 127
        %v2919 = vpop.permute.xlu0 %2918
        %2920 = vrot.lane.b32.xlu0 %v2915, 127
        %v2921 = vpop.permute.xlu0 %2920
        %v2924 = vadd.f32 %v2884, %v2919
        %v2925 = vadd.f32 %v2885, %v2921
        %s2926 = sld [smem:[#allocation10 + $0x55]]
        %v2927 = vstv %s2926
        %v2928 = vmul.f32 %v2927, %v2872
        %v2929 = vmul.f32 %v2927, %v2873
        %2932 = vrot.lane.b32.xlu0 %v2928, 127
        %v2933 = vpop.permute.xlu0 %2932
        %2934 = vrot.lane.b32.xlu0 %v2929, 127
        %v2935 = vpop.permute.xlu0 %2934
        %v2938 = vadd.f32 %v2890, %v2933
        %v2939 = vadd.f32 %v2891, %v2935
        %s2940 = sld [smem:[#allocation10 + $0x79]]
        %v2941 = vstv %s2940
        %v2942 = vmul.f32 %v2941, %v2872
        %v2943 = vmul.f32 %v2941, %v2873
        %2946 = vrot.lane.b32.xlu0 %v2942, 127
        %v2947 = vpop.permute.xlu0 %2946
        %2948 = vrot.lane.b32.xlu0 %v2943, 127
        %v2949 = vpop.permute.xlu0 %2948
        %v2952 = vadd.f32 %v2896, %v2947
        %v2953 = vadd.f32 %v2897, %v2949
        %s2954 = sld [smem:[#allocation10 + $0xe]]
        %v2955 = vstv %s2954
        %v2956 = vmul.f32 %v2955, %v2872
        %v2957 = vmul.f32 %v2955, %v2873
        %2960 = vrot.lane.b32.xlu0 %v2956, 126
        %v2961 = vpop.permute.xlu0 %2960
        %2962 = vrot.lane.b32.xlu0 %v2957, 126
        %v2963 = vpop.permute.xlu0 %2962
        %v2966 = vadd.f32 %v2910, %v2961
        %v2967 = vadd.f32 %v2911, %v2963
        %s2968 = sld [smem:[#allocation10 + $0x32]]
        %v2969 = vstv %s2968
        %v2970 = vmul.f32 %v2969, %v2872
        %v2971 = vmul.f32 %v2969, %v2873
        %2974 = vrot.lane.b32.xlu0 %v2970, 126
        %v2975 = vpop.permute.xlu0 %2974
        %2976 = vrot.lane.b32.xlu0 %v2971, 126
        %v2977 = vpop.permute.xlu0 %2976
        %v2980 = vadd.f32 %v2924, %v2975
        %v2981 = vadd.f32 %v2925, %v2977
        %s2982 = sld [smem:[#allocation10 + $0x56]]
        %v2983 = vstv %s2982
        %v2984 = vmul.f32 %v2983, %v2872
        %v2985 = vmul.f32 %v2983, %v2873
        %2988 = vrot.lane.b32.xlu0 %v2984, 126
        %v2989 = vpop.permute.xlu0 %2988
        %2990 = vrot.lane.b32.xlu0 %v2985, 126
        %v2991 = vpop.permute.xlu0 %2990
        %v2994 = vadd.f32 %v2938, %v2989
        %v2995 = vadd.f32 %v2939, %v2991
        %s2996 = sld [smem:[#allocation10 + $0x7a]]
        %v2997 = vstv %s2996
        %v2998 = vmul.f32 %v2997, %v2872
        %v2999 = vmul.f32 %v2997, %v2873
        %3002 = vrot.lane.b32.xlu0 %v2998, 126
        %v3003 = vpop.permute.xlu0 %3002
        %3004 = vrot.lane.b32.xlu0 %v2999, 126
        %v3005 = vpop.permute.xlu0 %3004
        %v3008 = vadd.f32 %v2952, %v3003
        %v3009 = vadd.f32 %v2953, %v3005
        %v3010 = vld [vmem:[%s807 + $0x2] sm:$0xff]
        %v3011 = vld [vmem:[%s807 + $0xa] sm:$0xff]
        %s3012 = sld [smem:[#allocation10 + $0xf]]
        %v3013 = vstv %s3012
        %v3014 = vmul.f32 %v3013, %v3010
        %v3015 = vmul.f32 %v3013, %v3011
        %v3016 = vadd.f32 %v2966, %v3014
        %v3017 = vadd.f32 %v2967, %v3015
        %s3018 = sld [smem:[#allocation10 + $0x33]]
        %v3019 = vstv %s3018
        %v3020 = vmul.f32 %v3019, %v3010
        %v3021 = vmul.f32 %v3019, %v3011
        %v3022 = vadd.f32 %v2980, %v3020
        %v3023 = vadd.f32 %v2981, %v3021
        %s3024 = sld [smem:[#allocation10 + $0x57]]
        %v3025 = vstv %s3024
        %v3026 = vmul.f32 %v3025, %v3010
        %v3027 = vmul.f32 %v3025, %v3011
        %v3028 = vadd.f32 %v2994, %v3026
        %v3029 = vadd.f32 %v2995, %v3027
        %s3030 = sld [smem:[#allocation10 + $0x7b]]
        %v3031 = vstv %s3030
        %v3032 = vmul.f32 %v3031, %v3010
        %v3033 = vmul.f32 %v3031, %v3011
        %v3034 = vadd.f32 %v3008, %v3032
        %v3035 = vadd.f32 %v3009, %v3033
        %s3036 = sld [smem:[#allocation10 + $0x10]]
        %v3037 = vstv %s3036
        %v3038 = vmul.f32 %v3037, %v3010
        %v3039 = vmul.f32 %v3037, %v3011
        %3042 = vrot.lane.b32.xlu0 %v3038, 127
        %v3043 = vpop.permute.xlu0 %3042
        %3044 = vrot.lane.b32.xlu0 %v3039, 127
        %v3045 = vpop.permute.xlu0 %3044
        %v3048 = vadd.f32 %v3016, %v3043
        %v3049 = vadd.f32 %v3017, %v3045
        %s3050 = sld [smem:[#allocation10 + $0x34]]
        %v3051 = vstv %s3050
        %v3052 = vmul.f32 %v3051, %v3010
        %v3053 = vmul.f32 %v3051, %v3011
        %3056 = vrot.lane.b32.xlu0 %v3052, 127
        %v3057 = vpop.permute.xlu0 %3056
        %3058 = vrot.lane.b32.xlu0 %v3053, 127
        %v3059 = vpop.permute.xlu0 %3058
        %v3062 = vadd.f32 %v3022, %v3057
        %v3063 = vadd.f32 %v3023, %v3059
        %s3064 = sld [smem:[#allocation10 + $0x58]]
        %v3065 = vstv %s3064
        %v3066 = vmul.f32 %v3065, %v3010
        %v3067 = vmul.f32 %v3065, %v3011
        %3070 = vrot.lane.b32.xlu0 %v3066, 127
        %v3071 = vpop.permute.xlu0 %3070
        %3072 = vrot.lane.b32.xlu0 %v3067, 127
        %v3073 = vpop.permute.xlu0 %3072
        %v3076 = vadd.f32 %v3028, %v3071
        %v3077 = vadd.f32 %v3029, %v3073
        %s3078 = sld [smem:[#allocation10 + $0x7c]]
        %v3079 = vstv %s3078
        %v3080 = vmul.f32 %v3079, %v3010
        %v3081 = vmul.f32 %v3079, %v3011
        %3084 = vrot.lane.b32.xlu0 %v3080, 127
        %v3085 = vpop.permute.xlu0 %3084
        %3086 = vrot.lane.b32.xlu0 %v3081, 127
        %v3087 = vpop.permute.xlu0 %3086
        %v3090 = vadd.f32 %v3034, %v3085
        %v3091 = vadd.f32 %v3035, %v3087
        %s3092 = sld [smem:[#allocation10 + $0x11]]
        %v3093 = vstv %s3092
        %v3094 = vmul.f32 %v3093, %v3010
        %v3095 = vmul.f32 %v3093, %v3011
        %3098 = vrot.lane.b32.xlu0 %v3094, 126
        %v3099 = vpop.permute.xlu0 %3098
        %3100 = vrot.lane.b32.xlu0 %v3095, 126
        %v3101 = vpop.permute.xlu0 %3100
        %v3104 = vadd.f32 %v3048, %v3099
        %v3105 = vadd.f32 %v3049, %v3101
        %s3106 = sld [smem:[#allocation10 + $0x35]]
        %v3107 = vstv %s3106
        %v3108 = vmul.f32 %v3107, %v3010
        %v3109 = vmul.f32 %v3107, %v3011
        %3112 = vrot.lane.b32.xlu0 %v3108, 126
        %v3113 = vpop.permute.xlu0 %3112
        %3114 = vrot.lane.b32.xlu0 %v3109, 126
        %v3115 = vpop.permute.xlu0 %3114
        %v3118 = vadd.f32 %v3062, %v3113
        %v3119 = vadd.f32 %v3063, %v3115
        %s3120 = sld [smem:[#allocation10 + $0x59]]
        %v3121 = vstv %s3120
        %v3122 = vmul.f32 %v3121, %v3010
        %v3123 = vmul.f32 %v3121, %v3011
        %3126 = vrot.lane.b32.xlu0 %v3122, 126
        %v3127 = vpop.permute.xlu0 %3126
        %3128 = vrot.lane.b32.xlu0 %v3123, 126
        %v3129 = vpop.permute.xlu0 %3128
        %v3132 = vadd.f32 %v3076, %v3127
        %v3133 = vadd.f32 %v3077, %v3129
        %s3134 = sld [smem:[#allocation10 + $0x7d]]
        %v3135 = vstv %s3134
        %v3136 = vmul.f32 %v3135, %v3010
        %v3137 = vmul.f32 %v3135, %v3011
        %3140 = vrot.lane.b32.xlu0 %v3136, 126
        %v3141 = vpop.permute.xlu0 %3140
        %3142 = vrot.lane.b32.xlu0 %v3137, 126
        %v3143 = vpop.permute.xlu0 %3142
        %v3146 = vadd.f32 %v3090, %v3141
        %v3147 = vadd.f32 %v3091, %v3143
        %v3148 = vld [vmem:[%s1222] sm:$0xff]
        %v3149 = vld [vmem:[%s1222 + $0x8] sm:$0xff]
        %s3150 = sld [smem:[#allocation10 + $0x12]]
        %v3151 = vstv %s3150
        %v3152 = vmul.f32 %v3151, %v3148
        %v3153 = vmul.f32 %v3151, %v3149
        %v3154 = vadd.f32 %v3104, %v3152
        %v3155 = vadd.f32 %v3105, %v3153
        %s3156 = sld [smem:[#allocation10 + $0x36]]
        %v3157 = vstv %s3156
        %v3158 = vmul.f32 %v3157, %v3148
        %v3159 = vmul.f32 %v3157, %v3149
        %v3160 = vadd.f32 %v3118, %v3158
        %v3161 = vadd.f32 %v3119, %v3159
        %s3162 = sld [smem:[#allocation10 + $0x5a]]
        %v3163 = vstv %s3162
        %v3164 = vmul.f32 %v3163, %v3148
        %v3165 = vmul.f32 %v3163, %v3149
        %v3166 = vadd.f32 %v3132, %v3164
        %v3167 = vadd.f32 %v3133, %v3165
        %s3168 = sld [smem:[#allocation10 + $0x7e]]
        %v3169 = vstv %s3168
        %v3170 = vmul.f32 %v3169, %v3148
        %v3171 = vmul.f32 %v3169, %v3149
        %v3172 = vadd.f32 %v3146, %v3170
        %v3173 = vadd.f32 %v3147, %v3171
        %s3174 = sld [smem:[#allocation10 + $0x13]]
        %v3175 = vstv %s3174
        %v3176 = vmul.f32 %v3175, %v3148
        %v3177 = vmul.f32 %v3175, %v3149
        %3180 = vrot.lane.b32.xlu0 %v3176, 127
        %v3181 = vpop.permute.xlu0 %3180
        %3182 = vrot.lane.b32.xlu0 %v3177, 127
        %v3183 = vpop.permute.xlu0 %3182
        %v3186 = vadd.f32 %v3154, %v3181
        %v3187 = vadd.f32 %v3155, %v3183
        %s3188 = sld [smem:[#allocation10 + $0x37]]
        %v3189 = vstv %s3188
        %v3190 = vmul.f32 %v3189, %v3148
        %v3191 = vmul.f32 %v3189, %v3149
        %3194 = vrot.lane.b32.xlu0 %v3190, 127
        %v3195 = vpop.permute.xlu0 %3194
        %3196 = vrot.lane.b32.xlu0 %v3191, 127
        %v3197 = vpop.permute.xlu0 %3196
        %v3200 = vadd.f32 %v3160, %v3195
        %v3201 = vadd.f32 %v3161, %v3197
        %s3202 = sld [smem:[#allocation10 + $0x5b]]
        %v3203 = vstv %s3202
        %v3204 = vmul.f32 %v3203, %v3148
        %v3205 = vmul.f32 %v3203, %v3149
        %3208 = vrot.lane.b32.xlu0 %v3204, 127
        %v3209 = vpop.permute.xlu0 %3208
        %3210 = vrot.lane.b32.xlu0 %v3205, 127
        %v3211 = vpop.permute.xlu0 %3210
        %v3214 = vadd.f32 %v3166, %v3209
        %v3215 = vadd.f32 %v3167, %v3211
        %s3216 = sld [smem:[#allocation10 + $0x7f]]
        %v3217 = vstv %s3216
        %v3218 = vmul.f32 %v3217, %v3148
        %v3219 = vmul.f32 %v3217, %v3149
        %3222 = vrot.lane.b32.xlu0 %v3218, 127
        %v3223 = vpop.permute.xlu0 %3222
        %3224 = vrot.lane.b32.xlu0 %v3219, 127
        %v3225 = vpop.permute.xlu0 %3224
        %v3228 = vadd.f32 %v3172, %v3223
        %v3229 = vadd.f32 %v3173, %v3225
        %s3230 = sld [smem:[#allocation10 + $0x14]]
        %v3231 = vstv %s3230
        %v3232 = vmul.f32 %v3231, %v3148
        %v3233 = vmul.f32 %v3231, %v3149
        %3236 = vrot.lane.b32.xlu0 %v3232, 126
        %v3237 = vpop.permute.xlu0 %3236
        %3238 = vrot.lane.b32.xlu0 %v3233, 126
        %v3239 = vpop.permute.xlu0 %3238
        %v3242 = vadd.f32 %v3186, %v3237
        %v3243 = vadd.f32 %v3187, %v3239
        %s3244 = sld [smem:[#allocation10 + $0x38]]
        %v3245 = vstv %s3244
        %v3246 = vmul.f32 %v3245, %v3148
        %v3247 = vmul.f32 %v3245, %v3149
        %3250 = vrot.lane.b32.xlu0 %v3246, 126
        %v3251 = vpop.permute.xlu0 %3250
        %3252 = vrot.lane.b32.xlu0 %v3247, 126
        %v3253 = vpop.permute.xlu0 %3252
        %v3256 = vadd.f32 %v3200, %v3251
        %v3257 = vadd.f32 %v3201, %v3253
        %s3258 = sld [smem:[#allocation10 + $0x5c]]
        %v3259 = vstv %s3258
        %v3260 = vmul.f32 %v3259, %v3148
        %v3261 = vmul.f32 %v3259, %v3149
        %3264 = vrot.lane.b32.xlu0 %v3260, 126
        %v3265 = vpop.permute.xlu0 %3264
        %3266 = vrot.lane.b32.xlu0 %v3261, 126
        %v3267 = vpop.permute.xlu0 %3266
        %v3270 = vadd.f32 %v3214, %v3265
        %v3271 = vadd.f32 %v3215, %v3267
        %s3272 = sld [smem:[#allocation10 + $0x80]]
        %v3273 = vstv %s3272
        %v3274 = vmul.f32 %v3273, %v3148
        %v3275 = vmul.f32 %v3273, %v3149
        %3278 = vrot.lane.b32.xlu0 %v3274, 126
        %v3279 = vpop.permute.xlu0 %3278
        %3280 = vrot.lane.b32.xlu0 %v3275, 126
        %v3281 = vpop.permute.xlu0 %3280
        %v3284 = vadd.f32 %v3228, %v3279
        %v3285 = vadd.f32 %v3229, %v3281
        %v3286 = vld [vmem:[%s1222 + $0x1] sm:$0xff]
        %v3287 = vld [vmem:[%s1222 + $0x9] sm:$0xff]
        %s3288 = sld [smem:[#allocation10 + $0x15]]
        %v3289 = vstv %s3288
        %v3290 = vmul.f32 %v3289, %v3286
        %v3291 = vmul.f32 %v3289, %v3287
        %v3292 = vadd.f32 %v3242, %v3290
        %v3293 = vadd.f32 %v3243, %v3291
        %s3294 = sld [smem:[#allocation10 + $0x39]]
        %v3295 = vstv %s3294
        %v3296 = vmul.f32 %v3295, %v3286
        %v3297 = vmul.f32 %v3295, %v3287
        %v3298 = vadd.f32 %v3256, %v3296
        %v3299 = vadd.f32 %v3257, %v3297
        %s3300 = sld [smem:[#allocation10 + $0x5d]]
        %v3301 = vstv %s3300
        %v3302 = vmul.f32 %v3301, %v3286
        %v3303 = vmul.f32 %v3301, %v3287
        %v3304 = vadd.f32 %v3270, %v3302
        %v3305 = vadd.f32 %v3271, %v3303
        %s3306 = sld [smem:[#allocation10 + $0x81]]
        %v3307 = vstv %s3306
        %v3308 = vmul.f32 %v3307, %v3286
        %v3309 = vmul.f32 %v3307, %v3287
        %v3310 = vadd.f32 %v3284, %v3308
        %v3311 = vadd.f32 %v3285, %v3309
        %s3312 = sld [smem:[#allocation10 + $0x16]]
        %v3313 = vstv %s3312
        %v3314 = vmul.f32 %v3313, %v3286
        %v3315 = vmul.f32 %v3313, %v3287
        %3318 = vrot.lane.b32.xlu0 %v3314, 127
        %v3319 = vpop.permute.xlu0 %3318
        %3320 = vrot.lane.b32.xlu0 %v3315, 127
        %v3321 = vpop.permute.xlu0 %3320
        %v3324 = vadd.f32 %v3292, %v3319
        %v3325 = vadd.f32 %v3293, %v3321
        %s3326 = sld [smem:[#allocation10 + $0x3a]]
        %v3327 = vstv %s3326
        %v3328 = vmul.f32 %v3327, %v3286
        %v3329 = vmul.f32 %v3327, %v3287
        %3332 = vrot.lane.b32.xlu0 %v3328, 127
        %v3333 = vpop.permute.xlu0 %3332
        %3334 = vrot.lane.b32.xlu0 %v3329, 127
        %v3335 = vpop.permute.xlu0 %3334
        %v3338 = vadd.f32 %v3298, %v3333
        %v3339 = vadd.f32 %v3299, %v3335
        %s3340 = sld [smem:[#allocation10 + $0x5e]]
        %v3341 = vstv %s3340
        %v3342 = vmul.f32 %v3341, %v3286
        %v3343 = vmul.f32 %v3341, %v3287
        %3346 = vrot.lane.b32.xlu0 %v3342, 127
        %v3347 = vpop.permute.xlu0 %3346
        %3348 = vrot.lane.b32.xlu0 %v3343, 127
        %v3349 = vpop.permute.xlu0 %3348
        %v3352 = vadd.f32 %v3304, %v3347
        %v3353 = vadd.f32 %v3305, %v3349
        %s3354 = sld [smem:[#allocation10 + $0x82]]
        %v3355 = vstv %s3354
        %v3356 = vmul.f32 %v3355, %v3286
        %v3357 = vmul.f32 %v3355, %v3287
        %3360 = vrot.lane.b32.xlu0 %v3356, 127
        %v3361 = vpop.permute.xlu0 %3360
        %3362 = vrot.lane.b32.xlu0 %v3357, 127
        %v3363 = vpop.permute.xlu0 %3362
        %v3366 = vadd.f32 %v3310, %v3361
        %v3367 = vadd.f32 %v3311, %v3363
        %s3368 = sld [smem:[#allocation10 + $0x17]]
        %v3369 = vstv %s3368
        %v3370 = vmul.f32 %v3369, %v3286
        %v3371 = vmul.f32 %v3369, %v3287
        %3374 = vrot.lane.b32.xlu0 %v3370, 126
        %v3375 = vpop.permute.xlu0 %3374
        %3376 = vrot.lane.b32.xlu0 %v3371, 126
        %v3377 = vpop.permute.xlu0 %3376
        %v3380 = vadd.f32 %v3324, %v3375
        %v3381 = vadd.f32 %v3325, %v3377
        %s3382 = sld [smem:[#allocation10 + $0x3b]]
        %v3383 = vstv %s3382
        %v3384 = vmul.f32 %v3383, %v3286
        %v3385 = vmul.f32 %v3383, %v3287
        %3388 = vrot.lane.b32.xlu0 %v3384, 126
        %v3389 = vpop.permute.xlu0 %3388
        %3390 = vrot.lane.b32.xlu0 %v3385, 126
        %v3391 = vpop.permute.xlu0 %3390
        %v3394 = vadd.f32 %v3338, %v3389
        %v3395 = vadd.f32 %v3339, %v3391
        %s3396 = sld [smem:[#allocation10 + $0x5f]]
        %v3397 = vstv %s3396
        %v3398 = vmul.f32 %v3397, %v3286
        %v3399 = vmul.f32 %v3397, %v3287
        %3402 = vrot.lane.b32.xlu0 %v3398, 126
        %v3403 = vpop.permute.xlu0 %3402
        %3404 = vrot.lane.b32.xlu0 %v3399, 126
        %v3405 = vpop.permute.xlu0 %3404
        %v3408 = vadd.f32 %v3352, %v3403
        %v3409 = vadd.f32 %v3353, %v3405
        %s3410 = sld [smem:[#allocation10 + $0x83]]
        %v3411 = vstv %s3410
        %v3412 = vmul.f32 %v3411, %v3286
        %v3413 = vmul.f32 %v3411, %v3287
        %3416 = vrot.lane.b32.xlu0 %v3412, 126
        %v3417 = vpop.permute.xlu0 %3416
        %3418 = vrot.lane.b32.xlu0 %v3413, 126
        %v3419 = vpop.permute.xlu0 %3418
        %v3422 = vadd.f32 %v3366, %v3417
        %v3423 = vadd.f32 %v3367, %v3419
        %v3424 = vld [vmem:[%s1222 + $0x2] sm:$0xff]
        %v3425 = vld [vmem:[%s1222 + $0xa] sm:$0xff]
        %s3426 = sld [smem:[#allocation10 + $0x18]]
        %v3427 = vstv %s3426
        %v3428 = vmul.f32 %v3427, %v3424
        %v3429 = vmul.f32 %v3427, %v3425
        %v3430 = vadd.f32 %v3380, %v3428
        %v3431 = vadd.f32 %v3381, %v3429
        %s3432 = sld [smem:[#allocation10 + $0x3c]]
        %v3433 = vstv %s3432
        %v3434 = vmul.f32 %v3433, %v3424
        %v3435 = vmul.f32 %v3433, %v3425
        %v3436 = vadd.f32 %v3394, %v3434
        %v3437 = vadd.f32 %v3395, %v3435
        %s3438 = sld [smem:[#allocation10 + $0x60]]
        %v3439 = vstv %s3438
        %v3440 = vmul.f32 %v3439, %v3424
        %v3441 = vmul.f32 %v3439, %v3425
        %v3442 = vadd.f32 %v3408, %v3440
        %v3443 = vadd.f32 %v3409, %v3441
        %s3444 = sld [smem:[#allocation10 + $0x84]]
        %v3445 = vstv %s3444
        %v3446 = vmul.f32 %v3445, %v3424
        %v3447 = vmul.f32 %v3445, %v3425
        %v3448 = vadd.f32 %v3422, %v3446
        %v3449 = vadd.f32 %v3423, %v3447
        %s3450 = sld [smem:[#allocation10 + $0x19]]
        %v3451 = vstv %s3450
        %v3452 = vmul.f32 %v3451, %v3424
        %v3453 = vmul.f32 %v3451, %v3425
        %3456 = vrot.lane.b32.xlu0 %v3452, 127
        %v3457 = vpop.permute.xlu0 %3456
        %3458 = vrot.lane.b32.xlu0 %v3453, 127
        %v3459 = vpop.permute.xlu0 %3458
        %v3462 = vadd.f32 %v3430, %v3457
        %v3463 = vadd.f32 %v3431, %v3459
        %s3464 = sld [smem:[#allocation10 + $0x3d]]
        %v3465 = vstv %s3464
        %v3466 = vmul.f32 %v3465, %v3424
        %v3467 = vmul.f32 %v3465, %v3425
        %3470 = vrot.lane.b32.xlu0 %v3466, 127
        %v3471 = vpop.permute.xlu0 %3470
        %3472 = vrot.lane.b32.xlu0 %v3467, 127
        %v3473 = vpop.permute.xlu0 %3472
        %v3476 = vadd.f32 %v3436, %v3471
        %v3477 = vadd.f32 %v3437, %v3473
        %s3478 = sld [smem:[#allocation10 + $0x61]]
        %v3479 = vstv %s3478
        %v3480 = vmul.f32 %v3479, %v3424
        %v3481 = vmul.f32 %v3479, %v3425
        %3484 = vrot.lane.b32.xlu0 %v3480, 127
        %v3485 = vpop.permute.xlu0 %3484
        %3486 = vrot.lane.b32.xlu0 %v3481, 127
        %v3487 = vpop.permute.xlu0 %3486
        %v3490 = vadd.f32 %v3442, %v3485
        %v3491 = vadd.f32 %v3443, %v3487
        %s3492 = sld [smem:[#allocation10 + $0x85]]
        %v3493 = vstv %s3492
        %v3494 = vmul.f32 %v3493, %v3424
        %v3495 = vmul.f32 %v3493, %v3425
        %3498 = vrot.lane.b32.xlu0 %v3494, 127
        %v3499 = vpop.permute.xlu0 %3498
        %3500 = vrot.lane.b32.xlu0 %v3495, 127
        %v3501 = vpop.permute.xlu0 %3500
        %v3504 = vadd.f32 %v3448, %v3499
        %v3505 = vadd.f32 %v3449, %v3501
        %s3506 = sld [smem:[#allocation10 + $0x1a]]
        %v3507 = vstv %s3506
        %v3508 = vmul.f32 %v3507, %v3424
        %v3509 = vmul.f32 %v3507, %v3425
        %3512 = vrot.lane.b32.xlu0 %v3508, 126
        %v3513 = vpop.permute.xlu0 %3512
        %3514 = vrot.lane.b32.xlu0 %v3509, 126
        %v3515 = vpop.permute.xlu0 %3514
        %v3518 = vadd.f32 %v3462, %v3513
        %v3519 = vadd.f32 %v3463, %v3515
        %s3520 = sld [smem:[#allocation10 + $0x3e]]
        %v3521 = vstv %s3520
        %v3522 = vmul.f32 %v3521, %v3424
        %v3523 = vmul.f32 %v3521, %v3425
        %3526 = vrot.lane.b32.xlu0 %v3522, 126
        %v3527 = vpop.permute.xlu0 %3526
        %3528 = vrot.lane.b32.xlu0 %v3523, 126
        %v3529 = vpop.permute.xlu0 %3528
        %v3532 = vadd.f32 %v3476, %v3527
        %v3533 = vadd.f32 %v3477, %v3529
        %s3534 = sld [smem:[#allocation10 + $0x62]]
        %v3535 = vstv %s3534
        %v3536 = vmul.f32 %v3535, %v3424
        %v3537 = vmul.f32 %v3535, %v3425
        %3540 = vrot.lane.b32.xlu0 %v3536, 126
        %v3541 = vpop.permute.xlu0 %3540
        %3542 = vrot.lane.b32.xlu0 %v3537, 126
        %v3543 = vpop.permute.xlu0 %3542
        %v3546 = vadd.f32 %v3490, %v3541
        %v3547 = vadd.f32 %v3491, %v3543
        %s3548 = sld [smem:[#allocation10 + $0x86]]
        %v3549 = vstv %s3548
        %v3550 = vmul.f32 %v3549, %v3424
        %v3551 = vmul.f32 %v3549, %v3425
        %3554 = vrot.lane.b32.xlu0 %v3550, 126
        %v3555 = vpop.permute.xlu0 %3554
        %3556 = vrot.lane.b32.xlu0 %v3551, 126
        %v3557 = vpop.permute.xlu0 %3556
        %v3560 = vadd.f32 %v3504, %v3555
        %v3561 = vadd.f32 %v3505, %v3557
        %v3562 = vld [vmem:[%s1637] sm:$0xff]
        %v3563 = vld [vmem:[%s1637 + $0x8] sm:$0xff]
        %s3564 = sld [smem:[#allocation10 + $0x1b]]
        %v3565 = vstv %s3564
        %v3566 = vmul.f32 %v3565, %v3562
        %v3567 = vmul.f32 %v3565, %v3563
        %v3568 = vadd.f32 %v3518, %v3566
        %v3569 = vadd.f32 %v3519, %v3567
        %s3570 = sld [smem:[#allocation10 + $0x3f]]
        %v3571 = vstv %s3570
        %v3572 = vmul.f32 %v3571, %v3562
        %v3573 = vmul.f32 %v3571, %v3563
        %v3574 = vadd.f32 %v3532, %v3572
        %v3575 = vadd.f32 %v3533, %v3573
        %s3576 = sld [smem:[#allocation10 + $0x63]]
        %v3577 = vstv %s3576
        %v3578 = vmul.f32 %v3577, %v3562
        %v3579 = vmul.f32 %v3577, %v3563
        %v3580 = vadd.f32 %v3546, %v3578
        %v3581 = vadd.f32 %v3547, %v3579
        %s3582 = sld [smem:[#allocation10 + $0x87]]
        %v3583 = vstv %s3582
        %v3584 = vmul.f32 %v3583, %v3562
        %v3585 = vmul.f32 %v3583, %v3563
        %v3586 = vadd.f32 %v3560, %v3584
        %v3587 = vadd.f32 %v3561, %v3585
        %s3588 = sld [smem:[#allocation10 + $0x1c]]
        %v3589 = vstv %s3588
        %v3590 = vmul.f32 %v3589, %v3562
        %v3591 = vmul.f32 %v3589, %v3563
        %3594 = vrot.lane.b32.xlu0 %v3590, 127
        %v3595 = vpop.permute.xlu0 %3594
        %3596 = vrot.lane.b32.xlu0 %v3591, 127
        %v3597 = vpop.permute.xlu0 %3596
        %v3600 = vadd.f32 %v3568, %v3595
        %v3601 = vadd.f32 %v3569, %v3597
        %s3602 = sld [smem:[#allocation10 + $0x40]]
        %v3603 = vstv %s3602
        %v3604 = vmul.f32 %v3603, %v3562
        %v3605 = vmul.f32 %v3603, %v3563
        %3608 = vrot.lane.b32.xlu0 %v3604, 127
        %v3609 = vpop.permute.xlu0 %3608
        %3610 = vrot.lane.b32.xlu0 %v3605, 127
        %v3611 = vpop.permute.xlu0 %3610
        %v3614 = vadd.f32 %v3574, %v3609
        %v3615 = vadd.f32 %v3575, %v3611
        %s3616 = sld [smem:[#allocation10 + $0x64]]
        %v3617 = vstv %s3616
        %v3618 = vmul.f32 %v3617, %v3562
        %v3619 = vmul.f32 %v3617, %v3563
        %3622 = vrot.lane.b32.xlu0 %v3618, 127
        %v3623 = vpop.permute.xlu0 %3622
        %3624 = vrot.lane.b32.xlu0 %v3619, 127
        %v3625 = vpop.permute.xlu0 %3624
        %v3628 = vadd.f32 %v3580, %v3623
        %v3629 = vadd.f32 %v3581, %v3625
        %s3630 = sld [smem:[#allocation10 + $0x88]]
        %v3631 = vstv %s3630
        %v3632 = vmul.f32 %v3631, %v3562
        %v3633 = vmul.f32 %v3631, %v3563
        %3636 = vrot.lane.b32.xlu0 %v3632, 127
        %v3637 = vpop.permute.xlu0 %3636
        %3638 = vrot.lane.b32.xlu0 %v3633, 127
        %v3639 = vpop.permute.xlu0 %3638
        %v3642 = vadd.f32 %v3586, %v3637
        %v3643 = vadd.f32 %v3587, %v3639
        %s3644 = sld [smem:[#allocation10 + $0x1d]]
        %v3645 = vstv %s3644
        %v3646 = vmul.f32 %v3645, %v3562
        %v3647 = vmul.f32 %v3645, %v3563
        %3650 = vrot.lane.b32.xlu0 %v3646, 126
        %v3651 = vpop.permute.xlu0 %3650
        %3652 = vrot.lane.b32.xlu0 %v3647, 126
        %v3653 = vpop.permute.xlu0 %3652
        %v3656 = vadd.f32 %v3600, %v3651
        %v3657 = vadd.f32 %v3601, %v3653
        %s3658 = sld [smem:[#allocation10 + $0x41]]
        %v3659 = vstv %s3658
        %v3660 = vmul.f32 %v3659, %v3562
        %v3661 = vmul.f32 %v3659, %v3563
        %3664 = vrot.lane.b32.xlu0 %v3660, 126
        %v3665 = vpop.permute.xlu0 %3664
        %3666 = vrot.lane.b32.xlu0 %v3661, 126
        %v3667 = vpop.permute.xlu0 %3666
        %v3670 = vadd.f32 %v3614, %v3665
        %v3671 = vadd.f32 %v3615, %v3667
        %s3672 = sld [smem:[#allocation10 + $0x65]]
        %v3673 = vstv %s3672
        %v3674 = vmul.f32 %v3673, %v3562
        %v3675 = vmul.f32 %v3673, %v3563
        %3678 = vrot.lane.b32.xlu0 %v3674, 126
        %v3679 = vpop.permute.xlu0 %3678
        %3680 = vrot.lane.b32.xlu0 %v3675, 126
        %v3681 = vpop.permute.xlu0 %3680
        %v3684 = vadd.f32 %v3628, %v3679
        %v3685 = vadd.f32 %v3629, %v3681
        %s3686 = sld [smem:[#allocation10 + $0x89]]
        %v3687 = vstv %s3686
        %v3688 = vmul.f32 %v3687, %v3562
        %v3689 = vmul.f32 %v3687, %v3563
        %3692 = vrot.lane.b32.xlu0 %v3688, 126
        %v3693 = vpop.permute.xlu0 %3692
        %3694 = vrot.lane.b32.xlu0 %v3689, 126
        %v3695 = vpop.permute.xlu0 %3694
        %v3698 = vadd.f32 %v3642, %v3693
        %v3699 = vadd.f32 %v3643, %v3695
        %v3700 = vld [vmem:[%s1637 + $0x1] sm:$0xff]
        %v3701 = vld [vmem:[%s1637 + $0x9] sm:$0xff]
        %s3702 = sld [smem:[#allocation10 + $0x1e]]
        %v3703 = vstv %s3702
        %v3704 = vmul.f32 %v3703, %v3700
        %v3705 = vmul.f32 %v3703, %v3701
        %v3706 = vadd.f32 %v3656, %v3704
        %v3707 = vadd.f32 %v3657, %v3705
        %s3708 = sld [smem:[#allocation10 + $0x42]]
        %v3709 = vstv %s3708
        %v3710 = vmul.f32 %v3709, %v3700
        %v3711 = vmul.f32 %v3709, %v3701
        %v3712 = vadd.f32 %v3670, %v3710
        %v3713 = vadd.f32 %v3671, %v3711
        %s3714 = sld [smem:[#allocation10 + $0x66]]
        %v3715 = vstv %s3714
        %v3716 = vmul.f32 %v3715, %v3700
        %v3717 = vmul.f32 %v3715, %v3701
        %v3718 = vadd.f32 %v3684, %v3716
        %v3719 = vadd.f32 %v3685, %v3717
        %s3720 = sld [smem:[#allocation10 + $0x8a]]
        %v3721 = vstv %s3720
        %v3722 = vmul.f32 %v3721, %v3700
        %v3723 = vmul.f32 %v3721, %v3701
        %v3724 = vadd.f32 %v3698, %v3722
        %v3725 = vadd.f32 %v3699, %v3723
        %s3726 = sld [smem:[#allocation10 + $0x1f]]
        %v3727 = vstv %s3726
        %v3728 = vmul.f32 %v3727, %v3700
        %v3729 = vmul.f32 %v3727, %v3701
        %3732 = vrot.lane.b32.xlu0 %v3728, 127
        %v3733 = vpop.permute.xlu0 %3732
        %3734 = vrot.lane.b32.xlu0 %v3729, 127
        %v3735 = vpop.permute.xlu0 %3734
        %v3738 = vadd.f32 %v3706, %v3733
        %v3739 = vadd.f32 %v3707, %v3735
        %s3740 = sld [smem:[#allocation10 + $0x43]]
        %v3741 = vstv %s3740
        %v3742 = vmul.f32 %v3741, %v3700
        %v3743 = vmul.f32 %v3741, %v3701
        %3746 = vrot.lane.b32.xlu0 %v3742, 127
        %v3747 = vpop.permute.xlu0 %3746
        %3748 = vrot.lane.b32.xlu0 %v3743, 127
        %v3749 = vpop.permute.xlu0 %3748
        %v3752 = vadd.f32 %v3712, %v3747
        %v3753 = vadd.f32 %v3713, %v3749
        %s3754 = sld [smem:[#allocation10 + $0x67]]
        %v3755 = vstv %s3754
        %v3756 = vmul.f32 %v3755, %v3700
        %v3757 = vmul.f32 %v3755, %v3701
        %3760 = vrot.lane.b32.xlu0 %v3756, 127
        %v3761 = vpop.permute.xlu0 %3760
        %3762 = vrot.lane.b32.xlu0 %v3757, 127
        %v3763 = vpop.permute.xlu0 %3762
        %v3766 = vadd.f32 %v3718, %v3761
        %v3767 = vadd.f32 %v3719, %v3763
        %s3768 = sld [smem:[#allocation10 + $0x8b]]
        %v3769 = vstv %s3768
        %v3770 = vmul.f32 %v3769, %v3700
        %v3771 = vmul.f32 %v3769, %v3701
        %3774 = vrot.lane.b32.xlu0 %v3770, 127
        %v3775 = vpop.permute.xlu0 %3774
        %3776 = vrot.lane.b32.xlu0 %v3771, 127
        %v3777 = vpop.permute.xlu0 %3776
        %v3780 = vadd.f32 %v3724, %v3775
        %v3781 = vadd.f32 %v3725, %v3777
        %s3782 = sld [smem:[#allocation10 + $0x20]]
        %v3783 = vstv %s3782
        %v3784 = vmul.f32 %v3783, %v3700
        %v3785 = vmul.f32 %v3783, %v3701
        %3788 = vrot.lane.b32.xlu0 %v3784, 126
        %v3789 = vpop.permute.xlu0 %3788
        %3790 = vrot.lane.b32.xlu0 %v3785, 126
        %v3791 = vpop.permute.xlu0 %3790
        %v3794 = vadd.f32 %v3738, %v3789
        %v3795 = vadd.f32 %v3739, %v3791
        %s3796 = sld [smem:[#allocation10 + $0x44]]
        %v3797 = vstv %s3796
        %v3798 = vmul.f32 %v3797, %v3700
        %v3799 = vmul.f32 %v3797, %v3701
        %3802 = vrot.lane.b32.xlu0 %v3798, 126
        %v3803 = vpop.permute.xlu0 %3802
        %3804 = vrot.lane.b32.xlu0 %v3799, 126
        %v3805 = vpop.permute.xlu0 %3804
        %v3808 = vadd.f32 %v3752, %v3803
        %v3809 = vadd.f32 %v3753, %v3805
        %s3810 = sld [smem:[#allocation10 + $0x68]]
        %v3811 = vstv %s3810
        %v3812 = vmul.f32 %v3811, %v3700
        %v3813 = vmul.f32 %v3811, %v3701
        %3816 = vrot.lane.b32.xlu0 %v3812, 126
        %v3817 = vpop.permute.xlu0 %3816
        %3818 = vrot.lane.b32.xlu0 %v3813, 126
        %v3819 = vpop.permute.xlu0 %3818
        %v3822 = vadd.f32 %v3766, %v3817
        %v3823 = vadd.f32 %v3767, %v3819
        %s3824 = sld [smem:[#allocation10 + $0x8c]]
        %v3825 = vstv %s3824
        %v3826 = vmul.f32 %v3825, %v3700
        %v3827 = vmul.f32 %v3825, %v3701
        %3830 = vrot.lane.b32.xlu0 %v3826, 126
        %v3831 = vpop.permute.xlu0 %3830
        %3832 = vrot.lane.b32.xlu0 %v3827, 126
        %v3833 = vpop.permute.xlu0 %3832
        %v3836 = vadd.f32 %v3780, %v3831
        %v3837 = vadd.f32 %v3781, %v3833
        %v3838 = vld [vmem:[%s1637 + $0x2] sm:$0xff]
        %v3839 = vld [vmem:[%s1637 + $0xa] sm:$0xff]
        %s3840 = sld [smem:[#allocation10 + $0x21]]
        %v3841 = vstv %s3840
        %v3842 = vmul.f32 %v3841, %v3838
        %v3843 = vmul.f32 %v3841, %v3839
        %v3844 = vadd.f32 %v3794, %v3842
        %v3845 = vadd.f32 %v3795, %v3843
        %s3846 = sld [smem:[#allocation10 + $0x45]]
        %v3847 = vstv %s3846
        %v3848 = vmul.f32 %v3847, %v3838
        %v3849 = vmul.f32 %v3847, %v3839
        %v3850 = vadd.f32 %v3808, %v3848
        %v3851 = vadd.f32 %v3809, %v3849
        %s3852 = sld [smem:[#allocation10 + $0x69]]
        %v3853 = vstv %s3852
        %v3854 = vmul.f32 %v3853, %v3838
        %v3855 = vmul.f32 %v3853, %v3839
        %v3856 = vadd.f32 %v3822, %v3854
        %v3857 = vadd.f32 %v3823, %v3855
        %s3858 = sld [smem:[#allocation10 + $0x8d]]
        %v3859 = vstv %s3858
        %v3860 = vmul.f32 %v3859, %v3838
        %v3861 = vmul.f32 %v3859, %v3839
        %v3862 = vadd.f32 %v3836, %v3860
        %v3863 = vadd.f32 %v3837, %v3861
        %s3864 = sld [smem:[#allocation10 + $0x22]]
        %v3865 = vstv %s3864
        %v3866 = vmul.f32 %v3865, %v3838
        %v3867 = vmul.f32 %v3865, %v3839
        %3870 = vrot.lane.b32.xlu0 %v3866, 127
        %v3871 = vpop.permute.xlu0 %3870
        %3872 = vrot.lane.b32.xlu0 %v3867, 127
        %v3873 = vpop.permute.xlu0 %3872
        %v3876 = vadd.f32 %v3844, %v3871
        %v3877 = vadd.f32 %v3845, %v3873
        %s3878 = sld [smem:[#allocation10 + $0x46]]
        %v3879 = vstv %s3878
        %v3880 = vmul.f32 %v3879, %v3838
        %v3881 = vmul.f32 %v3879, %v3839
        %3884 = vrot.lane.b32.xlu0 %v3880, 127
        %v3885 = vpop.permute.xlu0 %3884
        %3886 = vrot.lane.b32.xlu0 %v3881, 127
        %v3887 = vpop.permute.xlu0 %3886
        %v3890 = vadd.f32 %v3850, %v3885
        %v3891 = vadd.f32 %v3851, %v3887
        %s3892 = sld [smem:[#allocation10 + $0x6a]]
        %v3893 = vstv %s3892
        %v3894 = vmul.f32 %v3893, %v3838
        %v3895 = vmul.f32 %v3893, %v3839
        %3898 = vrot.lane.b32.xlu0 %v3894, 127
        %v3899 = vpop.permute.xlu0 %3898
        %3900 = vrot.lane.b32.xlu0 %v3895, 127
        %v3901 = vpop.permute.xlu0 %3900
        %v3904 = vadd.f32 %v3856, %v3899
        %v3905 = vadd.f32 %v3857, %v3901
        %s3906 = sld [smem:[#allocation10 + $0x8e]]
        %v3907 = vstv %s3906
        %v3908 = vmul.f32 %v3907, %v3838
        %v3909 = vmul.f32 %v3907, %v3839
        %3912 = vrot.lane.b32.xlu0 %v3908, 127
        %v3913 = vpop.permute.xlu0 %3912
        %3914 = vrot.lane.b32.xlu0 %v3909, 127
        %v3915 = vpop.permute.xlu0 %3914
        %v3918 = vadd.f32 %v3862, %v3913
        %v3919 = vadd.f32 %v3863, %v3915
        %s3920 = sld [smem:[#allocation10 + $0x23]]
        %v3921 = vstv %s3920
        %v3922 = vmul.f32 %v3921, %v3838
        %v3923 = vmul.f32 %v3921, %v3839
        %3926 = vrot.lane.b32.xlu0 %v3922, 126
        %v3927 = vpop.permute.xlu0 %3926
        %3928 = vrot.lane.b32.xlu0 %v3923, 126
        %v3929 = vpop.permute.xlu0 %3928
        %v3932 = vadd.f32 %v3876, %v3927
        %v3933 = vadd.f32 %v3877, %v3929
        %s3934 = sld [smem:[#allocation10 + $0x47]]
        %v3935 = vstv %s3934
        %v3936 = vmul.f32 %v3935, %v3838
        %v3937 = vmul.f32 %v3935, %v3839
        %3940 = vrot.lane.b32.xlu0 %v3936, 126
        %v3941 = vpop.permute.xlu0 %3940
        %3942 = vrot.lane.b32.xlu0 %v3937, 126
        %v3943 = vpop.permute.xlu0 %3942
        %v3946 = vadd.f32 %v3890, %v3941
        %v3947 = vadd.f32 %v3891, %v3943
        %s3948 = sld [smem:[#allocation10 + $0x6b]]
        %v3949 = vstv %s3948
        %v3950 = vmul.f32 %v3949, %v3838
        %v3951 = vmul.f32 %v3949, %v3839
        %3954 = vrot.lane.b32.xlu0 %v3950, 126
        %v3955 = vpop.permute.xlu0 %3954
        %3956 = vrot.lane.b32.xlu0 %v3951, 126
        %v3957 = vpop.permute.xlu0 %3956
        %v3960 = vadd.f32 %v3904, %v3955
        %v3961 = vadd.f32 %v3905, %v3957
        %s3962 = sld [smem:[#allocation10 + $0x8f]]
        %v3963 = vstv %s3962
        %v3964 = vmul.f32 %v3963, %v3838
        %v3965 = vmul.f32 %v3963, %v3839
        %3968 = vrot.lane.b32.xlu0 %v3964, 126
        %v3969 = vpop.permute.xlu0 %3968
        %3970 = vrot.lane.b32.xlu0 %v3965, 126
        %v3971 = vpop.permute.xlu0 %3970
        %v3974 = vadd.f32 %v3918, %v3969
        %v3975 = vadd.f32 %v3919, %v3971
        %v3976 = vld [vmem:[%s251] sm:$0xff]
        %v3977 = vld [vmem:[%s251 + $0x8] sm:$0xff]
        %v3978 = vadd.f32 %v3932, %v3976
        %v3979 = vadd.f32 %v3933, %v3977
        %vm3980 = vcmask 130048
        %3981 = vst.msk [vmem:[%s294] sm:$0xff] %vm3980, %v3978
        %3982 = vst.msk [vmem:[%s294 + $0x8] sm:$0xff] %vm3980, %v3979
        %s3983 = scalar_lea.vmem %s251, 16 [#allocation3]
        %v3984 = vld [vmem:[%s3983] sm:$0xff]
        %v3985 = vld [vmem:[%s3983 + $0x8] sm:$0xff]
        %v3986 = vadd.f32 %v3946, %v3984
        %v3987 = vadd.f32 %v3947, %v3985
        %s3988 = scalar_lea.vmem %s294, 16 [#allocation13]
        %3989 = vst.msk [vmem:[%s3988] sm:$0xff] %vm3980, %v3986
        %3990 = vst.msk [vmem:[%s3988 + $0x8] sm:$0xff] %vm3980, %v3987
        %s3991 = scalar_lea.vmem %s251, 32 [#allocation3]
        %v3992 = vld [vmem:[%s3991] sm:$0xff]
        %v3993 = vld [vmem:[%s3991 + $0x8] sm:$0xff]
        %v3994 = vadd.f32 %v3960, %v3992
        %v3995 = vadd.f32 %v3961, %v3993
        %s3996 = scalar_lea.vmem %s294, 32 [#allocation13]
        %3997 = vst.msk [vmem:[%s3996] sm:$0xff] %vm3980, %v3994
        %3998 = vst.msk [vmem:[%s3996 + $0x8] sm:$0xff] %vm3980, %v3995
        %s3999 = scalar_lea.vmem %s251, 48 [#allocation3]
        %v4000 = vld [vmem:[%s3999] sm:$0xff]
        %v4001 = vld [vmem:[%s3999 + $0x8] sm:$0xff]
        %v4002 = vadd.f32 %v3974, %v4000
        %v4003 = vadd.f32 %v3975, %v4001
        %s4004 = scalar_lea.vmem %s294, 48 [#allocation13]
        %4005 = vst.msk [vmem:[%s4004] sm:$0xff] %vm3980, %v4002
        %4006 = vst.msk [vmem:[%s4004 + $0x8] sm:$0xff] %vm3980, %v4003
        %s4007 = sand.u32 %s143, 1
        %s4008 = scalar_lea.sflag [#allocation5], %s4007
        %s4009 = sand.u32 %s143, 1
        %s4010 = smul.addr %s4009, 64
        %s4011 = scalar_lea.vmem [#allocation13], %s4010
        // Predicated region
        $region61: #{tpu_custom_call.1} parent=39 // pred_check
          %p4012 = pneg %p153
        $region62: #{tpu_custom_call.1} parent=39 // pred_check_branch
          %4014 = sbr.rel (%p4012) target = $region64
        $region63: #{tpu_custom_call.1} parent=39 // pred_region
          %s4016 = ssub.s32 1024, 1024
          %4017 = vsyncadd %s4008, %s4016
          %s4018 = smul.addr %s25, 8
          %s4019 = smul.addr %s4018, 128
          %s4020 = scalar_lea.hbm %s5, %s4019
          %s4021 = sshll.u32 %s4011, 4
          %s4022 = int_to_ptr.vmem [resolvable:$true] %s4021
          %4027 = dma.vmem_to_hbm [thread:$0]  %s4022, 1024, %s4020, %s4008, 128, 128, 8
        $region64: #{tpu_custom_call.1} parent=39 // pred_fallthru
          _
      $region40: #{tpu_custom_call.1} parent=5 // pred_fallthru
        _
      %p4028 = scmp.le.s32.totalorder 2, %s20
      // Predicated region
      $region65: #{tpu_custom_call.1} parent=5 // pred_check
        %p4029 = pneg %p4028
      $region66: #{tpu_custom_call.1} parent=5 // pred_check_branch
        %4031 = sbr.rel (%p4029) target = $region68
      $region67: #{tpu_custom_call.1} parent=5 // pred_region
        %s4032 = ssub.s32 %s20, 2
        // Predicated region
        $region69: #{tpu_custom_call.1} parent=67 // pred_check
          %p4033 = pneg %p159
        $region70: #{tpu_custom_call.1} parent=67 // pred_check_branch
          %4035 = sbr.rel (%p4033) target = $region72
        $region71: #{tpu_custom_call.1} parent=67 // pred_region
          %s4036 = sand.u32 %s144, 1
          %s4037 = scalar_lea.sflag [#allocation5], %s4036
          %s4038 = sand.u32 %s144, 1
          %s4039 = smul.addr %s4038, 64
          %s4040 = scalar_lea.vmem [#allocation13], %s4039
          %4041 = dma.done %s4037, 1024
        $region72: #{tpu_custom_call.1} parent=67 // pred_fallthru
          _
      $region68: #{tpu_custom_call.1} parent=5 // pred_fallthru
        _
    $region6: #{tpu_custom_call.1} parent=1 // loop_footer
      %s24 = sadd.s32 1, %s20
    $region7: #{tpu_custom_call.1} parent=1 // loop_footer_branch
      %19 = sbr.rel target = $region3
    $region8: #{tpu_custom_call.1} parent=1 // loop_exit
      _
    %4042 = vsyncpa [#allocation4], 1
    %s4043 = scalar_lea.sflag [#allocation4], 1
    %4044 = vsyncpa %s4043, 1
    %4045 = vsyncpa [#allocation5], 1
    %s4046 = scalar_lea.sflag [#allocation5], 1
    %4047 = vsyncpa %s4046, 1
    %4048 = vsyncpa [#allocation6], 1
    %s4049 = scalar_lea.sflag [#allocation6], 1
    %4050 = vsyncpa %s4049, 1
    %4051 = vsyncpa [#allocation9], 1
    %4052 = vsyncpa [#allocation12], 1

</llo_original>
